<compile_context>
chip_gen: v7x
topology: tpu7x:2x2x1
jax: 0.10.0
libtpu: 0.0.40
codegen_flags: <defaults>
</compile_context>

<pallas_src>
import functools

import jax
import jax.numpy as jnp
from jax.experimental import pallas as pl
from jax.experimental.pallas import tpu as pltpu

LAYER_UNITS = [64, 128, 256, 512, 1024]

_MAX_BATCH_TILE = 512   # per review: 512-1024 amortizes grid overhead; 512 keeps spill small
_MIN_GRID_STEPS = 2     # feed both TensorCores on v7x whenever the batch allows


def _round_up(n, m):
    return (n + m - 1) // m * m


def _choose_batch_tile(B):
    """Adaptive batch tile (multiple of 16 for bf16 sublane packing)."""
    if B <= 16:
        return 16
    # At least _MIN_GRID_STEPS tiles when B allows (v7x megacore), and enough tiles
    # that each one is <= _MAX_BATCH_TILE; size tiles from cdiv so padding is minimal.
    n_tiles = max(pl.cdiv(B, _MAX_BATCH_TILE), min(_MIN_GRID_STEPS, pl.cdiv(B, 16)))
    return _round_up(pl.cdiv(B, n_tiles), 16)


def _mlp_kernel(n_layers, x_ref, *refs):
    # refs = (w0, b0, w1, b1, ..., w_{L-1}, b_{L-1}, out_ref)
    out_ref = refs[-1]
    param_refs = refs[:-1]

    h = x_ref[...]                              # bf16 (bt, in_dim), pre-cast in wrapper
    for layer in range(n_layers):
        w_ref = param_refs[2 * layer]           # bf16 (in, out), VMEM-resident
        b_ref = param_refs[2 * layer + 1]       # f32  (1, out)
        # bf16 x bf16 -> f32 accumulation on the MXU; bias add in f32 on the VPU.
        acc = jnp.dot(h, w_ref[...], preferred_element_type=jnp.float32) + b_ref[...]
        if layer != n_layers - 1:
            # ReLU in f32 (legal on all chips), then immediately downcast so only the
            # bf16 activation is loop-carried (halves spill traffic of the big layers).
            h = jnp.maximum(acc, 0.0).astype(jnp.bfloat16)
        else:
            out_ref[...] = acc.astype(out_ref.dtype)


def nas_forward(x, weights, biases, *, batch_tile=None):
    """Pallas forward pass for NeuralArchitectureSearch.

    x:        (B, input_dim) float32
    weights:  list of (in_i, out_i) float32  (pre-transposed vs. torch Linear)
    biases:   list of (1, out_i)   float32
    """
    B, in_dim = x.shape
    out_dim = weights[-1].shape[1]
    n_layers = len(weights)

    if batch_tile is None:
        bt = _choose_batch_tile(B)
    else:
        bt = _round_up(min(batch_tile, max(B, 16)), 16)
    Bp = pl.cdiv(B, bt) * bt
    out_pad = _round_up(out_dim, 128)          # lane-dense output slab

    # Pre-cast x to bf16 (halves DMA bytes; the MXU consumes bf16 anyway) and pad batch.
    xp = x.astype(jnp.bfloat16)
    if Bp != B:
        xp = jnp.pad(xp, ((0, Bp - B), (0, 0)))

    w_bf16 = [w.astype(jnp.bfloat16) for w in weights]
    b_f32 = [b.astype(jnp.float32) for b in biases]
    if out_pad != out_dim:
        w_bf16[-1] = jnp.pad(w_bf16[-1], ((0, 0), (0, out_pad - out_dim)))
        b_f32[-1] = jnp.pad(b_f32[-1], ((0, 0), (0, out_pad - out_dim)))

    in_specs = [pl.BlockSpec((bt, in_dim), lambda i: (i, 0))]
    args = [xp]
    for w, b in zip(w_bf16, b_f32):
        # Constant index_map + single buffering: params are fetched once and stay
        # resident in VMEM across grid steps without a dead second buffer.
        in_specs.append(pl.BlockSpec(w.shape, lambda i: (0, 0),
                                     pipeline_mode=pl.Buffered(1)))
        in_specs.append(pl.BlockSpec(b.shape, lambda i: (0, 0),
                                     pipeline_mode=pl.Buffered(1)))
        args.append(w)
        args.append(b)

    kernel = functools.partial(_mlp_kernel, n_layers)

    out = pl.pallas_call(
        kernel,
        out_shape=jax.ShapeDtypeStruct((Bp, out_pad), jnp.float32),
        grid_spec=pltpu.PrefetchScalarGridSpec(
            num_scalar_prefetch=0,
            grid=(Bp // bt,),
            in_specs=in_specs,
            out_specs=pl.BlockSpec((bt, out_pad), lambda i: (i, 0)),
        ),
        compiler_params=pltpu.CompilerParams(
            dimension_semantics=("parallel",),
            vmem_limit_bytes=32 << 20,
        ),
    )(*args)

    return out[:B, :out_dim]


def init_params(key, input_dim, output_dim):
    """Deterministic init mirroring torch.nn.Linear default (U(-1/sqrt(in), 1/sqrt(in)))."""
    dims = [input_dim] + LAYER_UNITS + [output_dim]
    weights, biases = [], []
    for i in range(len(dims) - 1):
        fan_in, fan_out = dims[i], dims[i + 1]
        key, kw, kb = jax.random.split(key, 3)
        bound = 1.0 / jnp.sqrt(fan_in)
        # Stored as (in, out) == transpose of torch's (out, in) weight.
        w = jax.random.uniform(kw, (fan_in, fan_out), jnp.float32, -bound, bound)
        b = jax.random.uniform(kb, (1, fan_out), jnp.float32, -bound, bound)
        weights.append(w)
        biases.append(b)
    return weights, biases


def reference_forward_f32(x, weights, biases):
    h = x
    n = len(weights)
    for i, (w, b) in enumerate(zip(weights, biases)):
        h = h @ w + b
        if i != n - 1:
            h = jnp.maximum(h, 0.0)
    return h


def reference_forward_bf16(x, weights, biases):
    """Same bf16-matmul / f32-accumulate / bf16-carry path as the kernel, in plain XLA."""
    h = x.astype(jnp.bfloat16)
    n = len(weights)
    for i, (w, b) in enumerate(zip(weights, biases)):
        acc = jnp.dot(h, w.astype(jnp.bfloat16),
                      preferred_element_type=jnp.float32) + b.astype(jnp.float32)
        if i != n - 1:
            h = jnp.maximum(acc, 0.0).astype(jnp.bfloat16)
        else:
            return acc
    return acc


if __name__ == "__main__":
    # TODO(synk): NAS search / Bayesian optimization / Adam training loop have no
    # Pallas equivalent; only forward() is implemented as a kernel.
    key = jax.random.PRNGKey(0)
    input_dim, output_dim = 32, 16
    kx1, kx2, kx3, kp = jax.random.split(key, 4)
    weights, biases = init_params(kp, input_dim, output_dim)

    # Case 1: toy batch (B=8) -> single 16-row tile.
    x_small = jax.random.normal(kx1, (8, input_dim), jnp.float32)
    out_small = jax.block_until_ready(nas_forward(x_small, weights, biases))
    assert out_small.shape == (8, output_dim)
    ref_bf16 = reference_forward_bf16(x_small, weights, biases)
    ref_f32 = reference_forward_f32(x_small, weights, biases)
    assert jnp.allclose(out_small, ref_bf16, atol=1e-3, rtol=1e-3)
    assert jnp.allclose(out_small, ref_f32, atol=5e-2, rtol=5e-2)

    # Case 2: non-multiple batch (B=300) -> adaptive tile (160 rows), 2 grid steps.
    x_mid = jax.random.normal(kx2, (300, input_dim), jnp.float32)
    out_mid = jax.block_until_ready(nas_forward(x_mid, weights, biases))
    assert out_mid.shape == (300, output_dim)
    ref_mid_bf16 = reference_forward_bf16(x_mid, weights, biases)
    assert jnp.allclose(out_mid, ref_mid_bf16, atol=1e-3, rtol=1e-3)

    # Case 3: larger batch (B=1029) -> multi-tile path with tiles near the 512 cap.
    x_big = jax.random.normal(kx3, (1029, input_dim), jnp.float32)
    out_big = jax.block_until_ready(nas_forward(x_big, weights, biases))
    assert out_big.shape == (1029, output_dim)
    ref_big_bf16 = reference_forward_bf16(x_big, weights, biases)
    assert jnp.allclose(out_big, ref_big_bf16, atol=1e-3, rtol=1e-3)

    print("KERNEL_OK")
</pallas_src>

<mosaic_0001>
module attributes {stable_mosaic.version = 11 : i64} {
  func.func @_mlp_kernel(%arg0: i32, %arg1: memref<16x32xbf16, #tpu.memory_space<vmem>>, %arg2: memref<32x64xbf16, #tpu.memory_space<vmem>>, %arg3: memref<1x64xf32, #tpu.memory_space<vmem>>, %arg4: memref<64x128xbf16, #tpu.memory_space<vmem>>, %arg5: memref<1x128xf32, #tpu.memory_space<vmem>>, %arg6: memref<128x256xbf16, #tpu.memory_space<vmem>>, %arg7: memref<1x256xf32, #tpu.memory_space<vmem>>, %arg8: memref<256x512xbf16, #tpu.memory_space<vmem>>, %arg9: memref<1x512xf32, #tpu.memory_space<vmem>>, %arg10: memref<512x1024xbf16, #tpu.memory_space<vmem>>, %arg11: memref<1x1024xf32, #tpu.memory_space<vmem>>, %arg12: memref<1024x128xbf16, #tpu.memory_space<vmem>>, %arg13: memref<1x128xf32, #tpu.memory_space<vmem>>, %arg14: memref<16x128xf32, #tpu.memory_space<vmem>>) attributes {dimension_semantics = [#tpu.dimension_semantics<parallel>], iteration_bounds = array<i64: 1>, scalar_prefetch = 0 : i64, scratch_operands = 0 : i64, tpu.core_type = #tpu.core_type<tc>, window_params = [{transform_indices = @transform_0, window_bounds = array<i64: 16, 32>}, {pipeline_mode = #tpu.pipeline_mode<synchronous>, transform_indices = @transform_1, window_bounds = array<i64: 32, 64>}, {pipeline_mode = #tpu.pipeline_mode<synchronous>, transform_indices = @transform_2, window_bounds = array<i64: 1, 64>}, {pipeline_mode = #tpu.pipeline_mode<synchronous>, transform_indices = @transform_3, window_bounds = array<i64: 64, 128>}, {pipeline_mode = #tpu.pipeline_mode<synchronous>, transform_indices = @transform_4, window_bounds = array<i64: 1, 128>}, {pipeline_mode = #tpu.pipeline_mode<synchronous>, transform_indices = @transform_5, window_bounds = array<i64: 128, 256>}, {pipeline_mode = #tpu.pipeline_mode<synchronous>, transform_indices = @transform_6, window_bounds = array<i64: 1, 256>}, {pipeline_mode = #tpu.pipeline_mode<synchronous>, transform_indices = @transform_7, window_bounds = array<i64: 256, 512>}, {pipeline_mode = #tpu.pipeline_mode<synchronous>, transform_indices = @transform_8, window_bounds = array<i64: 1, 512>}, {pipeline_mode = #tpu.pipeline_mode<synchronous>, transform_indices = @transform_9, window_bounds = array<i64: 512, 1024>}, {pipeline_mode = #tpu.pipeline_mode<synchronous>, transform_indices = @transform_10, window_bounds = array<i64: 1, 1024>}, {pipeline_mode = #tpu.pipeline_mode<synchronous>, transform_indices = @transform_11, window_bounds = array<i64: 1024, 128>}, {pipeline_mode = #tpu.pipeline_mode<synchronous>, transform_indices = @transform_12, window_bounds = array<i64: 1, 128>}, {transform_indices = @transform_13, window_bounds = array<i64: 16, 128>}]} {
    %c0 = arith.constant 0 : index
    %c0_0 = arith.constant 0 : index
    %0 = vector.load %arg1[%c0, %c0_0] : memref<16x32xbf16, #tpu.memory_space<vmem>>, vector<16x32xbf16>
    %c0_1 = arith.constant 0 : index
    %c0_2 = arith.constant 0 : index
    %1 = vector.load %arg2[%c0_1, %c0_2] : memref<32x64xbf16, #tpu.memory_space<vmem>>, vector<32x64xbf16>
    %cst = arith.constant dense<0.000000e+00> : vector<16x64xf32>
    %2 = tpu.matmul %0, %1, %cst {dimension_numbers = #tpu.dot_dimension_numbers<[1], [0], [0], [1], [0, 0, 1, 1], [], []>} : vector<16x32xbf16>, vector<32x64xbf16>, vector<16x64xf32> -> vector<16x64xf32>
    %c0_3 = arith.constant 0 : index
    %c0_4 = arith.constant 0 : index
    %3 = vector.load %arg3[%c0_3, %c0_4] : memref<1x64xf32, #tpu.memory_space<vmem>>, vector<1x64xf32>
    %4 = vector.broadcast %3 : vector<1x64xf32> to vector<16x64xf32>
    %5 = arith.addf %2, %4 : vector<16x64xf32>
    %cst_5 = arith.constant 0.000000e+00 : f32
    %6 = vector.broadcast %cst_5 : f32 to vector<16x64xf32>
    %7 = arith.maximumf %5, %6 : vector<16x64xf32>
    %8 = arith.truncf %7 : vector<16x64xf32> to vector<16x64xbf16>
    %c0_6 = arith.constant 0 : index
    %c0_7 = arith.constant 0 : index
    %9 = vector.load %arg4[%c0_6, %c0_7] : memref<64x128xbf16, #tpu.memory_space<vmem>>, vector<64x128xbf16>
    %cst_8 = arith.constant dense<0.000000e+00> : vector<16x128xf32>
    %10 = tpu.matmul %8, %9, %cst_8 {dimension_numbers = #tpu.dot_dimension_numbers<[1], [0], [0], [1], [0, 0, 1, 1], [], []>} : vector<16x64xbf16>, vector<64x128xbf16>, vector<16x128xf32> -> vector<16x128xf32>
    %c0_9 = arith.constant 0 : index
    %c0_10 = arith.constant 0 : index
    %11 = vector.load %arg5[%c0_9, %c0_10] : memref<1x128xf32, #tpu.memory_space<vmem>>, vector<1x128xf32>
    %12 = vector.broadcast %11 : vector<1x128xf32> to vector<16x128xf32>
    %13 = arith.addf %10, %12 : vector<16x128xf32>
    %cst_11 = arith.constant 0.000000e+00 : f32
    %14 = vector.broadcast %cst_11 : f32 to vector<16x128xf32>
    %15 = arith.maximumf %13, %14 : vector<16x128xf32>
    %16 = arith.truncf %15 : vector<16x128xf32> to vector<16x128xbf16>
    %c0_12 = arith.constant 0 : index
    %c0_13 = arith.constant 0 : index
    %17 = vector.load %arg6[%c0_12, %c0_13] : memref<128x256xbf16, #tpu.memory_space<vmem>>, vector<128x256xbf16>
    %cst_14 = arith.constant dense<0.000000e+00> : vector<16x256xf32>
    %18 = tpu.matmul %16, %17, %cst_14 {dimension_numbers = #tpu.dot_dimension_numbers<[1], [0], [0], [1], [0, 0, 1, 1], [], []>} : vector<16x128xbf16>, vector<128x256xbf16>, vector<16x256xf32> -> vector<16x256xf32>
    %c0_15 = arith.constant 0 : index
    %c0_16 = arith.constant 0 : index
    %19 = vector.load %arg7[%c0_15, %c0_16] : memref<1x256xf32, #tpu.memory_space<vmem>>, vector<1x256xf32>
    %20 = vector.broadcast %19 : vector<1x256xf32> to vector<16x256xf32>
    %21 = arith.addf %18, %20 : vector<16x256xf32>
    %cst_17 = arith.constant 0.000000e+00 : f32
    %22 = vector.broadcast %cst_17 : f32 to vector<16x256xf32>
    %23 = arith.maximumf %21, %22 : vector<16x256xf32>
    %24 = arith.truncf %23 : vector<16x256xf32> to vector<16x256xbf16>
    %c0_18 = arith.constant 0 : index
    %c0_19 = arith.constant 0 : index
    %25 = vector.load %arg8[%c0_18, %c0_19] : memref<256x512xbf16, #tpu.memory_space<vmem>>, vector<256x512xbf16>
    %cst_20 = arith.constant dense<0.000000e+00> : vector<16x512xf32>
    %26 = tpu.matmul %24, %25, %cst_20 {dimension_numbers = #tpu.dot_dimension_numbers<[1], [0], [0], [1], [0, 0, 1, 1], [], []>} : vector<16x256xbf16>, vector<256x512xbf16>, vector<16x512xf32> -> vector<16x512xf32>
    %c0_21 = arith.constant 0 : index
    %c0_22 = arith.constant 0 : index
    %27 = vector.load %arg9[%c0_21, %c0_22] : memref<1x512xf32, #tpu.memory_space<vmem>>, vector<1x512xf32>
    %28 = vector.broadcast %27 : vector<1x512xf32> to vector<16x512xf32>
    %29 = arith.addf %26, %28 : vector<16x512xf32>
    %cst_23 = arith.constant 0.000000e+00 : f32
    %30 = vector.broadcast %cst_23 : f32 to vector<16x512xf32>
    %31 = arith.maximumf %29, %30 : vector<16x512xf32>
    %32 = arith.truncf %31 : vector<16x512xf32> to vector<16x512xbf16>
    %c0_24 = arith.constant 0 : index
    %c0_25 = arith.constant 0 : index
    %33 = vector.load %arg10[%c0_24, %c0_25] : memref<512x1024xbf16, #tpu.memory_space<vmem>>, vector<512x1024xbf16>
    %cst_26 = arith.constant dense<0.000000e+00> : vector<16x1024xf32>
    %34 = tpu.matmul %32, %33, %cst_26 {dimension_numbers = #tpu.dot_dimension_numbers<[1], [0], [0], [1], [0, 0, 1, 1], [], []>} : vector<16x512xbf16>, vector<512x1024xbf16>, vector<16x1024xf32> -> vector<16x1024xf32>
    %c0_27 = arith.constant 0 : index
    %c0_28 = arith.constant 0 : index
    %35 = vector.load %arg11[%c0_27, %c0_28] : memref<1x1024xf32, #tpu.memory_space<vmem>>, vector<1x1024xf32>
    %36 = vector.broadcast %35 : vector<1x1024xf32> to vector<16x1024xf32>
    %37 = arith.addf %34, %36 : vector<16x1024xf32>
    %cst_29 = arith.constant 0.000000e+00 : f32
    %38 = vector.broadcast %cst_29 : f32 to vector<16x1024xf32>
    %39 = arith.maximumf %37, %38 : vector<16x1024xf32>
    %40 = arith.truncf %39 : vector<16x1024xf32> to vector<16x1024xbf16>
    %c0_30 = arith.constant 0 : index
    %c0_31 = arith.constant 0 : index
    %41 = vector.load %arg12[%c0_30, %c0_31] : memref<1024x128xbf16, #tpu.memory_space<vmem>>, vector<1024x128xbf16>
    %cst_32 = arith.constant dense<0.000000e+00> : vector<16x128xf32>
    %42 = tpu.matmul %40, %41, %cst_32 {dimension_numbers = #tpu.dot_dimension_numbers<[1], [0], [0], [1], [0, 0, 1, 1], [], []>} : vector<16x1024xbf16>, vector<1024x128xbf16>, vector<16x128xf32> -> vector<16x128xf32>
    %c0_33 = arith.constant 0 : index
    %c0_34 = arith.constant 0 : index
    %43 = vector.load %arg13[%c0_33, %c0_34] : memref<1x128xf32, #tpu.memory_space<vmem>>, vector<1x128xf32>
    %44 = vector.broadcast %43 : vector<1x128xf32> to vector<16x128xf32>
    %45 = arith.addf %42, %44 : vector<16x128xf32>
    %c0_35 = arith.constant 0 : index
    %c0_36 = arith.constant 0 : index
    %46 = vector.load %arg14[%c0_35, %c0_36] : memref<16x128xf32, #tpu.memory_space<vmem>>, vector<16x128xf32>
    tpu.vector_store %arg14[%c0_35, %c0_36], %45 {strides = array<i32>} : memref<16x128xf32, #tpu.memory_space<vmem>>, vector<16x128xf32>,
    return
  }
  func.func @transform_0(%arg0: i32) -> (i32, i32) {
    %c0_i32 = arith.constant 0 : i32
    %c0_i32_0 = arith.constant 0 : i32
    return %arg0, %c0_i32 : i32, i32
  }
  func.func @transform_1(%arg0: i32) -> (i32, i32) {
    %c0_i32 = arith.constant 0 : i32
    %c0_i32_0 = arith.constant 0 : i32
    %c0_i32_1 = arith.constant 0 : i32
    return %c0_i32, %c0_i32_0 : i32, i32
  }
  func.func @transform_2(%arg0: i32) -> (i32, i32) {
    %c0_i32 = arith.constant 0 : i32
    %c0_i32_0 = arith.constant 0 : i32
    %c0_i32_1 = arith.constant 0 : i32
    return %c0_i32, %c0_i32_0 : i32, i32
  }
  func.func @transform_3(%arg0: i32) -> (i32, i32) {
    %c0_i32 = arith.constant 0 : i32
    %c0_i32_0 = arith.constant 0 : i32
    %c0_i32_1 = arith.constant 0 : i32
    return %c0_i32, %c0_i32_0 : i32, i32
  }
  func.func @transform_4(%arg0: i32) -> (i32, i32) {
    %c0_i32 = arith.constant 0 : i32
    %c0_i32_0 = arith.constant 0 : i32
    %c0_i32_1 = arith.constant 0 : i32
    return %c0_i32, %c0_i32_0 : i32, i32
  }
  func.func @transform_5(%arg0: i32) -> (i32, i32) {
    %c0_i32 = arith.constant 0 : i32
    %c0_i32_0 = arith.constant 0 : i32
    %c0_i32_1 = arith.constant 0 : i32
    return %c0_i32, %c0_i32_0 : i32, i32
  }
  func.func @transform_6(%arg0: i32) -> (i32, i32) {
    %c0_i32 = arith.constant 0 : i32
    %c0_i32_0 = arith.constant 0 : i32
    %c0_i32_1 = arith.constant 0 : i32
    return %c0_i32, %c0_i32_0 : i32, i32
  }
  func.func @transform_7(%arg0: i32) -> (i32, i32) {
    %c0_i32 = arith.constant 0 : i32
    %c0_i32_0 = arith.constant 0 : i32
    %c0_i32_1 = arith.constant 0 : i32
    return %c0_i32, %c0_i32_0 : i32, i32
  }
  func.func @transform_8(%arg0: i32) -> (i32, i32) {
    %c0_i32 = arith.constant 0 : i32
    %c0_i32_0 = arith.constant 0 : i32
    %c0_i32_1 = arith.constant 0 : i32
    return %c0_i32, %c0_i32_0 : i32, i32
  }
  func.func @transform_9(%arg0: i32) -> (i32, i32) {
    %c0_i32 = arith.constant 0 : i32
    %c0_i32_0 = arith.constant 0 : i32
    %c0_i32_1 = arith.constant 0 : i32
    return %c0_i32, %c0_i32_0 : i32, i32
  }
  func.func @transform_10(%arg0: i32) -> (i32, i32) {
    %c0_i32 = arith.constant 0 : i32
    %c0_i32_0 = arith.constant 0 : i32
    %c0_i32_1 = arith.constant 0 : i32
    return %c0_i32, %c0_i32_0 : i32, i32
  }
  func.func @transform_11(%arg0: i32) -> (i32, i32) {
    %c0_i32 = arith.constant 0 : i32
    %c0_i32_0 = arith.constant 0 : i32
    %c0_i32_1 = arith.constant 0 : i32
    return %c0_i32, %c0_i32_0 : i32, i32
  }
  func.func @transform_12(%arg0: i32) -> (i32, i32) {
    %c0_i32 = arith.constant 0 : i32
    %c0_i32_0 = arith.constant 0 : i32
    %c0_i32_1 = arith.constant 0 : i32
    return %c0_i32, %c0_i32_0 : i32, i32
  }
  func.func @transform_13(%arg0: i32) -> (i32, i32) {
    %c0_i32 = arith.constant 0 : i32
    %c0_i32_0 = arith.constant 0 : i32
    return %arg0, %c0_i32 : i32, i32
  }
}

</mosaic_0001>

<llo_original>
// kernel: tpu_custom_call.1
$region0: #{tpu_custom_call.1}
  #allocation0 [shape = 'u32[]', space=smem, size = 0x4, offset = 0x4, fixed_abs, tag = 'smem constant byte address 0x4 - core index']
  #allocation1 [shape = 'u32[144,128]{1,0:T(1,128)}', space=vmem, size = 0x12000, scoped, tag = 'internal scratch']
  %s0 = inlined_call_operand.hbm [shape: bf16[16,32], index: 0, kind: input, shape index: {}]
  %s1 = inlined_call_operand.hbm [shape: bf16[32,64], index: 1, kind: input, shape index: {}]
  %s2 = inlined_call_operand.vmem [shape: f32[1,64], index: 2, kind: input, shape index: {}]
  %s3 = inlined_call_operand.hbm [shape: bf16[64,128], index: 3, kind: input, shape index: {}]
  %s4 = inlined_call_operand.hbm [shape: f32[1,128], index: 4, kind: input, shape index: {}]
  %s5 = inlined_call_operand.hbm [shape: bf16[128,256], index: 5, kind: input, shape index: {}]
  %s6 = inlined_call_operand.vmem [shape: f32[1,256], index: 6, kind: input, shape index: {}]
  %s7 = inlined_call_operand.hbm [shape: bf16[256,512], index: 7, kind: input, shape index: {}]
  %s8 = inlined_call_operand.vmem [shape: f32[1,512], index: 8, kind: input, shape index: {}]
  %s9 = inlined_call_operand.hbm [shape: bf16[512,1024], index: 9, kind: input, shape index: {}]
  %s10 = inlined_call_operand.vmem [shape: f32[1,1024], index: 10, kind: input, shape index: {}]
  %s11 = inlined_call_operand.hbm [shape: bf16[1024,128], index: 11, kind: input, shape index: {}]
  %s12 = inlined_call_operand.vmem [shape: f32[1,128], index: 12, kind: input, shape index: {}]
  %s13 = inlined_call_operand.hbm [shape: f32[16,128], index: 13, kind: output, shape index: {}]
  %s14 = sld [smem:[#allocation0]]
  $region94: #{tpu_custom_call.1} parent=0
    _
  %s16 = ssub.s32 1, %s14
  %s17 = scalar_select 0, %s16, %s14
  $region1: #{tpu_custom_call.1} parent=0
    #allocation2 [shape = 'u8[4096]{0}', space=vmem, size = 0x1000, scoped, tag = 'input window, operand 0, single buffered']
    #allocation3 [shape = 's32[1]{0}', space=sflag, size = 0x4, scoped, tag = 'scoped memory for tpu_custom_call.1']
    #allocation4 [shape = 's32[1]{0}', space=sflag, size = 0x4, scoped, tag = 'scoped memory for tpu_custom_call.1']
    #allocation5 [shape = 'u8[8192]{0}', space=vmem, size = 0x2000, scoped, tag = 'input window, operand 1, single buffered']
    #allocation6 [shape = 's32[1]{0}', space=sflag, size = 0x4, scoped, tag = 'scoped memory for tpu_custom_call.1']
    #allocation7 [shape = 'u8[16384]{0}', space=vmem, size = 0x4000, scoped, tag = 'input window, operand 3, single buffered']
    #allocation8 [shape = 'u8[512]{0}', space=vmem, size = 0x400, scoped, tag = 'input window, operand 4, single buffered']
    #allocation9 [shape = 's32[1]{0}', space=sflag, size = 0x4, scoped, tag = 'scoped memory for tpu_custom_call.1']
    #allocation10 [shape = 'u8[65536]{0}', space=vmem, size = 0x10000, scoped, tag = 'input window, operand 5, single buffered']
    #allocation11 [shape = 'u8[262144]{0}', space=vmem, size = 0x40000, scoped, tag = 'input window, operand 7, single buffered']
    #allocation12 [shape = 's32[1]{0}', space=sflag, size = 0x4, scoped, tag = 'scoped memory for tpu_custom_call.1']
    #allocation13 [shape = 'u8[1048576]{0}', space=vmem, size = 0x100000, scoped, tag = 'input window, operand 9, single buffered']
    #allocation14 [shape = 'u8[262144]{0}', space=vmem, size = 0x40000, scoped, tag = 'input window, operand 11, single buffered']
    #allocation15 [shape = 's32[1]{0}', space=sflag, size = 0x4, scoped, tag = 'scoped memory for tpu_custom_call.1']
    #allocation16 [shape = 'u8[8192]{0}', space=vmem, size = 0x2000, scoped, tag = 'output window, operand 0, single buffered']
    %18 = vsyncpa [#allocation3], 0
    %19 = vsyncpa [#allocation6], 0
    %20 = vsyncpa [#allocation9], 0
    %21 = vsyncpa [#allocation12], 0
    %22 = vsyncpa [#allocation15], 0
    %23 = vsyncpa [#allocation4], 0
    // Predicated region
    $region2: #{tpu_custom_call.1} parent=1 // pred_check
      _
    $region3: #{tpu_custom_call.1} parent=1 // pred_check_branch
      %25 = sbr.rel (0) target = $region5
    $region4: #{tpu_custom_call.1} parent=1 // pred_region
      %s27 = ssub.s32 128, 128
      %28 = vsyncadd [#allocation3], %s27
      %s29 = sshll.u32 [#allocation2], 4
      %s30 = int_to_ptr.vmem [resolvable:$true] %s29
      %35 = dma.hbm_to_vmem [thread:$0]  %s0, 128, %s30, [#allocation3], 64, 64, 4
    $region5: #{tpu_custom_call.1} parent=1 // pred_fallthru
      _
    // Predicated region
    $region6: #{tpu_custom_call.1} parent=1 // pred_check
      _
    $region7: #{tpu_custom_call.1} parent=1 // pred_check_branch
      %37 = sbr.rel (0) target = $region9
    $region8: #{tpu_custom_call.1} parent=1 // pred_region
      %s39 = ssub.s32 256, 256
      %40 = vsyncadd [#allocation6], %s39
      %s41 = sshll.u32 [#allocation5], 4
      %s42 = int_to_ptr.vmem [resolvable:$true] %s41
      %47 = dma.hbm_to_vmem [thread:$0]  %s1, 256, %s42, [#allocation6], 64, 64, 4
    $region9: #{tpu_custom_call.1} parent=1 // pred_fallthru
      _
    // Predicated region
    $region10: #{tpu_custom_call.1} parent=1 // pred_check
      _
    $region11: #{tpu_custom_call.1} parent=1 // pred_check_branch
      %49 = sbr.rel (0) target = $region13
    $region12: #{tpu_custom_call.1} parent=1 // pred_region
      _
    $region13: #{tpu_custom_call.1} parent=1 // pred_fallthru
      _
    // Predicated region
    $region14: #{tpu_custom_call.1} parent=1 // pred_check
      _
    $region15: #{tpu_custom_call.1} parent=1 // pred_check_branch
      %51 = sbr.rel (0) target = $region17
    $region16: #{tpu_custom_call.1} parent=1 // pred_region
      %s53 = ssub.s32 512, 512
      %54 = vsyncadd [#allocation6], %s53
      %s55 = sshll.u32 [#allocation7], 4
      %s56 = int_to_ptr.vmem [resolvable:$true] %s55
      %61 = dma.hbm_to_vmem [thread:$0]  %s3, 512, %s56, [#allocation6], 64, 64, 4
    $region17: #{tpu_custom_call.1} parent=1 // pred_fallthru
      _
    // Predicated region
    $region18: #{tpu_custom_call.1} parent=1 // pred_check
      _
    $region19: #{tpu_custom_call.1} parent=1 // pred_check_branch
      %63 = sbr.rel (0) target = $region21
    $region20: #{tpu_custom_call.1} parent=1 // pred_region
      %s65 = ssub.s32 16, 16
      %66 = vsyncadd [#allocation9], %s65
      %s68 = sshll.u32 [#allocation8], 4
      %s69 = int_to_ptr.vmem [resolvable:$true] %s68
      %71 = dma.hbm_to_vmem [thread:$0]  %s4, 16, %s69, [#allocation9]
    $region21: #{tpu_custom_call.1} parent=1 // pred_fallthru
      _
    // Predicated region
    $region22: #{tpu_custom_call.1} parent=1 // pred_check
      _
    $region23: #{tpu_custom_call.1} parent=1 // pred_check_branch
      %73 = sbr.rel (0) target = $region25
    $region24: #{tpu_custom_call.1} parent=1 // pred_region
      %s75 = ssub.s32 2048, 2048
      %76 = vsyncadd [#allocation9], %s75
      %s77 = sshll.u32 [#allocation10], 4
      %s78 = int_to_ptr.vmem [resolvable:$true] %s77
      %83 = dma.hbm_to_vmem [thread:$0]  %s5, 2048, %s78, [#allocation9], 128, 128, 8
    $region25: #{tpu_custom_call.1} parent=1 // pred_fallthru
      _
    // Predicated region
    $region26: #{tpu_custom_call.1} parent=1 // pred_check
      _
    $region27: #{tpu_custom_call.1} parent=1 // pred_check_branch
      %85 = sbr.rel (0) target = $region29
    $region28: #{tpu_custom_call.1} parent=1 // pred_region
      _
    $region29: #{tpu_custom_call.1} parent=1 // pred_fallthru
      _
    // Predicated region
    $region30: #{tpu_custom_call.1} parent=1 // pred_check
      _
    $region31: #{tpu_custom_call.1} parent=1 // pred_check_branch
      %87 = sbr.rel (0) target = $region33
    $region32: #{tpu_custom_call.1} parent=1 // pred_region
      %s89 = ssub.s32 8192, 8192
      %90 = vsyncadd [#allocation12], %s89
      %s91 = sshll.u32 [#allocation11], 4
      %s92 = int_to_ptr.vmem [resolvable:$true] %s91
      %97 = dma.hbm_to_vmem [thread:$0]  %s7, 8192, %s92, [#allocation12], 256, 256, 16
    $region33: #{tpu_custom_call.1} parent=1 // pred_fallthru
      _
    // Predicated region
    $region34: #{tpu_custom_call.1} parent=1 // pred_check
      _
    $region35: #{tpu_custom_call.1} parent=1 // pred_check_branch
      %99 = sbr.rel (0) target = $region37
    $region36: #{tpu_custom_call.1} parent=1 // pred_region
      _
    $region37: #{tpu_custom_call.1} parent=1 // pred_fallthru
      _
    // Predicated region
    $region38: #{tpu_custom_call.1} parent=1 // pred_check
      _
    $region39: #{tpu_custom_call.1} parent=1 // pred_check_branch
      %101 = sbr.rel (0) target = $region41
    $region40: #{tpu_custom_call.1} parent=1 // pred_region
      %s103 = ssub.s32 32768, 32768
      %104 = vsyncadd [#allocation12], %s103
      %s105 = sshll.u32 [#allocation13], 4
      %s106 = int_to_ptr.vmem [resolvable:$true] %s105
      %111 = dma.hbm_to_vmem [thread:$0]  %s9, 32768, %s106, [#allocation12], 512, 512, 32
    $region41: #{tpu_custom_call.1} parent=1 // pred_fallthru
      _
    // Predicated region
    $region42: #{tpu_custom_call.1} parent=1 // pred_check
      _
    $region43: #{tpu_custom_call.1} parent=1 // pred_check_branch
      %113 = sbr.rel (0) target = $region45
    $region44: #{tpu_custom_call.1} parent=1 // pred_region
      _
    $region45: #{tpu_custom_call.1} parent=1 // pred_fallthru
      _
    // Predicated region
    $region46: #{tpu_custom_call.1} parent=1 // pred_check
      _
    $region47: #{tpu_custom_call.1} parent=1 // pred_check_branch
      %115 = sbr.rel (0) target = $region49
    $region48: #{tpu_custom_call.1} parent=1 // pred_region
      %s117 = ssub.s32 8192, 8192
      %118 = vsyncadd [#allocation15], %s117
      %s119 = sshll.u32 [#allocation14], 4
      %s120 = int_to_ptr.vmem [resolvable:$true] %s119
      %125 = dma.hbm_to_vmem [thread:$0]  %s11, 8192, %s120, [#allocation15], 64, 64, 4
    $region49: #{tpu_custom_call.1} parent=1 // pred_fallthru
      _
    // Predicated region
    $region50: #{tpu_custom_call.1} parent=1 // pred_check
      _
    $region51: #{tpu_custom_call.1} parent=1 // pred_check_branch
      %127 = sbr.rel (0) target = $region53
    $region52: #{tpu_custom_call.1} parent=1 // pred_region
      _
    $region53: #{tpu_custom_call.1} parent=1 // pred_fallthru
      _
    // Predicated region
    $region54: #{tpu_custom_call.1} parent=1 // pred_check
      _
    $region55: #{tpu_custom_call.1} parent=1 // pred_check_branch
      %129 = sbr.rel (0) target = $region57
    $region56: #{tpu_custom_call.1} parent=1 // pred_region
      %130 = dma.done [#allocation3], 128
    $region57: #{tpu_custom_call.1} parent=1 // pred_fallthru
      _
    // Predicated region
    $region58: #{tpu_custom_call.1} parent=1 // pred_check
      _
    $region59: #{tpu_custom_call.1} parent=1 // pred_check_branch
      %132 = sbr.rel (0) target = $region61
    $region60: #{tpu_custom_call.1} parent=1 // pred_region
      %133 = dma.done [#allocation6], 256
    $region61: #{tpu_custom_call.1} parent=1 // pred_fallthru
      _
    // Predicated region
    $region62: #{tpu_custom_call.1} parent=1 // pred_check
      _
    $region63: #{tpu_custom_call.1} parent=1 // pred_check_branch
      %135 = sbr.rel (0) target = $region65
    $region64: #{tpu_custom_call.1} parent=1 // pred_region
      %136 = dma.done [#allocation6], 512
    $region65: #{tpu_custom_call.1} parent=1 // pred_fallthru
      _
    // Predicated region
    $region66: #{tpu_custom_call.1} parent=1 // pred_check
      _
    $region67: #{tpu_custom_call.1} parent=1 // pred_check_branch
      %138 = sbr.rel (0) target = $region69
    $region68: #{tpu_custom_call.1} parent=1 // pred_region
      %139 = dma.done [#allocation9], 16
    $region69: #{tpu_custom_call.1} parent=1 // pred_fallthru
      _
    // Predicated region
    $region70: #{tpu_custom_call.1} parent=1 // pred_check
      _
    $region71: #{tpu_custom_call.1} parent=1 // pred_check_branch
      %141 = sbr.rel (0) target = $region73
    $region72: #{tpu_custom_call.1} parent=1 // pred_region
      %142 = dma.done [#allocation9], 2048
    $region73: #{tpu_custom_call.1} parent=1 // pred_fallthru
      _
    // Predicated region
    $region74: #{tpu_custom_call.1} parent=1 // pred_check
      _
    $region75: #{tpu_custom_call.1} parent=1 // pred_check_branch
      %144 = sbr.rel (0) target = $region77
    $region76: #{tpu_custom_call.1} parent=1 // pred_region
      %145 = dma.done [#allocation12], 8192
    $region77: #{tpu_custom_call.1} parent=1 // pred_fallthru
      _
    // Predicated region
    $region78: #{tpu_custom_call.1} parent=1 // pred_check
      _
    $region79: #{tpu_custom_call.1} parent=1 // pred_check_branch
      %147 = sbr.rel (0) target = $region81
    $region80: #{tpu_custom_call.1} parent=1 // pred_region
      %148 = dma.done [#allocation12], 32768
    $region81: #{tpu_custom_call.1} parent=1 // pred_fallthru
      _
    // Predicated region
    $region82: #{tpu_custom_call.1} parent=1 // pred_check
      _
    $region83: #{tpu_custom_call.1} parent=1 // pred_check_branch
      %150 = sbr.rel (0) target = $region85
    $region84: #{tpu_custom_call.1} parent=1 // pred_region
      %151 = dma.done [#allocation15], 8192
    $region85: #{tpu_custom_call.1} parent=1 // pred_fallthru
      _
    %v153 = vld [vmem:[#allocation2] sm:$0xf]
    %v154 = vld [vmem:[#allocation2 + $0x4] sm:$0xf]
    %v155 = vld [vmem:[#allocation5] sm:$0xf]
    %v156 = vld [vmem:[#allocation5 + $0x4] sm:$0xf]
    %v157 = vld [vmem:[#allocation5 + $0x8] sm:$0xf]
    %v158 = vld [vmem:[#allocation5 + $0xc] sm:$0xf]
    %v159 = vld [vmem:[%s2] sm:$0x1]
    %v161 = vlaneseq
    %v162 = vshrl.u32 %v161, 7
    %v163 = vsub.s32 0, %v162
    %v164 = vrot.slane %v159, %v163
    %v168 = vunpack.c.l.b16 %v153
    %v169 = vunpack.c.l.b16 %v154
    %v170 = vpack.c.b16 %v169, %v168
    %v175 = vunpack.c.l.b16 %v155
    %v176 = vunpack.c.l.b16 %v156
    %v177 = vunpack.c.l.b16 %v157
    %v178 = vunpack.c.l.b16 %v158
    %v179 = vpack.c.b16 %v176, %v175
    %v180 = vpack.c.b16 %v178, %v177
    %vm183 = vcmask 261120
    %v185 = vsel %vm183, %v170, 0
    %187 = vmatprep.subr.bf16.mxu0 0
    %188 = vmatpush1.bf16.msra.mxu0 %v179
    %189 = vmatprep.subr.bf16.mxu0 0
    %190 = vmatpush1.bf16.msra.mxu0 %v180
    %191 = vmatprep.subr.bf16.mxu0 0
    %192 = vmatpush1.bf16.msra.mxu0 0
    %193 = vmatprep.subr.bf16.mxu0 0
    %194 = vmatpush1.bf16.msra.mxu0 0
    %195 = vmatprep.subr.bf16.mxu0 0
    %196 = vmatpush1.bf16.msra.mxu0 0
    %197 = vmatprep.subr.bf16.mxu0 0
    %198 = vmatpush1.bf16.msra.mxu0 0
    %199 = vmatprep.subr.bf16.mxu0 0
    %200 = vmatpush1.bf16.msra.mxu0 0
    %201 = vmatprep.subr.bf16.mxu0 0
    %202 = vmatpush1.bf16.msra.mxu0 0
    %203 = vmatprep.subr.bf16.mxu0 0
    %204 = vmatpush1.bf16.msra.mxu0 0
    %205 = vmatprep.subr.bf16.mxu0 0
    %206 = vmatpush1.bf16.msra.mxu0 0
    %207 = vmatprep.subr.bf16.mxu0 0
    %208 = vmatpush1.bf16.msra.mxu0 0
    %209 = vmatprep.subr.bf16.mxu0 0
    %210 = vmatpush1.bf16.msra.mxu0 0
    %211 = vmatprep.subr.bf16.mxu0 0
    %212 = vmatpush1.bf16.msra.mxu0 0
    %213 = vmatprep.subr.bf16.mxu0 0
    %214 = vmatpush1.bf16.msra.mxu0 0
    %215 = vmatprep.subr.bf16.mxu0 0
    %216 = vmatpush1.bf16.msra.mxu0 0
    %217 = vmatprep.subr.bf16.mxu0 0
    %218 = vmatpush1.bf16.msra.mxu0 0
    %219 = vmatprep.mubr.bf16.mxu0 0
    %220 = vmatmul.mubr.bf16.gmra.mrb[0].mxu0 %v185
    %v221 = vpop.f32.mrb[0].mxu0
    %v222 = vadd.f32 %v164, %v221
    %v223 = vpop.f32.mrb[0].mxu0
    %v224 = vpop.f32.mrb[0].mxu0
    %v225 = vadd.f32 %v164, %v224
    %v226 = vpop.f32.mrb[0].mxu0
    %227 = vdwg.mxu0
    %v228 = vmax.f32 %v222, 0.0
    %v229 = vmax.f32 %v225, 0.0
    %v230 = vpack.c.bf16 %v229, %v228
    %v231 = vld [vmem:[#allocation7] sm:$0xf]
    %v232 = vld [vmem:[#allocation7 + $0x4] sm:$0xf]
    %v233 = vld [vmem:[#allocation7 + $0x8] sm:$0xf]
    %v234 = vld [vmem:[#allocation7 + $0xc] sm:$0xf]
    %v235 = vld [vmem:[#allocation7 + $0x10] sm:$0xf]
    %v236 = vld [vmem:[#allocation7 + $0x14] sm:$0xf]
    %v237 = vld [vmem:[#allocation7 + $0x18] sm:$0xf]
    %v238 = vld [vmem:[#allocation7 + $0x1c] sm:$0xf]
    %v239 = vld [vmem:[#allocation8] sm:$0x1]
    %v241 = vlaneseq
    %v242 = vshrl.u32 %v241, 7
    %v243 = vsub.s32 0, %v242
    %v244 = vrot.slane %v239, %v243
    %v254 = vunpack.c.l.b16 %v231
    %v255 = vunpack.c.l.b16 %v232
    %v256 = vunpack.c.l.b16 %v233
    %v257 = vunpack.c.l.b16 %v234
    %v258 = vunpack.c.l.b16 %v235
    %v259 = vunpack.c.l.b16 %v236
    %v260 = vunpack.c.l.b16 %v237
    %v261 = vunpack.c.l.b16 %v238
    %v262 = vpack.c.b16 %v255, %v254
    %v263 = vpack.c.b16 %v257, %v256
    %v264 = vpack.c.b16 %v259, %v258
    %v265 = vpack.c.b16 %v261, %v260
    %vm270 = vcmask 523264
    %v272 = vsel %vm270, %v230, 0
    %274 = vmatprep.subr.bf16.mxu0 0
    %275 = vmatpush1.bf16.msra.mxu0 %v262
    %276 = vmatprep.subr.bf16.mxu0 0
    %277 = vmatpush1.bf16.msra.mxu0 %v263
    %278 = vmatprep.subr.bf16.mxu0 0
    %279 = vmatpush1.bf16.msra.mxu0 %v264
    %280 = vmatprep.subr.bf16.mxu0 0
    %281 = vmatpush1.bf16.msra.mxu0 %v265
    %282 = vmatprep.subr.bf16.mxu0 0
    %283 = vmatpush1.bf16.msra.mxu0 0
    %284 = vmatprep.subr.bf16.mxu0 0
    %285 = vmatpush1.bf16.msra.mxu0 0
    %286 = vmatprep.subr.bf16.mxu0 0
    %287 = vmatpush1.bf16.msra.mxu0 0
    %288 = vmatprep.subr.bf16.mxu0 0
    %289 = vmatpush1.bf16.msra.mxu0 0
    %290 = vmatprep.subr.bf16.mxu0 0
    %291 = vmatpush1.bf16.msra.mxu0 0
    %292 = vmatprep.subr.bf16.mxu0 0
    %293 = vmatpush1.bf16.msra.mxu0 0
    %294 = vmatprep.subr.bf16.mxu0 0
    %295 = vmatpush1.bf16.msra.mxu0 0
    %296 = vmatprep.subr.bf16.mxu0 0
    %297 = vmatpush1.bf16.msra.mxu0 0
    %298 = vmatprep.subr.bf16.mxu0 0
    %299 = vmatpush1.bf16.msra.mxu0 0
    %300 = vmatprep.subr.bf16.mxu0 0
    %301 = vmatpush1.bf16.msra.mxu0 0
    %302 = vmatprep.subr.bf16.mxu0 0
    %303 = vmatpush1.bf16.msra.mxu0 0
    %304 = vmatprep.subr.bf16.mxu0 0
    %305 = vmatpush1.bf16.msra.mxu0 0
    %306 = vmatprep.mubr.bf16.mxu0 0
    %307 = vmatmul.mubr.bf16.gmra.mrb[0].mxu0 %v272
    %v308 = vpop.f32.mrb[0].mxu0
    %v309 = vadd.f32 %v244, %v308
    %v310 = vpop.f32.mrb[0].mxu0
    %v311 = vpop.f32.mrb[0].mxu0
    %v312 = vadd.f32 %v244, %v311
    %v313 = vpop.f32.mrb[0].mxu0
    %314 = vdwg.mxu0
    %v315 = vmax.f32 %v309, 0.0
    %v316 = vmax.f32 %v312, 0.0
    %v317 = vpack.c.bf16 %v316, %v315
    %v318 = vld [vmem:[#allocation10] sm:$0xff]
    %v319 = vld [vmem:[#allocation10 + $0x8] sm:$0xff]
    %v320 = vld [vmem:[#allocation10 + $0x10] sm:$0xff]
    %v321 = vld [vmem:[#allocation10 + $0x18] sm:$0xff]
    %v322 = vld [vmem:[#allocation10 + $0x20] sm:$0xff]
    %v323 = vld [vmem:[#allocation10 + $0x28] sm:$0xff]
    %v324 = vld [vmem:[#allocation10 + $0x30] sm:$0xff]
    %v325 = vld [vmem:[#allocation10 + $0x38] sm:$0xff]
    %v326 = vld [vmem:[#allocation10 + $0x40] sm:$0xff]
    %v327 = vld [vmem:[#allocation10 + $0x48] sm:$0xff]
    %v328 = vld [vmem:[#allocation10 + $0x50] sm:$0xff]
    %v329 = vld [vmem:[#allocation10 + $0x58] sm:$0xff]
    %v330 = vld [vmem:[#allocation10 + $0x60] sm:$0xff]
    %v331 = vld [vmem:[#allocation10 + $0x68] sm:$0xff]
    %v332 = vld [vmem:[#allocation10 + $0x70] sm:$0xff]
    %v333 = vld [vmem:[#allocation10 + $0x78] sm:$0xff]
    %v334 = vld [vmem:[%s6] sm:$0x3]
    %v336 = vlaneseq
    %v337 = vshrl.u32 %v336, 7
    %v338 = vsub.s32 0, %v337
    %v339 = vrot.slane %v334, %v338
    %v340 = vlaneseq
    %v341 = vshrl.u32 %v340, 7
    %v342 = vsub.s32 1, %v341
    %v343 = vrot.slane %v334, %v342
    %v362 = vunpack.c.l.b16 %v318
    %v363 = vunpack.c.h.b16 %v318
    %v364 = vunpack.c.l.b16 %v319
    %v365 = vunpack.c.h.b16 %v319
    %v366 = vunpack.c.l.b16 %v320
    %v367 = vunpack.c.h.b16 %v320
    %v368 = vunpack.c.l.b16 %v321
    %v369 = vunpack.c.h.b16 %v321
    %v370 = vunpack.c.l.b16 %v322
    %v371 = vunpack.c.h.b16 %v322
    %v372 = vunpack.c.l.b16 %v323
    %v373 = vunpack.c.h.b16 %v323
    %v374 = vunpack.c.l.b16 %v324
    %v375 = vunpack.c.h.b16 %v324
    %v376 = vunpack.c.l.b16 %v325
    %v377 = vunpack.c.h.b16 %v325
    %v378 = vunpack.c.l.b16 %v326
    %v379 = vunpack.c.h.b16 %v326
    %v380 = vunpack.c.l.b16 %v327
    %v381 = vunpack.c.h.b16 %v327
    %v382 = vunpack.c.l.b16 %v328
    %v383 = vunpack.c.h.b16 %v328
    %v384 = vunpack.c.l.b16 %v329
    %v385 = vunpack.c.h.b16 %v329
    %v386 = vunpack.c.l.b16 %v330
    %v387 = vunpack.c.h.b16 %v330
    %v388 = vunpack.c.l.b16 %v331
    %v389 = vunpack.c.h.b16 %v331
    %v390 = vunpack.c.l.b16 %v332
    %v391 = vunpack.c.h.b16 %v332
    %v392 = vunpack.c.l.b16 %v333
    %v393 = vunpack.c.h.b16 %v333
    %v394 = vpack.c.b16 %v364, %v362
    %v395 = vpack.c.b16 %v365, %v363
    %v396 = vpack.c.b16 %v368, %v366
    %v397 = vpack.c.b16 %v369, %v367
    %v398 = vpack.c.b16 %v372, %v370
    %v399 = vpack.c.b16 %v373, %v371
    %v400 = vpack.c.b16 %v376, %v374
    %v401 = vpack.c.b16 %v377, %v375
    %v402 = vpack.c.b16 %v380, %v378
    %v403 = vpack.c.b16 %v381, %v379
    %v404 = vpack.c.b16 %v384, %v382
    %v405 = vpack.c.b16 %v385, %v383
    %v406 = vpack.c.b16 %v388, %v386
    %v407 = vpack.c.b16 %v389, %v387
    %v408 = vpack.c.b16 %v392, %v390
    %v409 = vpack.c.b16 %v393, %v391
    %426 = vmatprep.subr.bf16.mxu0 %v395
    %427 = vmatpush1.bf16.msra.mxu0 %v394
    %428 = vmatprep.subr.bf16.mxu0 %v397
    %429 = vmatpush1.bf16.msra.mxu0 %v396
    %430 = vmatprep.subr.bf16.mxu0 %v399
    %431 = vmatpush1.bf16.msra.mxu0 %v398
    %432 = vmatprep.subr.bf16.mxu0 %v401
    %433 = vmatpush1.bf16.msra.mxu0 %v400
    %434 = vmatprep.subr.bf16.mxu0 %v403
    %435 = vmatpush1.bf16.msra.mxu0 %v402
    %436 = vmatprep.subr.bf16.mxu0 %v405
    %437 = vmatpush1.bf16.msra.mxu0 %v404
    %438 = vmatprep.subr.bf16.mxu0 %v407
    %439 = vmatpush1.bf16.msra.mxu0 %v406
    %440 = vmatprep.subr.bf16.mxu0 %v409
    %441 = vmatpush1.bf16.msra.mxu0 %v408
    %442 = vmatprep.subr.bf16.mxu0 0
    %443 = vmatpush1.bf16.msra.mxu0 0
    %444 = vmatprep.subr.bf16.mxu0 0
    %445 = vmatpush1.bf16.msra.mxu0 0
    %446 = vmatprep.subr.bf16.mxu0 0
    %447 = vmatpush1.bf16.msra.mxu0 0
    %448 = vmatprep.subr.bf16.mxu0 0
    %449 = vmatpush1.bf16.msra.mxu0 0
    %450 = vmatprep.subr.bf16.mxu0 0
    %451 = vmatpush1.bf16.msra.mxu0 0
    %452 = vmatprep.subr.bf16.mxu0 0
    %453 = vmatpush1.bf16.msra.mxu0 0
    %454 = vmatprep.subr.bf16.mxu0 0
    %455 = vmatpush1.bf16.msra.mxu0 0
    %456 = vmatprep.subr.bf16.mxu0 0
    %457 = vmatpush1.bf16.msra.mxu0 0
    %458 = vmatprep.mubr.bf16.mxu0 0
    %459 = vmatmul.mubr.bf16.gmra.mrb[0].mxu0 %v317
    %v460 = vpop.f32.mrb[0].mxu0
    %v461 = vadd.f32 %v339, %v460
    %v462 = vpop.f32.mrb[0].mxu0
    %v463 = vadd.f32 %v343, %v462
    %v464 = vpop.f32.mrb[0].mxu0
    %v465 = vadd.f32 %v339, %v464
    %v466 = vpop.f32.mrb[0].mxu0
    %v467 = vadd.f32 %v343, %v466
    %468 = vdwg.mxu0
    %v469 = vmax.f32 %v461, 0.0
    %v470 = vmax.f32 %v463, 0.0
    %v471 = vmax.f32 %v465, 0.0
    %v472 = vmax.f32 %v467, 0.0
    %v473 = vpack.c.bf16 %v471, %v469
    %v474 = vpack.c.bf16 %v472, %v470
    %v475 = vld [vmem:[#allocation11] sm:$0xff]
    %v476 = vld [vmem:[#allocation11 + $0x8] sm:$0xff]
    %v477 = vld [vmem:[#allocation11 + $0x10] sm:$0xff]
    %v478 = vld [vmem:[#allocation11 + $0x18] sm:$0xff]
    %v479 = vld [vmem:[#allocation11 + $0x20] sm:$0xff]
    %v480 = vld [vmem:[#allocation11 + $0x28] sm:$0xff]
    %v481 = vld [vmem:[#allocation11 + $0x30] sm:$0xff]
    %v482 = vld [vmem:[#allocation11 + $0x38] sm:$0xff]
    %v483 = vld [vmem:[#allocation11 + $0x40] sm:$0xff]
    %v484 = vld [vmem:[#allocation11 + $0x48] sm:$0xff]
    %v485 = vld [vmem:[#allocation11 + $0x50] sm:$0xff]
    %v486 = vld [vmem:[#allocation11 + $0x58] sm:$0xff]
    %v487 = vld [vmem:[#allocation11 + $0x60] sm:$0xff]
    %v488 = vld [vmem:[#allocation11 + $0x68] sm:$0xff]
    %v489 = vld [vmem:[#allocation11 + $0x70] sm:$0xff]
    %v490 = vld [vmem:[#allocation11 + $0x78] sm:$0xff]
    %v491 = vld [vmem:[#allocation11 + $0x80] sm:$0xff]
    %v492 = vld [vmem:[#allocation11 + $0x88] sm:$0xff]
    %v493 = vld [vmem:[#allocation11 + $0x90] sm:$0xff]
    %v494 = vld [vmem:[#allocation11 + $0x98] sm:$0xff]
    %v495 = vld [vmem:[#allocation11 + $0xa0] sm:$0xff]
    %v496 = vld [vmem:[#allocation11 + $0xa8] sm:$0xff]
    %v497 = vld [vmem:[#allocation11 + $0xb0] sm:$0xff]
    %v498 = vld [vmem:[#allocation11 + $0xb8] sm:$0xff]
    %v499 = vld [vmem:[#allocation11 + $0xc0] sm:$0xff]
    %v500 = vld [vmem:[#allocation11 + $0xc8] sm:$0xff]
    %v501 = vld [vmem:[#allocation11 + $0xd0] sm:$0xff]
    %v502 = vld [vmem:[#allocation11 + $0xd8] sm:$0xff]
    %v503 = vld [vmem:[#allocation11 + $0xe0] sm:$0xff]
    %v504 = vld [vmem:[#allocation11 + $0xe8] sm:$0xff]
    %v505 = vld [vmem:[#allocation11 + $0xf0] sm:$0xff]
    %v506 = vld [vmem:[#allocation11 + $0xf8] sm:$0xff]
    %v507 = vld [vmem:[#allocation11 + $0x100] sm:$0xff]
    %v508 = vld [vmem:[#allocation11 + $0x108] sm:$0xff]
    %v509 = vld [vmem:[#allocation11 + $0x110] sm:$0xff]
    %v510 = vld [vmem:[#allocation11 + $0x118] sm:$0xff]
    %v511 = vld [vmem:[#allocation11 + $0x120] sm:$0xff]
    %v512 = vld [vmem:[#allocation11 + $0x128] sm:$0xff]
    %v513 = vld [vmem:[#allocation11 + $0x130] sm:$0xff]
    %v514 = vld [vmem:[#allocation11 + $0x138] sm:$0xff]
    %v515 = vld [vmem:[#allocation11 + $0x140] sm:$0xff]
    %v516 = vld [vmem:[#allocation11 + $0x148] sm:$0xff]
    %v517 = vld [vmem:[#allocation11 + $0x150] sm:$0xff]
    %v518 = vld [vmem:[#allocation11 + $0x158] sm:$0xff]
    %v519 = vld [vmem:[#allocation11 + $0x160] sm:$0xff]
    %v520 = vld [vmem:[#allocation11 + $0x168] sm:$0xff]
    %v521 = vld [vmem:[#allocation11 + $0x170] sm:$0xff]
    %v522 = vld [vmem:[#allocation11 + $0x178] sm:$0xff]
    %v523 = vld [vmem:[#allocation11 + $0x180] sm:$0xff]
    %v524 = vld [vmem:[#allocation11 + $0x188] sm:$0xff]
    %v525 = vld [vmem:[#allocation11 + $0x190] sm:$0xff]
    %v526 = vld [vmem:[#allocation11 + $0x198] sm:$0xff]
    %v527 = vld [vmem:[#allocation11 + $0x1a0] sm:$0xff]
    %v528 = vld [vmem:[#allocation11 + $0x1a8] sm:$0xff]
    %v529 = vld [vmem:[#allocation11 + $0x1b0] sm:$0xff]
    %v530 = vld [vmem:[#allocation11 + $0x1b8] sm:$0xff]
    %v531 = vld [vmem:[#allocation11 + $0x1c0] sm:$0xff]
    %v532 = vld [vmem:[#allocation11 + $0x1c8] sm:$0xff]
    %v533 = vld [vmem:[#allocation11 + $0x1d0] sm:$0xff]
    %v534 = vld [vmem:[#allocation11 + $0x1d8] sm:$0xff]
    %v535 = vld [vmem:[#allocation11 + $0x1e0] sm:$0xff]
    %v536 = vld [vmem:[#allocation11 + $0x1e8] sm:$0xff]
    %v537 = vld [vmem:[#allocation11 + $0x1f0] sm:$0xff]
    %v538 = vld [vmem:[#allocation11 + $0x1f8] sm:$0xff]
    %v539 = vld [vmem:[%s8] sm:$0xf]
    %v541 = vlaneseq
    %v542 = vshrl.u32 %v541, 7
    %v543 = vsub.s32 0, %v542
    %v544 = vrot.slane %v539, %v543
    %v545 = vlaneseq
    %v546 = vshrl.u32 %v545, 7
    %v547 = vsub.s32 1, %v546
    %v548 = vrot.slane %v539, %v547
    %v549 = vlaneseq
    %v550 = vshrl.u32 %v549, 7
    %v551 = vsub.s32 2, %v550
    %v552 = vrot.slane %v539, %v551
    %v553 = vlaneseq
    %v554 = vshrl.u32 %v553, 7
    %v555 = vsub.s32 3, %v554
    %v556 = vrot.slane %v539, %v555
    %v625 = vunpack.c.l.b16 %v475
    %v626 = vunpack.c.h.b16 %v475
    %v627 = vunpack.c.l.b16 %v476
    %v628 = vunpack.c.h.b16 %v476
    %v629 = vunpack.c.l.b16 %v477
    %v630 = vunpack.c.h.b16 %v477
    %v631 = vunpack.c.l.b16 %v478
    %v632 = vunpack.c.h.b16 %v478
    %v633 = vunpack.c.l.b16 %v479
    %v634 = vunpack.c.h.b16 %v479
    %v635 = vunpack.c.l.b16 %v480
    %v636 = vunpack.c.h.b16 %v480
    %v637 = vunpack.c.l.b16 %v481
    %v638 = vunpack.c.h.b16 %v481
    %v639 = vunpack.c.l.b16 %v482
    %v640 = vunpack.c.h.b16 %v482
    %v641 = vunpack.c.l.b16 %v483
    %v642 = vunpack.c.h.b16 %v483
    %v643 = vunpack.c.l.b16 %v484
    %v644 = vunpack.c.h.b16 %v484
    %v645 = vunpack.c.l.b16 %v485
    %v646 = vunpack.c.h.b16 %v485
    %v647 = vunpack.c.l.b16 %v486
    %v648 = vunpack.c.h.b16 %v486
    %v649 = vunpack.c.l.b16 %v487
    %v650 = vunpack.c.h.b16 %v487
    %v651 = vunpack.c.l.b16 %v488
    %v652 = vunpack.c.h.b16 %v488
    %v653 = vunpack.c.l.b16 %v489
    %v654 = vunpack.c.h.b16 %v489
    %v655 = vunpack.c.l.b16 %v490
    %v656 = vunpack.c.h.b16 %v490
    %v657 = vunpack.c.l.b16 %v491
    %v658 = vunpack.c.h.b16 %v491
    %v659 = vunpack.c.l.b16 %v492
    %v660 = vunpack.c.h.b16 %v492
    %v661 = vunpack.c.l.b16 %v493
    %v662 = vunpack.c.h.b16 %v493
    %v663 = vunpack.c.l.b16 %v494
    %v664 = vunpack.c.h.b16 %v494
    %v665 = vunpack.c.l.b16 %v495
    %v666 = vunpack.c.h.b16 %v495
    %v667 = vunpack.c.l.b16 %v496
    %v668 = vunpack.c.h.b16 %v496
    %v669 = vunpack.c.l.b16 %v497
    %v670 = vunpack.c.h.b16 %v497
    %v671 = vunpack.c.l.b16 %v498
    %v672 = vunpack.c.h.b16 %v498
    %v673 = vunpack.c.l.b16 %v499
    %v674 = vunpack.c.h.b16 %v499
    %v675 = vunpack.c.l.b16 %v500
    %v676 = vunpack.c.h.b16 %v500
    %v677 = vunpack.c.l.b16 %v501
    %v678 = vunpack.c.h.b16 %v501
    %v679 = vunpack.c.l.b16 %v502
    %v680 = vunpack.c.h.b16 %v502
    %v681 = vunpack.c.l.b16 %v503
    %v682 = vunpack.c.h.b16 %v503
    %v683 = vunpack.c.l.b16 %v504
    %v684 = vunpack.c.h.b16 %v504
    %v685 = vunpack.c.l.b16 %v505
    %v686 = vunpack.c.h.b16 %v505
    %v687 = vunpack.c.l.b16 %v506
    %v688 = vunpack.c.h.b16 %v506
    %v689 = vunpack.c.l.b16 %v507
    %v690 = vunpack.c.h.b16 %v507
    %v691 = vunpack.c.l.b16 %v508
    %v692 = vunpack.c.h.b16 %v508
    %v693 = vunpack.c.l.b16 %v509
    %v694 = vunpack.c.h.b16 %v509
    %v695 = vunpack.c.l.b16 %v510
    %v696 = vunpack.c.h.b16 %v510
    %v697 = vunpack.c.l.b16 %v511
    %v698 = vunpack.c.h.b16 %v511
    %v699 = vunpack.c.l.b16 %v512
    %v700 = vunpack.c.h.b16 %v512
    %v701 = vunpack.c.l.b16 %v513
    %v702 = vunpack.c.h.b16 %v513
    %v703 = vunpack.c.l.b16 %v514
    %v704 = vunpack.c.h.b16 %v514
    %v705 = vunpack.c.l.b16 %v515
    %v706 = vunpack.c.h.b16 %v515
    %v707 = vunpack.c.l.b16 %v516
    %v708 = vunpack.c.h.b16 %v516
    %v709 = vunpack.c.l.b16 %v517
    %v710 = vunpack.c.h.b16 %v517
    %v711 = vunpack.c.l.b16 %v518
    %v712 = vunpack.c.h.b16 %v518
    %v713 = vunpack.c.l.b16 %v519
    %v714 = vunpack.c.h.b16 %v519
    %v715 = vunpack.c.l.b16 %v520
    %v716 = vunpack.c.h.b16 %v520
    %v717 = vunpack.c.l.b16 %v521
    %v718 = vunpack.c.h.b16 %v521
    %v719 = vunpack.c.l.b16 %v522
    %v720 = vunpack.c.h.b16 %v522
    %v721 = vunpack.c.l.b16 %v523
    %v722 = vunpack.c.h.b16 %v523
    %v723 = vunpack.c.l.b16 %v524
    %v724 = vunpack.c.h.b16 %v524
    %v725 = vunpack.c.l.b16 %v525
    %v726 = vunpack.c.h.b16 %v525
    %v727 = vunpack.c.l.b16 %v526
    %v728 = vunpack.c.h.b16 %v526
    %v729 = vunpack.c.l.b16 %v527
    %v730 = vunpack.c.h.b16 %v527
    %v731 = vunpack.c.l.b16 %v528
    %v732 = vunpack.c.h.b16 %v528
    %v733 = vunpack.c.l.b16 %v529
    %v734 = vunpack.c.h.b16 %v529
    %v735 = vunpack.c.l.b16 %v530
    %v736 = vunpack.c.h.b16 %v530
    %v737 = vunpack.c.l.b16 %v531
    %v738 = vunpack.c.h.b16 %v531
    %v739 = vunpack.c.l.b16 %v532
    %v740 = vunpack.c.h.b16 %v532
    %v741 = vunpack.c.l.b16 %v533
    %v742 = vunpack.c.h.b16 %v533
    %v743 = vunpack.c.l.b16 %v534
    %v744 = vunpack.c.h.b16 %v534
    %v745 = vunpack.c.l.b16 %v535
    %v746 = vunpack.c.h.b16 %v535
    %v747 = vunpack.c.l.b16 %v536
    %v748 = vunpack.c.h.b16 %v536
    %v749 = vunpack.c.l.b16 %v537
    %v750 = vunpack.c.h.b16 %v537
    %v751 = vunpack.c.l.b16 %v538
    %v752 = vunpack.c.h.b16 %v538
    %v753 = vpack.c.b16 %v629, %v625
    %v754 = vpack.c.b16 %v630, %v626
    %v755 = vpack.c.b16 %v631, %v627
    %v756 = vpack.c.b16 %v632, %v628
    %v757 = vpack.c.b16 %v637, %v633
    %v758 = vpack.c.b16 %v638, %v634
    %v759 = vpack.c.b16 %v639, %v635
    %v760 = vpack.c.b16 %v640, %v636
    %v761 = vpack.c.b16 %v645, %v641
    %v762 = vpack.c.b16 %v646, %v642
    %v763 = vpack.c.b16 %v647, %v643
    %v764 = vpack.c.b16 %v648, %v644
    %v765 = vpack.c.b16 %v653, %v649
    %v766 = vpack.c.b16 %v654, %v650
    %v767 = vpack.c.b16 %v655, %v651
    %v768 = vpack.c.b16 %v656, %v652
    %v769 = vpack.c.b16 %v661, %v657
    %v770 = vpack.c.b16 %v662, %v658
    %v771 = vpack.c.b16 %v663, %v659
    %v772 = vpack.c.b16 %v664, %v660
    %v773 = vpack.c.b16 %v669, %v665
    %v774 = vpack.c.b16 %v670, %v666
    %v775 = vpack.c.b16 %v671, %v667
    %v776 = vpack.c.b16 %v672, %v668
    %v777 = vpack.c.b16 %v677, %v673
    %v778 = vpack.c.b16 %v678, %v674
    %v779 = vpack.c.b16 %v679, %v675
    %v780 = vpack.c.b16 %v680, %v676
    %v781 = vpack.c.b16 %v685, %v681
    %v782 = vpack.c.b16 %v686, %v682
    %v783 = vpack.c.b16 %v687, %v683
    %v784 = vpack.c.b16 %v688, %v684
    %v785 = vpack.c.b16 %v693, %v689
    %v786 = vpack.c.b16 %v694, %v690
    %v787 = vpack.c.b16 %v695, %v691
    %v788 = vpack.c.b16 %v696, %v692
    %v789 = vpack.c.b16 %v701, %v697
    %v790 = vpack.c.b16 %v702, %v698
    %v791 = vpack.c.b16 %v703, %v699
    %v792 = vpack.c.b16 %v704, %v700
    %v793 = vpack.c.b16 %v709, %v705
    %v794 = vpack.c.b16 %v710, %v706
    %v795 = vpack.c.b16 %v711, %v707
    %v796 = vpack.c.b16 %v712, %v708
    %v797 = vpack.c.b16 %v717, %v713
    %v798 = vpack.c.b16 %v718, %v714
    %v799 = vpack.c.b16 %v719, %v715
    %v800 = vpack.c.b16 %v720, %v716
    %v801 = vpack.c.b16 %v725, %v721
    %v802 = vpack.c.b16 %v726, %v722
    %v803 = vpack.c.b16 %v727, %v723
    %v804 = vpack.c.b16 %v728, %v724
    %v805 = vpack.c.b16 %v733, %v729
    %v806 = vpack.c.b16 %v734, %v730
    %v807 = vpack.c.b16 %v735, %v731
    %v808 = vpack.c.b16 %v736, %v732
    %v809 = vpack.c.b16 %v741, %v737
    %v810 = vpack.c.b16 %v742, %v738
    %v811 = vpack.c.b16 %v743, %v739
    %v812 = vpack.c.b16 %v744, %v740
    %v813 = vpack.c.b16 %v749, %v745
    %v814 = vpack.c.b16 %v750, %v746
    %v815 = vpack.c.b16 %v751, %v747
    %v816 = vpack.c.b16 %v752, %v748
    %881 = vmatprep.subr.bf16.mxu0 %v754
    %882 = vmatpush1.bf16.msra.mxu0 %v753
    %883 = vmatprep.subr.bf16.mxu0 %v758
    %884 = vmatpush1.bf16.msra.mxu0 %v757
    %885 = vmatprep.subr.bf16.mxu0 %v762
    %886 = vmatpush1.bf16.msra.mxu0 %v761
    %887 = vmatprep.subr.bf16.mxu0 %v766
    %888 = vmatpush1.bf16.msra.mxu0 %v765
    %889 = vmatprep.subr.bf16.mxu0 %v770
    %890 = vmatpush1.bf16.msra.mxu0 %v769
    %891 = vmatprep.subr.bf16.mxu0 %v774
    %892 = vmatpush1.bf16.msra.mxu0 %v773
    %893 = vmatprep.subr.bf16.mxu0 %v778
    %894 = vmatpush1.bf16.msra.mxu0 %v777
    %895 = vmatprep.subr.bf16.mxu0 %v782
    %896 = vmatpush1.bf16.msra.mxu0 %v781
    %897 = vmatprep.subr.bf16.mxu0 %v786
    %898 = vmatpush1.bf16.msra.mxu0 %v785
    %899 = vmatprep.subr.bf16.mxu0 %v790
    %900 = vmatpush1.bf16.msra.mxu0 %v789
    %901 = vmatprep.subr.bf16.mxu0 %v794
    %902 = vmatpush1.bf16.msra.mxu0 %v793
    %903 = vmatprep.subr.bf16.mxu0 %v798
    %904 = vmatpush1.bf16.msra.mxu0 %v797
    %905 = vmatprep.subr.bf16.mxu0 %v802
    %906 = vmatpush1.bf16.msra.mxu0 %v801
    %907 = vmatprep.subr.bf16.mxu0 %v806
    %908 = vmatpush1.bf16.msra.mxu0 %v805
    %909 = vmatprep.subr.bf16.mxu0 %v810
    %910 = vmatpush1.bf16.msra.mxu0 %v809
    %911 = vmatprep.subr.bf16.mxu0 %v814
    %912 = vmatpush1.bf16.msra.mxu0 %v813
    %913 = vmatprep.mubr.bf16.mxu0 %v474
    %914 = vmatmul.mubr.bf16.gmra.mrb[0].mxu0 %v473
    %v915 = vpop.f32.mrb[0].mxu0
    %v916 = vadd.f32 %v544, %v915
    %v917 = vpop.f32.mrb[0].mxu0
    %v918 = vadd.f32 %v548, %v917
    %v919 = vpop.f32.mrb[0].mxu0
    %v920 = vadd.f32 %v544, %v919
    %v921 = vpop.f32.mrb[0].mxu0
    %v922 = vadd.f32 %v548, %v921
    %923 = vdwg.mxu0
    %924 = vmatprep.subr.bf16.mxu0 %v756
    %925 = vmatpush1.bf16.msra.mxu0 %v755
    %926 = vmatprep.subr.bf16.mxu0 %v760
    %927 = vmatpush1.bf16.msra.mxu0 %v759
    %928 = vmatprep.subr.bf16.mxu0 %v764
    %929 = vmatpush1.bf16.msra.mxu0 %v763
    %930 = vmatprep.subr.bf16.mxu0 %v768
    %931 = vmatpush1.bf16.msra.mxu0 %v767
    %932 = vmatprep.subr.bf16.mxu0 %v772
    %933 = vmatpush1.bf16.msra.mxu0 %v771
    %934 = vmatprep.subr.bf16.mxu0 %v776
    %935 = vmatpush1.bf16.msra.mxu0 %v775
    %936 = vmatprep.subr.bf16.mxu0 %v780
    %937 = vmatpush1.bf16.msra.mxu0 %v779
    %938 = vmatprep.subr.bf16.mxu0 %v784
    %939 = vmatpush1.bf16.msra.mxu0 %v783
    %940 = vmatprep.subr.bf16.mxu0 %v788
    %941 = vmatpush1.bf16.msra.mxu0 %v787
    %942 = vmatprep.subr.bf16.mxu0 %v792
    %943 = vmatpush1.bf16.msra.mxu0 %v791
    %944 = vmatprep.subr.bf16.mxu0 %v796
    %945 = vmatpush1.bf16.msra.mxu0 %v795
    %946 = vmatprep.subr.bf16.mxu0 %v800
    %947 = vmatpush1.bf16.msra.mxu0 %v799
    %948 = vmatprep.subr.bf16.mxu0 %v804
    %949 = vmatpush1.bf16.msra.mxu0 %v803
    %950 = vmatprep.subr.bf16.mxu0 %v808
    %951 = vmatpush1.bf16.msra.mxu0 %v807
    %952 = vmatprep.subr.bf16.mxu0 %v812
    %953 = vmatpush1.bf16.msra.mxu0 %v811
    %954 = vmatprep.subr.bf16.mxu0 %v816
    %955 = vmatpush1.bf16.msra.mxu0 %v815
    %956 = vmatprep.mubr.bf16.mxu0 %v474
    %957 = vmatmul.mubr.bf16.gmra.mrb[0].mxu0 %v473
    %v958 = vpop.f32.mrb[0].mxu0
    %v959 = vadd.f32 %v552, %v958
    %v960 = vpop.f32.mrb[0].mxu0
    %v961 = vadd.f32 %v556, %v960
    %v962 = vpop.f32.mrb[0].mxu0
    %v963 = vadd.f32 %v552, %v962
    %v964 = vpop.f32.mrb[0].mxu0
    %v965 = vadd.f32 %v556, %v964
    %966 = vdwg.mxu0
    %v967 = vmax.f32 %v916, 0.0
    %v968 = vmax.f32 %v918, 0.0
    %v969 = vmax.f32 %v959, 0.0
    %v970 = vmax.f32 %v961, 0.0
    %v971 = vmax.f32 %v920, 0.0
    %v972 = vmax.f32 %v922, 0.0
    %v973 = vmax.f32 %v963, 0.0
    %v974 = vmax.f32 %v965, 0.0
    %v975 = vpack.c.bf16 %v971, %v967
    %v976 = vpack.c.bf16 %v972, %v968
    %v977 = vpack.c.bf16 %v973, %v969
    %v978 = vpack.c.bf16 %v974, %v970
    %v979 = vld [vmem:[#allocation13] sm:$0xff]
    %v980 = vld [vmem:[#allocation13 + $0x8] sm:$0xff]
    %v981 = vld [vmem:[#allocation13 + $0x10] sm:$0xff]
    %v982 = vld [vmem:[#allocation13 + $0x18] sm:$0xff]
    %v983 = vld [vmem:[#allocation13 + $0x20] sm:$0xff]
    %v984 = vld [vmem:[#allocation13 + $0x28] sm:$0xff]
    %v985 = vld [vmem:[#allocation13 + $0x30] sm:$0xff]
    %v986 = vld [vmem:[#allocation13 + $0x38] sm:$0xff]
    %v987 = vld [vmem:[#allocation13 + $0x40] sm:$0xff]
    %v988 = vld [vmem:[#allocation13 + $0x48] sm:$0xff]
    %v989 = vld [vmem:[#allocation13 + $0x50] sm:$0xff]
    %v990 = vld [vmem:[#allocation13 + $0x58] sm:$0xff]
    %v991 = vld [vmem:[#allocation13 + $0x60] sm:$0xff]
    %v992 = vld [vmem:[#allocation13 + $0x68] sm:$0xff]
    %v993 = vld [vmem:[#allocation13 + $0x70] sm:$0xff]
    %v994 = vld [vmem:[#allocation13 + $0x78] sm:$0xff]
    %v995 = vld [vmem:[#allocation13 + $0x80] sm:$0xff]
    %v996 = vld [vmem:[#allocation13 + $0x88] sm:$0xff]
    %v997 = vld [vmem:[#allocation13 + $0x90] sm:$0xff]
    %v998 = vld [vmem:[#allocation13 + $0x98] sm:$0xff]
    %v999 = vld [vmem:[#allocation13 + $0xa0] sm:$0xff]
    %v1000 = vld [vmem:[#allocation13 + $0xa8] sm:$0xff]
    %v1001 = vld [vmem:[#allocation13 + $0xb0] sm:$0xff]
    %v1002 = vld [vmem:[#allocation13 + $0xb8] sm:$0xff]
    %v1003 = vld [vmem:[#allocation13 + $0xc0] sm:$0xff]
    %v1004 = vld [vmem:[#allocation13 + $0xc8] sm:$0xff]
    %v1005 = vld [vmem:[#allocation13 + $0xd0] sm:$0xff]
    %v1006 = vld [vmem:[#allocation13 + $0xd8] sm:$0xff]
    %v1007 = vld [vmem:[#allocation13 + $0xe0] sm:$0xff]
    %v1008 = vld [vmem:[#allocation13 + $0xe8] sm:$0xff]
    %v1009 = vld [vmem:[#allocation13 + $0xf0] sm:$0xff]
    %v1010 = vld [vmem:[#allocation13 + $0xf8] sm:$0xff]
    %v1011 = vld [vmem:[#allocation13 + $0x100] sm:$0xff]
    %v1012 = vld [vmem:[#allocation13 + $0x108] sm:$0xff]
    %v1013 = vld [vmem:[#allocation13 + $0x110] sm:$0xff]
    %v1014 = vld [vmem:[#allocation13 + $0x118] sm:$0xff]
    %v1015 = vld [vmem:[#allocation13 + $0x120] sm:$0xff]
    %v1016 = vld [vmem:[#allocation13 + $0x128] sm:$0xff]
    %v1017 = vld [vmem:[#allocation13 + $0x130] sm:$0xff]
    %v1018 = vld [vmem:[#allocation13 + $0x138] sm:$0xff]
    %v1019 = vld [vmem:[#allocation13 + $0x140] sm:$0xff]
    %v1020 = vld [vmem:[#allocation13 + $0x148] sm:$0xff]
    %v1021 = vld [vmem:[#allocation13 + $0x150] sm:$0xff]
    %v1022 = vld [vmem:[#allocation13 + $0x158] sm:$0xff]
    %v1023 = vld [vmem:[#allocation13 + $0x160] sm:$0xff]
    %v1024 = vld [vmem:[#allocation13 + $0x168] sm:$0xff]
    %v1025 = vld [vmem:[#allocation13 + $0x170] sm:$0xff]
    %v1026 = vld [vmem:[#allocation13 + $0x178] sm:$0xff]
    %v1027 = vld [vmem:[#allocation13 + $0x180] sm:$0xff]
    %v1028 = vld [vmem:[#allocation13 + $0x188] sm:$0xff]
    %v1029 = vld [vmem:[#allocation13 + $0x190] sm:$0xff]
    %v1030 = vld [vmem:[#allocation13 + $0x198] sm:$0xff]
    %v1031 = vld [vmem:[#allocation13 + $0x1a0] sm:$0xff]
    %v1032 = vld [vmem:[#allocation13 + $0x1a8] sm:$0xff]
    %v1033 = vld [vmem:[#allocation13 + $0x1b0] sm:$0xff]
    %v1034 = vld [vmem:[#allocation13 + $0x1b8] sm:$0xff]
    %v1035 = vld [vmem:[#allocation13 + $0x1c0] sm:$0xff]
    %v1036 = vld [vmem:[#allocation13 + $0x1c8] sm:$0xff]
    %v1037 = vld [vmem:[#allocation13 + $0x1d0] sm:$0xff]
    %v1038 = vld [vmem:[#allocation13 + $0x1d8] sm:$0xff]
    %v1039 = vld [vmem:[#allocation13 + $0x1e0] sm:$0xff]
    %v1040 = vld [vmem:[#allocation13 + $0x1e8] sm:$0xff]
    %v1041 = vld [vmem:[#allocation13 + $0x1f0] sm:$0xff]
    %v1042 = vld [vmem:[#allocation13 + $0x1f8] sm:$0xff]
    %v1043 = vld [vmem:[#allocation13 + $0x200] sm:$0xff]
    %v1044 = vld [vmem:[#allocation13 + $0x208] sm:$0xff]
    %v1045 = vld [vmem:[#allocation13 + $0x210] sm:$0xff]
    %v1046 = vld [vmem:[#allocation13 + $0x218] sm:$0xff]
    %v1047 = vld [vmem:[#allocation13 + $0x220] sm:$0xff]
    %v1048 = vld [vmem:[#allocation13 + $0x228] sm:$0xff]
    %v1049 = vld [vmem:[#allocation13 + $0x230] sm:$0xff]
    %v1050 = vld [vmem:[#allocation13 + $0x238] sm:$0xff]
    %v1051 = vld [vmem:[#allocation13 + $0x240] sm:$0xff]
    %v1052 = vld [vmem:[#allocation13 + $0x248] sm:$0xff]
    %v1053 = vld [vmem:[#allocation13 + $0x250] sm:$0xff]
    %v1054 = vld [vmem:[#allocation13 + $0x258] sm:$0xff]
    %v1055 = vld [vmem:[#allocation13 + $0x260] sm:$0xff]
    %v1056 = vld [vmem:[#allocation13 + $0x268] sm:$0xff]
    %v1057 = vld [vmem:[#allocation13 + $0x270] sm:$0xff]
    %v1058 = vld [vmem:[#allocation13 + $0x278] sm:$0xff]
    %v1059 = vld [vmem:[#allocation13 + $0x280] sm:$0xff]
    %v1060 = vld [vmem:[#allocation13 + $0x288] sm:$0xff]
    %v1061 = vld [vmem:[#allocation13 + $0x290] sm:$0xff]
    %v1062 = vld [vmem:[#allocation13 + $0x298] sm:$0xff]
    %v1063 = vld [vmem:[#allocation13 + $0x2a0] sm:$0xff]
    %v1064 = vld [vmem:[#allocation13 + $0x2a8] sm:$0xff]
    %v1065 = vld [vmem:[#allocation13 + $0x2b0] sm:$0xff]
    %v1066 = vld [vmem:[#allocation13 + $0x2b8] sm:$0xff]
    %v1067 = vld [vmem:[#allocation13 + $0x2c0] sm:$0xff]
    %v1068 = vld [vmem:[#allocation13 + $0x2c8] sm:$0xff]
    %v1069 = vld [vmem:[#allocation13 + $0x2d0] sm:$0xff]
    %v1070 = vld [vmem:[#allocation13 + $0x2d8] sm:$0xff]
    %v1071 = vld [vmem:[#allocation13 + $0x2e0] sm:$0xff]
    %v1072 = vld [vmem:[#allocation13 + $0x2e8] sm:$0xff]
    %v1073 = vld [vmem:[#allocation13 + $0x2f0] sm:$0xff]
    %v1074 = vld [vmem:[#allocation13 + $0x2f8] sm:$0xff]
    %v1075 = vld [vmem:[#allocation13 + $0x300] sm:$0xff]
    %v1076 = vld [vmem:[#allocation13 + $0x308] sm:$0xff]
    %v1077 = vld [vmem:[#allocation13 + $0x310] sm:$0xff]
    %v1078 = vld [vmem:[#allocation13 + $0x318] sm:$0xff]
    %v1079 = vld [vmem:[#allocation13 + $0x320] sm:$0xff]
    %v1080 = vld [vmem:[#allocation13 + $0x328] sm:$0xff]
    %v1081 = vld [vmem:[#allocation13 + $0x330] sm:$0xff]
    %v1082 = vld [vmem:[#allocation13 + $0x338] sm:$0xff]
    %v1083 = vld [vmem:[#allocation13 + $0x340] sm:$0xff]
    %v1084 = vld [vmem:[#allocation13 + $0x348] sm:$0xff]
    %v1085 = vld [vmem:[#allocation13 + $0x350] sm:$0xff]
    %v1086 = vld [vmem:[#allocation13 + $0x358] sm:$0xff]
    %v1087 = vld [vmem:[#allocation13 + $0x360] sm:$0xff]
    %v1088 = vld [vmem:[#allocation13 + $0x368] sm:$0xff]
    %v1089 = vld [vmem:[#allocation13 + $0x370] sm:$0xff]
    %v1090 = vld [vmem:[#allocation13 + $0x378] sm:$0xff]
    %v1091 = vld [vmem:[#allocation13 + $0x380] sm:$0xff]
    %v1092 = vld [vmem:[#allocation13 + $0x388] sm:$0xff]
    %v1093 = vld [vmem:[#allocation13 + $0x390] sm:$0xff]
    %v1094 = vld [vmem:[#allocation13 + $0x398] sm:$0xff]
    %v1095 = vld [vmem:[#allocation13 + $0x3a0] sm:$0xff]
    %v1096 = vld [vmem:[#allocation13 + $0x3a8] sm:$0xff]
    %v1097 = vld [vmem:[#allocation13 + $0x3b0] sm:$0xff]
    %v1098 = vld [vmem:[#allocation13 + $0x3b8] sm:$0xff]
    %v1099 = vld [vmem:[#allocation13 + $0x3c0] sm:$0xff]
    %v1100 = vld [vmem:[#allocation13 + $0x3c8] sm:$0xff]
    %v1101 = vld [vmem:[#allocation13 + $0x3d0] sm:$0xff]
    %v1102 = vld [vmem:[#allocation13 + $0x3d8] sm:$0xff]
    %v1103 = vld [vmem:[#allocation13 + $0x3e0] sm:$0xff]
    %v1104 = vld [vmem:[#allocation13 + $0x3e8] sm:$0xff]
    %v1105 = vld [vmem:[#allocation13 + $0x3f0] sm:$0xff]
    %v1106 = vld [vmem:[#allocation13 + $0x3f8] sm:$0xff]
    %v1107 = vld [vmem:[#allocation13 + $0x400] sm:$0xff]
    %v1108 = vld [vmem:[#allocation13 + $0x408] sm:$0xff]
    %v1109 = vld [vmem:[#allocation13 + $0x410] sm:$0xff]
    %v1110 = vld [vmem:[#allocation13 + $0x418] sm:$0xff]
    %v1111 = vld [vmem:[#allocation13 + $0x420] sm:$0xff]
    %v1112 = vld [vmem:[#allocation13 + $0x428] sm:$0xff]
    %v1113 = vld [vmem:[#allocation13 + $0x430] sm:$0xff]
    %v1114 = vld [vmem:[#allocation13 + $0x438] sm:$0xff]
    %v1115 = vld [vmem:[#allocation13 + $0x440] sm:$0xff]
    %v1116 = vld [vmem:[#allocation13 + $0x448] sm:$0xff]
    %v1117 = vld [vmem:[#allocation13 + $0x450] sm:$0xff]
    %v1118 = vld [vmem:[#allocation13 + $0x458] sm:$0xff]
    %v1119 = vld [vmem:[#allocation13 + $0x460] sm:$0xff]
    %v1120 = vld [vmem:[#allocation13 + $0x468] sm:$0xff]
    %v1121 = vld [vmem:[#allocation13 + $0x470] sm:$0xff]
    %v1122 = vld [vmem:[#allocation13 + $0x478] sm:$0xff]
    %v1123 = vld [vmem:[#allocation13 + $0x480] sm:$0xff]
    %v1124 = vld [vmem:[#allocation13 + $0x488] sm:$0xff]
    %v1125 = vld [vmem:[#allocation13 + $0x490] sm:$0xff]
    %v1126 = vld [vmem:[#allocation13 + $0x498] sm:$0xff]
    %v1127 = vld [vmem:[#allocation13 + $0x4a0] sm:$0xff]
    %v1128 = vld [vmem:[#allocation13 + $0x4a8] sm:$0xff]
    %v1129 = vld [vmem:[#allocation13 + $0x4b0] sm:$0xff]
    %v1130 = vld [vmem:[#allocation13 + $0x4b8] sm:$0xff]
    %v1131 = vld [vmem:[#allocation13 + $0x4c0] sm:$0xff]
    %v1132 = vld [vmem:[#allocation13 + $0x4c8] sm:$0xff]
    %v1133 = vld [vmem:[#allocation13 + $0x4d0] sm:$0xff]
    %v1134 = vld [vmem:[#allocation13 + $0x4d8] sm:$0xff]
    %v1135 = vld [vmem:[#allocation13 + $0x4e0] sm:$0xff]
    %v1136 = vld [vmem:[#allocation13 + $0x4e8] sm:$0xff]
    %v1137 = vld [vmem:[#allocation13 + $0x4f0] sm:$0xff]
    %v1138 = vld [vmem:[#allocation13 + $0x4f8] sm:$0xff]
    %v1139 = vld [vmem:[#allocation13 + $0x500] sm:$0xff]
    %v1140 = vld [vmem:[#allocation13 + $0x508] sm:$0xff]
    %v1141 = vld [vmem:[#allocation13 + $0x510] sm:$0xff]
    %v1142 = vld [vmem:[#allocation13 + $0x518] sm:$0xff]
    %v1143 = vld [vmem:[#allocation13 + $0x520] sm:$0xff]
    %v1144 = vld [vmem:[#allocation13 + $0x528] sm:$0xff]
    %v1145 = vld [vmem:[#allocation13 + $0x530] sm:$0xff]
    %v1146 = vld [vmem:[#allocation13 + $0x538] sm:$0xff]
    %v1147 = vld [vmem:[#allocation13 + $0x540] sm:$0xff]
    %v1148 = vld [vmem:[#allocation13 + $0x548] sm:$0xff]
    %v1149 = vld [vmem:[#allocation13 + $0x550] sm:$0xff]
    %v1150 = vld [vmem:[#allocation13 + $0x558] sm:$0xff]
    %v1151 = vld [vmem:[#allocation13 + $0x560] sm:$0xff]
    %v1152 = vld [vmem:[#allocation13 + $0x568] sm:$0xff]
    %v1153 = vld [vmem:[#allocation13 + $0x570] sm:$0xff]
    %v1154 = vld [vmem:[#allocation13 + $0x578] sm:$0xff]
    %v1155 = vld [vmem:[#allocation13 + $0x580] sm:$0xff]
    %v1156 = vld [vmem:[#allocation13 + $0x588] sm:$0xff]
    %v1157 = vld [vmem:[#allocation13 + $0x590] sm:$0xff]
    %v1158 = vld [vmem:[#allocation13 + $0x598] sm:$0xff]
    %v1159 = vld [vmem:[#allocation13 + $0x5a0] sm:$0xff]
    %v1160 = vld [vmem:[#allocation13 + $0x5a8] sm:$0xff]
    %v1161 = vld [vmem:[#allocation13 + $0x5b0] sm:$0xff]
    %v1162 = vld [vmem:[#allocation13 + $0x5b8] sm:$0xff]
    %v1163 = vld [vmem:[#allocation13 + $0x5c0] sm:$0xff]
    %v1164 = vld [vmem:[#allocation13 + $0x5c8] sm:$0xff]
    %v1165 = vld [vmem:[#allocation13 + $0x5d0] sm:$0xff]
    %v1166 = vld [vmem:[#allocation13 + $0x5d8] sm:$0xff]
    %v1167 = vld [vmem:[#allocation13 + $0x5e0] sm:$0xff]
    %v1168 = vld [vmem:[#allocation13 + $0x5e8] sm:$0xff]
    %v1169 = vld [vmem:[#allocation13 + $0x5f0] sm:$0xff]
    %v1170 = vld [vmem:[#allocation13 + $0x5f8] sm:$0xff]
    %v1171 = vld [vmem:[#allocation13 + $0x600] sm:$0xff]
    %v1172 = vld [vmem:[#allocation13 + $0x608] sm:$0xff]
    %v1173 = vld [vmem:[#allocation13 + $0x610] sm:$0xff]
    %v1174 = vld [vmem:[#allocation13 + $0x618] sm:$0xff]
    %v1175 = vld [vmem:[#allocation13 + $0x620] sm:$0xff]
    %v1176 = vld [vmem:[#allocation13 + $0x628] sm:$0xff]
    %v1177 = vld [vmem:[#allocation13 + $0x630] sm:$0xff]
    %v1178 = vld [vmem:[#allocation13 + $0x638] sm:$0xff]
    %v1179 = vld [vmem:[#allocation13 + $0x640] sm:$0xff]
    %v1180 = vld [vmem:[#allocation13 + $0x648] sm:$0xff]
    %v1181 = vld [vmem:[#allocation13 + $0x650] sm:$0xff]
    %v1182 = vld [vmem:[#allocation13 + $0x658] sm:$0xff]
    %v1183 = vld [vmem:[#allocation13 + $0x660] sm:$0xff]
    %v1184 = vld [vmem:[#allocation13 + $0x668] sm:$0xff]
    %v1185 = vld [vmem:[#allocation13 + $0x670] sm:$0xff]
    %v1186 = vld [vmem:[#allocation13 + $0x678] sm:$0xff]
    %v1187 = vld [vmem:[#allocation13 + $0x680] sm:$0xff]
    %v1188 = vld [vmem:[#allocation13 + $0x688] sm:$0xff]
    %v1189 = vld [vmem:[#allocation13 + $0x690] sm:$0xff]
    %v1190 = vld [vmem:[#allocation13 + $0x698] sm:$0xff]
    %v1191 = vld [vmem:[#allocation13 + $0x6a0] sm:$0xff]
    %v1192 = vld [vmem:[#allocation13 + $0x6a8] sm:$0xff]
    %v1193 = vld [vmem:[#allocation13 + $0x6b0] sm:$0xff]
    %v1194 = vld [vmem:[#allocation13 + $0x6b8] sm:$0xff]
    %v1195 = vld [vmem:[#allocation13 + $0x6c0] sm:$0xff]
    %v1196 = vld [vmem:[#allocation13 + $0x6c8] sm:$0xff]
    %v1197 = vld [vmem:[#allocation13 + $0x6d0] sm:$0xff]
    %v1198 = vld [vmem:[#allocation13 + $0x6d8] sm:$0xff]
    %v1199 = vld [vmem:[#allocation13 + $0x6e0] sm:$0xff]
    %v1200 = vld [vmem:[#allocation13 + $0x6e8] sm:$0xff]
    %v1201 = vld [vmem:[#allocation13 + $0x6f0] sm:$0xff]
    %v1202 = vld [vmem:[#allocation13 + $0x6f8] sm:$0xff]
    %v1203 = vld [vmem:[#allocation13 + $0x700] sm:$0xff]
    %v1204 = vld [vmem:[#allocation13 + $0x708] sm:$0xff]
    %v1205 = vld [vmem:[#allocation13 + $0x710] sm:$0xff]
    %v1206 = vld [vmem:[#allocation13 + $0x718] sm:$0xff]
    %v1207 = vld [vmem:[#allocation13 + $0x720] sm:$0xff]
    %v1208 = vld [vmem:[#allocation13 + $0x728] sm:$0xff]
    %v1209 = vld [vmem:[#allocation13 + $0x730] sm:$0xff]
    %v1210 = vld [vmem:[#allocation13 + $0x738] sm:$0xff]
    %v1211 = vld [vmem:[#allocation13 + $0x740] sm:$0xff]
    %v1212 = vld [vmem:[#allocation13 + $0x748] sm:$0xff]
    %v1213 = vld [vmem:[#allocation13 + $0x750] sm:$0xff]
    %v1214 = vld [vmem:[#allocation13 + $0x758] sm:$0xff]
    %v1215 = vld [vmem:[#allocation13 + $0x760] sm:$0xff]
    %v1216 = vld [vmem:[#allocation13 + $0x768] sm:$0xff]
    %v1217 = vld [vmem:[#allocation13 + $0x770] sm:$0xff]
    %v1218 = vld [vmem:[#allocation13 + $0x778] sm:$0xff]
    %v1219 = vld [vmem:[#allocation13 + $0x780] sm:$0xff]
    %v1220 = vld [vmem:[#allocation13 + $0x788] sm:$0xff]
    %v1221 = vld [vmem:[#allocation13 + $0x790] sm:$0xff]
    %v1222 = vld [vmem:[#allocation13 + $0x798] sm:$0xff]
    %v1223 = vld [vmem:[#allocation13 + $0x7a0] sm:$0xff]
    %v1224 = vld [vmem:[#allocation13 + $0x7a8] sm:$0xff]
    %v1225 = vld [vmem:[#allocation13 + $0x7b0] sm:$0xff]
    %v1226 = vld [vmem:[#allocation13 + $0x7b8] sm:$0xff]
    %v1227 = vld [vmem:[#allocation13 + $0x7c0] sm:$0xff]
    %v1228 = vld [vmem:[#allocation13 + $0x7c8] sm:$0xff]
    %v1229 = vld [vmem:[#allocation13 + $0x7d0] sm:$0xff]
    %v1230 = vld [vmem:[#allocation13 + $0x7d8] sm:$0xff]
    %v1231 = vld [vmem:[#allocation13 + $0x7e0] sm:$0xff]
    %v1232 = vld [vmem:[#allocation13 + $0x7e8] sm:$0xff]
    %v1233 = vld [vmem:[#allocation13 + $0x7f0] sm:$0xff]
    %v1234 = vld [vmem:[#allocation13 + $0x7f8] sm:$0xff]
    %v1235 = vld [vmem:[%s10] sm:$0xff]
    %v1237 = vlaneseq
    %v1238 = vshrl.u32 %v1237, 7
    %v1239 = vsub.s32 0, %v1238
    %v1240 = vrot.slane %v1235, %v1239
    %v1241 = vlaneseq
    %v1242 = vshrl.u32 %v1241, 7
    %v1243 = vsub.s32 1, %v1242
    %v1244 = vrot.slane %v1235, %v1243
    %v1245 = vlaneseq
    %v1246 = vshrl.u32 %v1245, 7
    %v1247 = vsub.s32 2, %v1246
    %v1248 = vrot.slane %v1235, %v1247
    %v1249 = vlaneseq
    %v1250 = vshrl.u32 %v1249, 7
    %v1251 = vsub.s32 3, %v1250
    %v1252 = vrot.slane %v1235, %v1251
    %v1253 = vlaneseq
    %v1254 = vshrl.u32 %v1253, 7
    %v1255 = vsub.s32 4, %v1254
    %v1256 = vrot.slane %v1235, %v1255
    %v1257 = vlaneseq
    %v1258 = vshrl.u32 %v1257, 7
    %v1259 = vsub.s32 5, %v1258
    %v1260 = vrot.slane %v1235, %v1259
    %v1261 = vlaneseq
    %v1262 = vshrl.u32 %v1261, 7
    %v1263 = vsub.s32 6, %v1262
    %v1264 = vrot.slane %v1235, %v1263
    %v1265 = vlaneseq
    %v1266 = vshrl.u32 %v1265, 7
    %v1267 = vsub.s32 7, %v1266
    %v1268 = vrot.slane %v1235, %v1267
    %v1533 = vunpack.c.l.b16 %v979
    %v1534 = vunpack.c.h.b16 %v979
    %v1535 = vunpack.c.l.b16 %v980
    %v1536 = vunpack.c.h.b16 %v980
    %v1537 = vunpack.c.l.b16 %v981
    %v1538 = vunpack.c.h.b16 %v981
    %v1539 = vunpack.c.l.b16 %v982
    %v1540 = vunpack.c.h.b16 %v982
    %v1541 = vunpack.c.l.b16 %v983
    %v1542 = vunpack.c.h.b16 %v983
    %v1543 = vunpack.c.l.b16 %v984
    %v1544 = vunpack.c.h.b16 %v984
    %v1545 = vunpack.c.l.b16 %v985
    %v1546 = vunpack.c.h.b16 %v985
    %v1547 = vunpack.c.l.b16 %v986
    %v1548 = vunpack.c.h.b16 %v986
    %v1549 = vunpack.c.l.b16 %v987
    %v1550 = vunpack.c.h.b16 %v987
    %v1551 = vunpack.c.l.b16 %v988
    %v1552 = vunpack.c.h.b16 %v988
    %v1553 = vunpack.c.l.b16 %v989
    %v1554 = vunpack.c.h.b16 %v989
    %v1555 = vunpack.c.l.b16 %v990
    %v1556 = vunpack.c.h.b16 %v990
    %v1557 = vunpack.c.l.b16 %v991
    %v1558 = vunpack.c.h.b16 %v991
    %v1559 = vunpack.c.l.b16 %v992
    %v1560 = vunpack.c.h.b16 %v992
    %v1561 = vunpack.c.l.b16 %v993
    %v1562 = vunpack.c.h.b16 %v993
    %v1563 = vunpack.c.l.b16 %v994
    %v1564 = vunpack.c.h.b16 %v994
    %v1565 = vunpack.c.l.b16 %v995
    %v1566 = vunpack.c.h.b16 %v995
    %v1567 = vunpack.c.l.b16 %v996
    %v1568 = vunpack.c.h.b16 %v996
    %v1569 = vunpack.c.l.b16 %v997
    %v1570 = vunpack.c.h.b16 %v997
    %v1571 = vunpack.c.l.b16 %v998
    %v1572 = vunpack.c.h.b16 %v998
    %v1573 = vunpack.c.l.b16 %v999
    %v1574 = vunpack.c.h.b16 %v999
    %v1575 = vunpack.c.l.b16 %v1000
    %v1576 = vunpack.c.h.b16 %v1000
    %v1577 = vunpack.c.l.b16 %v1001
    %v1578 = vunpack.c.h.b16 %v1001
    %v1579 = vunpack.c.l.b16 %v1002
    %v1580 = vunpack.c.h.b16 %v1002
    %v1581 = vunpack.c.l.b16 %v1003
    %v1582 = vunpack.c.h.b16 %v1003
    %v1583 = vunpack.c.l.b16 %v1004
    %v1584 = vunpack.c.h.b16 %v1004
    %v1585 = vunpack.c.l.b16 %v1005
    %v1586 = vunpack.c.h.b16 %v1005
    %v1587 = vunpack.c.l.b16 %v1006
    %v1588 = vunpack.c.h.b16 %v1006
    %v1589 = vunpack.c.l.b16 %v1007
    %v1590 = vunpack.c.h.b16 %v1007
    %v1591 = vunpack.c.l.b16 %v1008
    %v1592 = vunpack.c.h.b16 %v1008
    %v1593 = vunpack.c.l.b16 %v1009
    %v1594 = vunpack.c.h.b16 %v1009
    %v1595 = vunpack.c.l.b16 %v1010
    %v1596 = vunpack.c.h.b16 %v1010
    %v1597 = vunpack.c.l.b16 %v1011
    %v1598 = vunpack.c.h.b16 %v1011
    %v1599 = vunpack.c.l.b16 %v1012
    %v1600 = vunpack.c.h.b16 %v1012
    %v1601 = vunpack.c.l.b16 %v1013
    %v1602 = vunpack.c.h.b16 %v1013
    %v1603 = vunpack.c.l.b16 %v1014
    %v1604 = vunpack.c.h.b16 %v1014
    %v1605 = vunpack.c.l.b16 %v1015
    %v1606 = vunpack.c.h.b16 %v1015
    %v1607 = vunpack.c.l.b16 %v1016
    %v1608 = vunpack.c.h.b16 %v1016
    %v1609 = vunpack.c.l.b16 %v1017
    %v1610 = vunpack.c.h.b16 %v1017
    %v1611 = vunpack.c.l.b16 %v1018
    %v1612 = vunpack.c.h.b16 %v1018
    %v1613 = vunpack.c.l.b16 %v1019
    %v1614 = vunpack.c.h.b16 %v1019
    %v1615 = vunpack.c.l.b16 %v1020
    %v1616 = vunpack.c.h.b16 %v1020
    %v1617 = vunpack.c.l.b16 %v1021
    %v1618 = vunpack.c.h.b16 %v1021
    %v1619 = vunpack.c.l.b16 %v1022
    %v1620 = vunpack.c.h.b16 %v1022
    %v1621 = vunpack.c.l.b16 %v1023
    %v1622 = vunpack.c.h.b16 %v1023
    %v1623 = vunpack.c.l.b16 %v1024
    %v1624 = vunpack.c.h.b16 %v1024
    %v1625 = vunpack.c.l.b16 %v1025
    %v1626 = vunpack.c.h.b16 %v1025
    %v1627 = vunpack.c.l.b16 %v1026
    %v1628 = vunpack.c.h.b16 %v1026
    %v1629 = vunpack.c.l.b16 %v1027
    %v1630 = vunpack.c.h.b16 %v1027
    %v1631 = vunpack.c.l.b16 %v1028
    %v1632 = vunpack.c.h.b16 %v1028
    %v1633 = vunpack.c.l.b16 %v1029
    %v1634 = vunpack.c.h.b16 %v1029
    %v1635 = vunpack.c.l.b16 %v1030
    %v1636 = vunpack.c.h.b16 %v1030
    %v1637 = vunpack.c.l.b16 %v1031
    %v1638 = vunpack.c.h.b16 %v1031
    %v1639 = vunpack.c.l.b16 %v1032
    %v1640 = vunpack.c.h.b16 %v1032
    %v1641 = vunpack.c.l.b16 %v1033
    %v1642 = vunpack.c.h.b16 %v1033
    %v1643 = vunpack.c.l.b16 %v1034
    %v1644 = vunpack.c.h.b16 %v1034
    %v1645 = vunpack.c.l.b16 %v1035
    %v1646 = vunpack.c.h.b16 %v1035
    %v1647 = vunpack.c.l.b16 %v1036
    %v1648 = vunpack.c.h.b16 %v1036
    %v1649 = vunpack.c.l.b16 %v1037
    %v1650 = vunpack.c.h.b16 %v1037
    %v1651 = vunpack.c.l.b16 %v1038
    %v1652 = vunpack.c.h.b16 %v1038
    %v1653 = vunpack.c.l.b16 %v1039
    %v1654 = vunpack.c.h.b16 %v1039
    %v1655 = vunpack.c.l.b16 %v1040
    %v1656 = vunpack.c.h.b16 %v1040
    %v1657 = vunpack.c.l.b16 %v1041
    %v1658 = vunpack.c.h.b16 %v1041
    %v1659 = vunpack.c.l.b16 %v1042
    %v1660 = vunpack.c.h.b16 %v1042
    %v1661 = vunpack.c.l.b16 %v1043
    %v1662 = vunpack.c.h.b16 %v1043
    %v1663 = vunpack.c.l.b16 %v1044
    %v1664 = vunpack.c.h.b16 %v1044
    %v1665 = vunpack.c.l.b16 %v1045
    %v1666 = vunpack.c.h.b16 %v1045
    %v1667 = vunpack.c.l.b16 %v1046
    %v1668 = vunpack.c.h.b16 %v1046
    %v1669 = vunpack.c.l.b16 %v1047
    %v1670 = vunpack.c.h.b16 %v1047
    %v1671 = vunpack.c.l.b16 %v1048
    %v1672 = vunpack.c.h.b16 %v1048
    %v1673 = vunpack.c.l.b16 %v1049
    %v1674 = vunpack.c.h.b16 %v1049
    %v1675 = vunpack.c.l.b16 %v1050
    %v1676 = vunpack.c.h.b16 %v1050
    %v1677 = vunpack.c.l.b16 %v1051
    %v1678 = vunpack.c.h.b16 %v1051
    %v1679 = vunpack.c.l.b16 %v1052
    %v1680 = vunpack.c.h.b16 %v1052
    %v1681 = vunpack.c.l.b16 %v1053
    %v1682 = vunpack.c.h.b16 %v1053
    %v1683 = vunpack.c.l.b16 %v1054
    %v1684 = vunpack.c.h.b16 %v1054
    %v1685 = vunpack.c.l.b16 %v1055
    %v1686 = vunpack.c.h.b16 %v1055
    %v1687 = vunpack.c.l.b16 %v1056
    %v1688 = vunpack.c.h.b16 %v1056
    %v1689 = vunpack.c.l.b16 %v1057
    %v1690 = vunpack.c.h.b16 %v1057
    %v1691 = vunpack.c.l.b16 %v1058
    %v1692 = vunpack.c.h.b16 %v1058
    %v1693 = vunpack.c.l.b16 %v1059
    %v1694 = vunpack.c.h.b16 %v1059
    %v1695 = vunpack.c.l.b16 %v1060
    %v1696 = vunpack.c.h.b16 %v1060
    %v1697 = vunpack.c.l.b16 %v1061
    %v1698 = vunpack.c.h.b16 %v1061
    %v1699 = vunpack.c.l.b16 %v1062
    %v1700 = vunpack.c.h.b16 %v1062
    %v1701 = vunpack.c.l.b16 %v1063
    %v1702 = vunpack.c.h.b16 %v1063
    %v1703 = vunpack.c.l.b16 %v1064
    %v1704 = vunpack.c.h.b16 %v1064
    %v1705 = vunpack.c.l.b16 %v1065
    %v1706 = vunpack.c.h.b16 %v1065
    %v1707 = vunpack.c.l.b16 %v1066
    %v1708 = vunpack.c.h.b16 %v1066
    %v1709 = vunpack.c.l.b16 %v1067
    %v1710 = vunpack.c.h.b16 %v1067
    %v1711 = vunpack.c.l.b16 %v1068
    %v1712 = vunpack.c.h.b16 %v1068
    %v1713 = vunpack.c.l.b16 %v1069
    %v1714 = vunpack.c.h.b16 %v1069
    %v1715 = vunpack.c.l.b16 %v1070
    %v1716 = vunpack.c.h.b16 %v1070
    %v1717 = vunpack.c.l.b16 %v1071
    %v1718 = vunpack.c.h.b16 %v1071
    %v1719 = vunpack.c.l.b16 %v1072
    %v1720 = vunpack.c.h.b16 %v1072
    %v1721 = vunpack.c.l.b16 %v1073
    %v1722 = vunpack.c.h.b16 %v1073
    %v1723 = vunpack.c.l.b16 %v1074
    %v1724 = vunpack.c.h.b16 %v1074
    %v1725 = vunpack.c.l.b16 %v1075
    %v1726 = vunpack.c.h.b16 %v1075
    %v1727 = vunpack.c.l.b16 %v1076
    %v1728 = vunpack.c.h.b16 %v1076
    %v1729 = vunpack.c.l.b16 %v1077
    %v1730 = vunpack.c.h.b16 %v1077
    %v1731 = vunpack.c.l.b16 %v1078
    %v1732 = vunpack.c.h.b16 %v1078
    %v1733 = vunpack.c.l.b16 %v1079
    %v1734 = vunpack.c.h.b16 %v1079
    %v1735 = vunpack.c.l.b16 %v1080
    %v1736 = vunpack.c.h.b16 %v1080
    %v1737 = vunpack.c.l.b16 %v1081
    %v1738 = vunpack.c.h.b16 %v1081
    %v1739 = vunpack.c.l.b16 %v1082
    %v1740 = vunpack.c.h.b16 %v1082
    %v1741 = vunpack.c.l.b16 %v1083
    %v1742 = vunpack.c.h.b16 %v1083
    %v1743 = vunpack.c.l.b16 %v1084
    %v1744 = vunpack.c.h.b16 %v1084
    %v1745 = vunpack.c.l.b16 %v1085
    %v1746 = vunpack.c.h.b16 %v1085
    %v1747 = vunpack.c.l.b16 %v1086
    %v1748 = vunpack.c.h.b16 %v1086
    %v1749 = vunpack.c.l.b16 %v1087
    %v1750 = vunpack.c.h.b16 %v1087
    %v1751 = vunpack.c.l.b16 %v1088
    %v1752 = vunpack.c.h.b16 %v1088
    %v1753 = vunpack.c.l.b16 %v1089
    %v1754 = vunpack.c.h.b16 %v1089
    %v1755 = vunpack.c.l.b16 %v1090
    %v1756 = vunpack.c.h.b16 %v1090
    %v1757 = vunpack.c.l.b16 %v1091
    %v1758 = vunpack.c.h.b16 %v1091
    %v1759 = vunpack.c.l.b16 %v1092
    %v1760 = vunpack.c.h.b16 %v1092
    %v1761 = vunpack.c.l.b16 %v1093
    %v1762 = vunpack.c.h.b16 %v1093
    %v1763 = vunpack.c.l.b16 %v1094
    %v1764 = vunpack.c.h.b16 %v1094
    %v1765 = vunpack.c.l.b16 %v1095
    %v1766 = vunpack.c.h.b16 %v1095
    %v1767 = vunpack.c.l.b16 %v1096
    %v1768 = vunpack.c.h.b16 %v1096
    %v1769 = vunpack.c.l.b16 %v1097
    %v1770 = vunpack.c.h.b16 %v1097
    %v1771 = vunpack.c.l.b16 %v1098
    %v1772 = vunpack.c.h.b16 %v1098
    %v1773 = vunpack.c.l.b16 %v1099
    %v1774 = vunpack.c.h.b16 %v1099
    %v1775 = vunpack.c.l.b16 %v1100
    %v1776 = vunpack.c.h.b16 %v1100
    %v1777 = vunpack.c.l.b16 %v1101
    %v1778 = vunpack.c.h.b16 %v1101
    %v1779 = vunpack.c.l.b16 %v1102
    %v1780 = vunpack.c.h.b16 %v1102
    %v1781 = vunpack.c.l.b16 %v1103
    %v1782 = vunpack.c.h.b16 %v1103
    %v1783 = vunpack.c.l.b16 %v1104
    %v1784 = vunpack.c.h.b16 %v1104
    %v1785 = vunpack.c.l.b16 %v1105
    %v1786 = vunpack.c.h.b16 %v1105
    %v1787 = vunpack.c.l.b16 %v1106
    %v1788 = vunpack.c.h.b16 %v1106
    %v1789 = vunpack.c.l.b16 %v1107
    %v1790 = vunpack.c.h.b16 %v1107
    %v1791 = vunpack.c.l.b16 %v1108
    %v1792 = vunpack.c.h.b16 %v1108
    %v1793 = vunpack.c.l.b16 %v1109
    %v1794 = vunpack.c.h.b16 %v1109
    %v1795 = vunpack.c.l.b16 %v1110
    %v1796 = vunpack.c.h.b16 %v1110
    %v1797 = vunpack.c.l.b16 %v1111
    %v1798 = vunpack.c.h.b16 %v1111
    %v1799 = vunpack.c.l.b16 %v1112
    %v1800 = vunpack.c.h.b16 %v1112
    %v1801 = vunpack.c.l.b16 %v1113
    %v1802 = vunpack.c.h.b16 %v1113
    %v1803 = vunpack.c.l.b16 %v1114
    %v1804 = vunpack.c.h.b16 %v1114
    %v1805 = vunpack.c.l.b16 %v1115
    %v1806 = vunpack.c.h.b16 %v1115
    %v1807 = vunpack.c.l.b16 %v1116
    %v1808 = vunpack.c.h.b16 %v1116
    %v1809 = vunpack.c.l.b16 %v1117
    %v1810 = vunpack.c.h.b16 %v1117
    %v1811 = vunpack.c.l.b16 %v1118
    %v1812 = vunpack.c.h.b16 %v1118
    %v1813 = vunpack.c.l.b16 %v1119
    %v1814 = vunpack.c.h.b16 %v1119
    %v1815 = vunpack.c.l.b16 %v1120
    %v1816 = vunpack.c.h.b16 %v1120
    %v1817 = vunpack.c.l.b16 %v1121
    %v1818 = vunpack.c.h.b16 %v1121
    %v1819 = vunpack.c.l.b16 %v1122
    %v1820 = vunpack.c.h.b16 %v1122
    %v1821 = vunpack.c.l.b16 %v1123
    %v1822 = vunpack.c.h.b16 %v1123
    %v1823 = vunpack.c.l.b16 %v1124
    %v1824 = vunpack.c.h.b16 %v1124
    %v1825 = vunpack.c.l.b16 %v1125
    %v1826 = vunpack.c.h.b16 %v1125
    %v1827 = vunpack.c.l.b16 %v1126
    %v1828 = vunpack.c.h.b16 %v1126
    %v1829 = vunpack.c.l.b16 %v1127
    %v1830 = vunpack.c.h.b16 %v1127
    %v1831 = vunpack.c.l.b16 %v1128
    %v1832 = vunpack.c.h.b16 %v1128
    %v1833 = vunpack.c.l.b16 %v1129
    %v1834 = vunpack.c.h.b16 %v1129
    %v1835 = vunpack.c.l.b16 %v1130
    %v1836 = vunpack.c.h.b16 %v1130
    %v1837 = vunpack.c.l.b16 %v1131
    %v1838 = vunpack.c.h.b16 %v1131
    %v1839 = vunpack.c.l.b16 %v1132
    %v1840 = vunpack.c.h.b16 %v1132
    %v1841 = vunpack.c.l.b16 %v1133
    %v1842 = vunpack.c.h.b16 %v1133
    %v1843 = vunpack.c.l.b16 %v1134
    %v1844 = vunpack.c.h.b16 %v1134
    %v1845 = vunpack.c.l.b16 %v1135
    %v1846 = vunpack.c.h.b16 %v1135
    %v1847 = vunpack.c.l.b16 %v1136
    %v1848 = vunpack.c.h.b16 %v1136
    %v1849 = vunpack.c.l.b16 %v1137
    %v1850 = vunpack.c.h.b16 %v1137
    %v1851 = vunpack.c.l.b16 %v1138
    %v1852 = vunpack.c.h.b16 %v1138
    %v1853 = vunpack.c.l.b16 %v1139
    %v1854 = vunpack.c.h.b16 %v1139
    %v1855 = vunpack.c.l.b16 %v1140
    %v1856 = vunpack.c.h.b16 %v1140
    %v1857 = vunpack.c.l.b16 %v1141
    %v1858 = vunpack.c.h.b16 %v1141
    %v1859 = vunpack.c.l.b16 %v1142
    %v1860 = vunpack.c.h.b16 %v1142
    %v1861 = vunpack.c.l.b16 %v1143
    %v1862 = vunpack.c.h.b16 %v1143
    %v1863 = vunpack.c.l.b16 %v1144
    %v1864 = vunpack.c.h.b16 %v1144
    %v1865 = vunpack.c.l.b16 %v1145
    %v1866 = vunpack.c.h.b16 %v1145
    %v1867 = vunpack.c.l.b16 %v1146
    %v1868 = vunpack.c.h.b16 %v1146
    %v1869 = vunpack.c.l.b16 %v1147
    %v1870 = vunpack.c.h.b16 %v1147
    %v1871 = vunpack.c.l.b16 %v1148
    %v1872 = vunpack.c.h.b16 %v1148
    %v1873 = vunpack.c.l.b16 %v1149
    %v1874 = vunpack.c.h.b16 %v1149
    %v1875 = vunpack.c.l.b16 %v1150
    %v1876 = vunpack.c.h.b16 %v1150
    %v1877 = vunpack.c.l.b16 %v1151
    %v1878 = vunpack.c.h.b16 %v1151
    %v1879 = vunpack.c.l.b16 %v1152
    %v1880 = vunpack.c.h.b16 %v1152
    %v1881 = vunpack.c.l.b16 %v1153
    %v1882 = vunpack.c.h.b16 %v1153
    %v1883 = vunpack.c.l.b16 %v1154
    %v1884 = vunpack.c.h.b16 %v1154
    %v1885 = vunpack.c.l.b16 %v1155
    %v1886 = vunpack.c.h.b16 %v1155
    %v1887 = vunpack.c.l.b16 %v1156
    %v1888 = vunpack.c.h.b16 %v1156
    %v1889 = vunpack.c.l.b16 %v1157
    %v1890 = vunpack.c.h.b16 %v1157
    %v1891 = vunpack.c.l.b16 %v1158
    %v1892 = vunpack.c.h.b16 %v1158
    %v1893 = vunpack.c.l.b16 %v1159
    %v1894 = vunpack.c.h.b16 %v1159
    %v1895 = vunpack.c.l.b16 %v1160
    %v1896 = vunpack.c.h.b16 %v1160
    %v1897 = vunpack.c.l.b16 %v1161
    %v1898 = vunpack.c.h.b16 %v1161
    %v1899 = vunpack.c.l.b16 %v1162
    %v1900 = vunpack.c.h.b16 %v1162
    %v1901 = vunpack.c.l.b16 %v1163
    %v1902 = vunpack.c.h.b16 %v1163
    %v1903 = vunpack.c.l.b16 %v1164
    %v1904 = vunpack.c.h.b16 %v1164
    %v1905 = vunpack.c.l.b16 %v1165
    %v1906 = vunpack.c.h.b16 %v1165
    %v1907 = vunpack.c.l.b16 %v1166
    %v1908 = vunpack.c.h.b16 %v1166
    %v1909 = vunpack.c.l.b16 %v1167
    %v1910 = vunpack.c.h.b16 %v1167
    %v1911 = vunpack.c.l.b16 %v1168
    %v1912 = vunpack.c.h.b16 %v1168
    %v1913 = vunpack.c.l.b16 %v1169
    %v1914 = vunpack.c.h.b16 %v1169
    %v1915 = vunpack.c.l.b16 %v1170
    %v1916 = vunpack.c.h.b16 %v1170
    %v1917 = vunpack.c.l.b16 %v1171
    %v1918 = vunpack.c.h.b16 %v1171
    %v1919 = vunpack.c.l.b16 %v1172
    %v1920 = vunpack.c.h.b16 %v1172
    %v1921 = vunpack.c.l.b16 %v1173
    %v1922 = vunpack.c.h.b16 %v1173
    %v1923 = vunpack.c.l.b16 %v1174
    %v1924 = vunpack.c.h.b16 %v1174
    %v1925 = vunpack.c.l.b16 %v1175
    %v1926 = vunpack.c.h.b16 %v1175
    %v1927 = vunpack.c.l.b16 %v1176
    %v1928 = vunpack.c.h.b16 %v1176
    %v1929 = vunpack.c.l.b16 %v1177
    %v1930 = vunpack.c.h.b16 %v1177
    %v1931 = vunpack.c.l.b16 %v1178
    %v1932 = vunpack.c.h.b16 %v1178
    %v1933 = vunpack.c.l.b16 %v1179
    %v1934 = vunpack.c.h.b16 %v1179
    %v1935 = vunpack.c.l.b16 %v1180
    %v1936 = vunpack.c.h.b16 %v1180
    %v1937 = vunpack.c.l.b16 %v1181
    %v1938 = vunpack.c.h.b16 %v1181
    %v1939 = vunpack.c.l.b16 %v1182
    %v1940 = vunpack.c.h.b16 %v1182
    %v1941 = vunpack.c.l.b16 %v1183
    %v1942 = vunpack.c.h.b16 %v1183
    %v1943 = vunpack.c.l.b16 %v1184
    %v1944 = vunpack.c.h.b16 %v1184
    %v1945 = vunpack.c.l.b16 %v1185
    %v1946 = vunpack.c.h.b16 %v1185
    %v1947 = vunpack.c.l.b16 %v1186
    %v1948 = vunpack.c.h.b16 %v1186
    %v1949 = vunpack.c.l.b16 %v1187
    %v1950 = vunpack.c.h.b16 %v1187
    %v1951 = vunpack.c.l.b16 %v1188
    %v1952 = vunpack.c.h.b16 %v1188
    %v1953 = vunpack.c.l.b16 %v1189
    %v1954 = vunpack.c.h.b16 %v1189
    %v1955 = vunpack.c.l.b16 %v1190
    %v1956 = vunpack.c.h.b16 %v1190
    %v1957 = vunpack.c.l.b16 %v1191
    %v1958 = vunpack.c.h.b16 %v1191
    %v1959 = vunpack.c.l.b16 %v1192
    %v1960 = vunpack.c.h.b16 %v1192
    %v1961 = vunpack.c.l.b16 %v1193
    %v1962 = vunpack.c.h.b16 %v1193
    %v1963 = vunpack.c.l.b16 %v1194
    %v1964 = vunpack.c.h.b16 %v1194
    %v1965 = vunpack.c.l.b16 %v1195
    %v1966 = vunpack.c.h.b16 %v1195
    %v1967 = vunpack.c.l.b16 %v1196
    %v1968 = vunpack.c.h.b16 %v1196
    %v1969 = vunpack.c.l.b16 %v1197
    %v1970 = vunpack.c.h.b16 %v1197
    %v1971 = vunpack.c.l.b16 %v1198
    %v1972 = vunpack.c.h.b16 %v1198
    %v1973 = vunpack.c.l.b16 %v1199
    %v1974 = vunpack.c.h.b16 %v1199
    %v1975 = vunpack.c.l.b16 %v1200
    %v1976 = vunpack.c.h.b16 %v1200
    %v1977 = vunpack.c.l.b16 %v1201
    %v1978 = vunpack.c.h.b16 %v1201
    %v1979 = vunpack.c.l.b16 %v1202
    %v1980 = vunpack.c.h.b16 %v1202
    %v1981 = vunpack.c.l.b16 %v1203
    %v1982 = vunpack.c.h.b16 %v1203
    %v1983 = vunpack.c.l.b16 %v1204
    %v1984 = vunpack.c.h.b16 %v1204
    %v1985 = vunpack.c.l.b16 %v1205
    %v1986 = vunpack.c.h.b16 %v1205
    %v1987 = vunpack.c.l.b16 %v1206
    %v1988 = vunpack.c.h.b16 %v1206
    %v1989 = vunpack.c.l.b16 %v1207
    %v1990 = vunpack.c.h.b16 %v1207
    %v1991 = vunpack.c.l.b16 %v1208
    %v1992 = vunpack.c.h.b16 %v1208
    %v1993 = vunpack.c.l.b16 %v1209
    %v1994 = vunpack.c.h.b16 %v1209
    %v1995 = vunpack.c.l.b16 %v1210
    %v1996 = vunpack.c.h.b16 %v1210
    %v1997 = vunpack.c.l.b16 %v1211
    %v1998 = vunpack.c.h.b16 %v1211
    %v1999 = vunpack.c.l.b16 %v1212
    %v2000 = vunpack.c.h.b16 %v1212
    %v2001 = vunpack.c.l.b16 %v1213
    %v2002 = vunpack.c.h.b16 %v1213
    %v2003 = vunpack.c.l.b16 %v1214
    %v2004 = vunpack.c.h.b16 %v1214
    %v2005 = vunpack.c.l.b16 %v1215
    %v2006 = vunpack.c.h.b16 %v1215
    %v2007 = vunpack.c.l.b16 %v1216
    %v2008 = vunpack.c.h.b16 %v1216
    %v2009 = vunpack.c.l.b16 %v1217
    %v2010 = vunpack.c.h.b16 %v1217
    %v2011 = vunpack.c.l.b16 %v1218
    %v2012 = vunpack.c.h.b16 %v1218
    %v2013 = vunpack.c.l.b16 %v1219
    %v2014 = vunpack.c.h.b16 %v1219
    %v2015 = vunpack.c.l.b16 %v1220
    %v2016 = vunpack.c.h.b16 %v1220
    %v2017 = vunpack.c.l.b16 %v1221
    %v2018 = vunpack.c.h.b16 %v1221
    %v2019 = vunpack.c.l.b16 %v1222
    %v2020 = vunpack.c.h.b16 %v1222
    %v2021 = vunpack.c.l.b16 %v1223
    %v2022 = vunpack.c.h.b16 %v1223
    %v2023 = vunpack.c.l.b16 %v1224
    %v2024 = vunpack.c.h.b16 %v1224
    %v2025 = vunpack.c.l.b16 %v1225
    %v2026 = vunpack.c.h.b16 %v1225
    %v2027 = vunpack.c.l.b16 %v1226
    %v2028 = vunpack.c.h.b16 %v1226
    %v2029 = vunpack.c.l.b16 %v1227
    %v2030 = vunpack.c.h.b16 %v1227
    %v2031 = vunpack.c.l.b16 %v1228
    %v2032 = vunpack.c.h.b16 %v1228
    %v2033 = vunpack.c.l.b16 %v1229
    %v2034 = vunpack.c.h.b16 %v1229
    %v2035 = vunpack.c.l.b16 %v1230
    %v2036 = vunpack.c.h.b16 %v1230
    %v2037 = vunpack.c.l.b16 %v1231
    %v2038 = vunpack.c.h.b16 %v1231
    %v2039 = vunpack.c.l.b16 %v1232
    %v2040 = vunpack.c.h.b16 %v1232
    %v2041 = vunpack.c.l.b16 %v1233
    %v2042 = vunpack.c.h.b16 %v1233
    %v2043 = vunpack.c.l.b16 %v1234
    %v2044 = vunpack.c.h.b16 %v1234
    %v2045 = vpack.c.b16 %v1541, %v1533
    %v2046 = vpack.c.b16 %v1542, %v1534
    %v2047 = vpack.c.b16 %v1543, %v1535
    %v2048 = vpack.c.b16 %v1544, %v1536
    %v2049 = vpack.c.b16 %v1545, %v1537
    %v2050 = vpack.c.b16 %v1546, %v1538
    %v2051 = vpack.c.b16 %v1547, %v1539
    %v2052 = vpack.c.b16 %v1548, %v1540
    %v2053 = vpack.c.b16 %v1557, %v1549
    %v2054 = vpack.c.b16 %v1558, %v1550
    %v2055 = vpack.c.b16 %v1559, %v1551
    %v2056 = vpack.c.b16 %v1560, %v1552
    %v2057 = vpack.c.b16 %v1561, %v1553
    %v2058 = vpack.c.b16 %v1562, %v1554
    %v2059 = vpack.c.b16 %v1563, %v1555
    %v2060 = vpack.c.b16 %v1564, %v1556
    %v2061 = vpack.c.b16 %v1573, %v1565
    %v2062 = vpack.c.b16 %v1574, %v1566
    %v2063 = vpack.c.b16 %v1575, %v1567
    %v2064 = vpack.c.b16 %v1576, %v1568
    %v2065 = vpack.c.b16 %v1577, %v1569
    %v2066 = vpack.c.b16 %v1578, %v1570
    %v2067 = vpack.c.b16 %v1579, %v1571
    %v2068 = vpack.c.b16 %v1580, %v1572
    %v2069 = vpack.c.b16 %v1589, %v1581
    %v2070 = vpack.c.b16 %v1590, %v1582
    %v2071 = vpack.c.b16 %v1591, %v1583
    %v2072 = vpack.c.b16 %v1592, %v1584
    %v2073 = vpack.c.b16 %v1593, %v1585
    %v2074 = vpack.c.b16 %v1594, %v1586
    %v2075 = vpack.c.b16 %v1595, %v1587
    %v2076 = vpack.c.b16 %v1596, %v1588
    %v2077 = vpack.c.b16 %v1605, %v1597
    %v2078 = vpack.c.b16 %v1606, %v1598
    %v2079 = vpack.c.b16 %v1607, %v1599
    %v2080 = vpack.c.b16 %v1608, %v1600
    %v2081 = vpack.c.b16 %v1609, %v1601
    %v2082 = vpack.c.b16 %v1610, %v1602
    %v2083 = vpack.c.b16 %v1611, %v1603
    %v2084 = vpack.c.b16 %v1612, %v1604
    %v2085 = vpack.c.b16 %v1621, %v1613
    %v2086 = vpack.c.b16 %v1622, %v1614
    %v2087 = vpack.c.b16 %v1623, %v1615
    %v2088 = vpack.c.b16 %v1624, %v1616
    %v2089 = vpack.c.b16 %v1625, %v1617
    %v2090 = vpack.c.b16 %v1626, %v1618
    %v2091 = vpack.c.b16 %v1627, %v1619
    %v2092 = vpack.c.b16 %v1628, %v1620
    %v2093 = vpack.c.b16 %v1637, %v1629
    %v2094 = vpack.c.b16 %v1638, %v1630
    %v2095 = vpack.c.b16 %v1639, %v1631
    %v2096 = vpack.c.b16 %v1640, %v1632
    %v2097 = vpack.c.b16 %v1641, %v1633
    %v2098 = vpack.c.b16 %v1642, %v1634
    %v2099 = vpack.c.b16 %v1643, %v1635
    %v2100 = vpack.c.b16 %v1644, %v1636
    %v2101 = vpack.c.b16 %v1653, %v1645
    %v2102 = vpack.c.b16 %v1654, %v1646
    %v2103 = vpack.c.b16 %v1655, %v1647
    %v2104 = vpack.c.b16 %v1656, %v1648
    %v2105 = vpack.c.b16 %v1657, %v1649
    %v2106 = vpack.c.b16 %v1658, %v1650
    %v2107 = vpack.c.b16 %v1659, %v1651
    %v2108 = vpack.c.b16 %v1660, %v1652
    %v2109 = vpack.c.b16 %v1669, %v1661
    %v2110 = vpack.c.b16 %v1670, %v1662
    %v2111 = vpack.c.b16 %v1671, %v1663
    %v2112 = vpack.c.b16 %v1672, %v1664
    %v2113 = vpack.c.b16 %v1673, %v1665
    %v2114 = vpack.c.b16 %v1674, %v1666
    %v2115 = vpack.c.b16 %v1675, %v1667
    %v2116 = vpack.c.b16 %v1676, %v1668
    %v2117 = vpack.c.b16 %v1685, %v1677
    %v2118 = vpack.c.b16 %v1686, %v1678
    %v2119 = vpack.c.b16 %v1687, %v1679
    %v2120 = vpack.c.b16 %v1688, %v1680
    %v2121 = vpack.c.b16 %v1689, %v1681
    %v2122 = vpack.c.b16 %v1690, %v1682
    %v2123 = vpack.c.b16 %v1691, %v1683
    %v2124 = vpack.c.b16 %v1692, %v1684
    %v2125 = vpack.c.b16 %v1701, %v1693
    %v2126 = vpack.c.b16 %v1702, %v1694
    %v2127 = vpack.c.b16 %v1703, %v1695
    %v2128 = vpack.c.b16 %v1704, %v1696
    %v2129 = vpack.c.b16 %v1705, %v1697
    %v2130 = vpack.c.b16 %v1706, %v1698
    %v2131 = vpack.c.b16 %v1707, %v1699
    %v2132 = vpack.c.b16 %v1708, %v1700
    %v2133 = vpack.c.b16 %v1717, %v1709
    %v2134 = vpack.c.b16 %v1718, %v1710
    %v2135 = vpack.c.b16 %v1719, %v1711
    %v2136 = vpack.c.b16 %v1720, %v1712
    %v2137 = vpack.c.b16 %v1721, %v1713
    %v2138 = vpack.c.b16 %v1722, %v1714
    %v2139 = vpack.c.b16 %v1723, %v1715
    %v2140 = vpack.c.b16 %v1724, %v1716
    %v2141 = vpack.c.b16 %v1733, %v1725
    %v2142 = vpack.c.b16 %v1734, %v1726
    %v2143 = vpack.c.b16 %v1735, %v1727
    %v2144 = vpack.c.b16 %v1736, %v1728
    %v2145 = vpack.c.b16 %v1737, %v1729
    %v2146 = vpack.c.b16 %v1738, %v1730
    %v2147 = vpack.c.b16 %v1739, %v1731
    %v2148 = vpack.c.b16 %v1740, %v1732
    %v2149 = vpack.c.b16 %v1749, %v1741
    %v2150 = vpack.c.b16 %v1750, %v1742
    %v2151 = vpack.c.b16 %v1751, %v1743
    %v2152 = vpack.c.b16 %v1752, %v1744
    %v2153 = vpack.c.b16 %v1753, %v1745
    %v2154 = vpack.c.b16 %v1754, %v1746
    %v2155 = vpack.c.b16 %v1755, %v1747
    %v2156 = vpack.c.b16 %v1756, %v1748
    %v2157 = vpack.c.b16 %v1765, %v1757
    %v2158 = vpack.c.b16 %v1766, %v1758
    %v2159 = vpack.c.b16 %v1767, %v1759
    %v2160 = vpack.c.b16 %v1768, %v1760
    %v2161 = vpack.c.b16 %v1769, %v1761
    %v2162 = vpack.c.b16 %v1770, %v1762
    %v2163 = vpack.c.b16 %v1771, %v1763
    %v2164 = vpack.c.b16 %v1772, %v1764
    %v2165 = vpack.c.b16 %v1781, %v1773
    %v2166 = vpack.c.b16 %v1782, %v1774
    %v2167 = vpack.c.b16 %v1783, %v1775
    %v2168 = vpack.c.b16 %v1784, %v1776
    %v2169 = vpack.c.b16 %v1785, %v1777
    %v2170 = vpack.c.b16 %v1786, %v1778
    %v2171 = vpack.c.b16 %v1787, %v1779
    %v2172 = vpack.c.b16 %v1788, %v1780
    %v2173 = vpack.c.b16 %v1797, %v1789
    %v2174 = vpack.c.b16 %v1798, %v1790
    %v2175 = vpack.c.b16 %v1799, %v1791
    %v2176 = vpack.c.b16 %v1800, %v1792
    %v2177 = vpack.c.b16 %v1801, %v1793
    %v2178 = vpack.c.b16 %v1802, %v1794
    %v2179 = vpack.c.b16 %v1803, %v1795
    %v2180 = vpack.c.b16 %v1804, %v1796
    %v2181 = vpack.c.b16 %v1813, %v1805
    %v2182 = vpack.c.b16 %v1814, %v1806
    %v2183 = vpack.c.b16 %v1815, %v1807
    %v2184 = vpack.c.b16 %v1816, %v1808
    %v2185 = vpack.c.b16 %v1817, %v1809
    %v2186 = vpack.c.b16 %v1818, %v1810
    %v2187 = vpack.c.b16 %v1819, %v1811
    %v2188 = vpack.c.b16 %v1820, %v1812
    %v2189 = vpack.c.b16 %v1829, %v1821
    %v2190 = vpack.c.b16 %v1830, %v1822
    %v2191 = vpack.c.b16 %v1831, %v1823
    %v2192 = vpack.c.b16 %v1832, %v1824
    %v2193 = vpack.c.b16 %v1833, %v1825
    %v2194 = vpack.c.b16 %v1834, %v1826
    %v2195 = vpack.c.b16 %v1835, %v1827
    %v2196 = vpack.c.b16 %v1836, %v1828
    %v2197 = vpack.c.b16 %v1845, %v1837
    %v2198 = vpack.c.b16 %v1846, %v1838
    %v2199 = vpack.c.b16 %v1847, %v1839
    %v2200 = vpack.c.b16 %v1848, %v1840
    %v2201 = vpack.c.b16 %v1849, %v1841
    %v2202 = vpack.c.b16 %v1850, %v1842
    %v2203 = vpack.c.b16 %v1851, %v1843
    %v2204 = vpack.c.b16 %v1852, %v1844
    %v2205 = vpack.c.b16 %v1861, %v1853
    %v2206 = vpack.c.b16 %v1862, %v1854
    %v2207 = vpack.c.b16 %v1863, %v1855
    %v2208 = vpack.c.b16 %v1864, %v1856
    %v2209 = vpack.c.b16 %v1865, %v1857
    %v2210 = vpack.c.b16 %v1866, %v1858
    %v2211 = vpack.c.b16 %v1867, %v1859
    %v2212 = vpack.c.b16 %v1868, %v1860
    %v2213 = vpack.c.b16 %v1877, %v1869
    %v2214 = vpack.c.b16 %v1878, %v1870
    %v2215 = vpack.c.b16 %v1879, %v1871
    %v2216 = vpack.c.b16 %v1880, %v1872
    %v2217 = vpack.c.b16 %v1881, %v1873
    %v2218 = vpack.c.b16 %v1882, %v1874
    %v2219 = vpack.c.b16 %v1883, %v1875
    %v2220 = vpack.c.b16 %v1884, %v1876
    %v2221 = vpack.c.b16 %v1893, %v1885
    %v2222 = vpack.c.b16 %v1894, %v1886
    %v2223 = vpack.c.b16 %v1895, %v1887
    %v2224 = vpack.c.b16 %v1896, %v1888
    %v2225 = vpack.c.b16 %v1897, %v1889
    %v2226 = vpack.c.b16 %v1898, %v1890
    %v2227 = vpack.c.b16 %v1899, %v1891
    %v2228 = vpack.c.b16 %v1900, %v1892
    %v2229 = vpack.c.b16 %v1909, %v1901
    %v2230 = vpack.c.b16 %v1910, %v1902
    %v2231 = vpack.c.b16 %v1911, %v1903
    %v2232 = vpack.c.b16 %v1912, %v1904
    %v2233 = vpack.c.b16 %v1913, %v1905
    %v2234 = vpack.c.b16 %v1914, %v1906
    %v2235 = vpack.c.b16 %v1915, %v1907
    %v2236 = vpack.c.b16 %v1916, %v1908
    %v2237 = vpack.c.b16 %v1925, %v1917
    %v2238 = vpack.c.b16 %v1926, %v1918
    %v2239 = vpack.c.b16 %v1927, %v1919
    %v2240 = vpack.c.b16 %v1928, %v1920
    %v2241 = vpack.c.b16 %v1929, %v1921
    %v2242 = vpack.c.b16 %v1930, %v1922
    %v2243 = vpack.c.b16 %v1931, %v1923
    %v2244 = vpack.c.b16 %v1932, %v1924
    %v2245 = vpack.c.b16 %v1941, %v1933
    %v2246 = vpack.c.b16 %v1942, %v1934
    %v2247 = vpack.c.b16 %v1943, %v1935
    %v2248 = vpack.c.b16 %v1944, %v1936
    %v2249 = vpack.c.b16 %v1945, %v1937
    %v2250 = vpack.c.b16 %v1946, %v1938
    %v2251 = vpack.c.b16 %v1947, %v1939
    %v2252 = vpack.c.b16 %v1948, %v1940
    %v2253 = vpack.c.b16 %v1957, %v1949
    %v2254 = vpack.c.b16 %v1958, %v1950
    %v2255 = vpack.c.b16 %v1959, %v1951
    %v2256 = vpack.c.b16 %v1960, %v1952
    %v2257 = vpack.c.b16 %v1961, %v1953
    %v2258 = vpack.c.b16 %v1962, %v1954
    %v2259 = vpack.c.b16 %v1963, %v1955
    %v2260 = vpack.c.b16 %v1964, %v1956
    %v2261 = vpack.c.b16 %v1973, %v1965
    %v2262 = vpack.c.b16 %v1974, %v1966
    %v2263 = vpack.c.b16 %v1975, %v1967
    %v2264 = vpack.c.b16 %v1976, %v1968
    %v2265 = vpack.c.b16 %v1977, %v1969
    %v2266 = vpack.c.b16 %v1978, %v1970
    %v2267 = vpack.c.b16 %v1979, %v1971
    %v2268 = vpack.c.b16 %v1980, %v1972
    %v2269 = vpack.c.b16 %v1989, %v1981
    %v2270 = vpack.c.b16 %v1990, %v1982
    %v2271 = vpack.c.b16 %v1991, %v1983
    %v2272 = vpack.c.b16 %v1992, %v1984
    %v2273 = vpack.c.b16 %v1993, %v1985
    %v2274 = vpack.c.b16 %v1994, %v1986
    %v2275 = vpack.c.b16 %v1995, %v1987
    %v2276 = vpack.c.b16 %v1996, %v1988
    %v2277 = vpack.c.b16 %v2005, %v1997
    %v2278 = vpack.c.b16 %v2006, %v1998
    %v2279 = vpack.c.b16 %v2007, %v1999
    %v2280 = vpack.c.b16 %v2008, %v2000
    %v2281 = vpack.c.b16 %v2009, %v2001
    %v2282 = vpack.c.b16 %v2010, %v2002
    %v2283 = vpack.c.b16 %v2011, %v2003
    %v2284 = vpack.c.b16 %v2012, %v2004
    %v2285 = vpack.c.b16 %v2021, %v2013
    %v2286 = vpack.c.b16 %v2022, %v2014
    %v2287 = vpack.c.b16 %v2023, %v2015
    %v2288 = vpack.c.b16 %v2024, %v2016
    %v2289 = vpack.c.b16 %v2025, %v2017
    %v2290 = vpack.c.b16 %v2026, %v2018
    %v2291 = vpack.c.b16 %v2027, %v2019
    %v2292 = vpack.c.b16 %v2028, %v2020
    %v2293 = vpack.c.b16 %v2037, %v2029
    %v2294 = vpack.c.b16 %v2038, %v2030
    %v2295 = vpack.c.b16 %v2039, %v2031
    %v2296 = vpack.c.b16 %v2040, %v2032
    %v2297 = vpack.c.b16 %v2041, %v2033
    %v2298 = vpack.c.b16 %v2042, %v2034
    %v2299 = vpack.c.b16 %v2043, %v2035
    %v2300 = vpack.c.b16 %v2044, %v2036
    %2557 = vmatprep.subr.bf16.mxu0 %v2046
    %2558 = vmatpush1.bf16.msra.mxu0 %v2045
    %2559 = vmatprep.subr.bf16.mxu0 %v2054
    %2560 = vmatpush1.bf16.msra.mxu0 %v2053
    %2561 = vmatprep.subr.bf16.mxu0 %v2062
    %2562 = vmatpush1.bf16.msra.mxu0 %v2061
    %2563 = vmatprep.subr.bf16.mxu0 %v2070
    %2564 = vmatpush1.bf16.msra.mxu0 %v2069
    %2565 = vmatprep.subr.bf16.mxu0 %v2078
    %2566 = vmatpush1.bf16.msra.mxu0 %v2077
    %2567 = vmatprep.subr.bf16.mxu0 %v2086
    %2568 = vmatpush1.bf16.msra.mxu0 %v2085
    %2569 = vmatprep.subr.bf16.mxu0 %v2094
    %2570 = vmatpush1.bf16.msra.mxu0 %v2093
    %2571 = vmatprep.subr.bf16.mxu0 %v2102
    %2572 = vmatpush1.bf16.msra.mxu0 %v2101
    %2573 = vmatprep.subr.bf16.mxu0 %v2110
    %2574 = vmatpush1.bf16.msra.mxu0 %v2109
    %2575 = vmatprep.subr.bf16.mxu0 %v2118
    %2576 = vmatpush1.bf16.msra.mxu0 %v2117
    %2577 = vmatprep.subr.bf16.mxu0 %v2126
    %2578 = vmatpush1.bf16.msra.mxu0 %v2125
    %2579 = vmatprep.subr.bf16.mxu0 %v2134
    %2580 = vmatpush1.bf16.msra.mxu0 %v2133
    %2581 = vmatprep.subr.bf16.mxu0 %v2142
    %2582 = vmatpush1.bf16.msra.mxu0 %v2141
    %2583 = vmatprep.subr.bf16.mxu0 %v2150
    %2584 = vmatpush1.bf16.msra.mxu0 %v2149
    %2585 = vmatprep.subr.bf16.mxu0 %v2158
    %2586 = vmatpush1.bf16.msra.mxu0 %v2157
    %2587 = vmatprep.subr.bf16.mxu0 %v2166
    %2588 = vmatpush1.bf16.msra.mxu0 %v2165
    %2589 = vmatprep.mubr.bf16.mxu0 %v976
    %2590 = vmatmul.mubr.bf16.gmra.mrb[0].mxu0 %v975
    %v2591 = vpop.f32.mrb[0].mxu0
    %v2592 = vadd.f32 %v1240, %v2591
    %v2593 = vpop.f32.mrb[0].mxu0
    %v2594 = vadd.f32 %v1244, %v2593
    %v2595 = vpop.f32.mrb[0].mxu0
    %v2596 = vadd.f32 %v1240, %v2595
    %v2597 = vpop.f32.mrb[0].mxu0
    %v2598 = vadd.f32 %v1244, %v2597
    %2599 = vdwg.mxu0
    %2600 = vmatprep.subr.bf16.mxu0 %v2174
    %2601 = vmatpush1.bf16.msra.mxu0 %v2173
    %2602 = vmatprep.subr.bf16.mxu0 %v2182
    %2603 = vmatpush1.bf16.msra.mxu0 %v2181
    %2604 = vmatprep.subr.bf16.mxu0 %v2190
    %2605 = vmatpush1.bf16.msra.mxu0 %v2189
    %2606 = vmatprep.subr.bf16.mxu0 %v2198
    %2607 = vmatpush1.bf16.msra.mxu0 %v2197
    %2608 = vmatprep.subr.bf16.mxu0 %v2206
    %2609 = vmatpush1.bf16.msra.mxu0 %v2205
    %2610 = vmatprep.subr.bf16.mxu0 %v2214
    %2611 = vmatpush1.bf16.msra.mxu0 %v2213
    %2612 = vmatprep.subr.bf16.mxu0 %v2222
    %2613 = vmatpush1.bf16.msra.mxu0 %v2221
    %2614 = vmatprep.subr.bf16.mxu0 %v2230
    %2615 = vmatpush1.bf16.msra.mxu0 %v2229
    %2616 = vmatprep.subr.bf16.mxu0 %v2238
    %2617 = vmatpush1.bf16.msra.mxu0 %v2237
    %2618 = vmatprep.subr.bf16.mxu0 %v2246
    %2619 = vmatpush1.bf16.msra.mxu0 %v2245
    %2620 = vmatprep.subr.bf16.mxu0 %v2254
    %2621 = vmatpush1.bf16.msra.mxu0 %v2253
    %2622 = vmatprep.subr.bf16.mxu0 %v2262
    %2623 = vmatpush1.bf16.msra.mxu0 %v2261
    %2624 = vmatprep.subr.bf16.mxu0 %v2270
    %2625 = vmatpush1.bf16.msra.mxu0 %v2269
    %2626 = vmatprep.subr.bf16.mxu0 %v2278
    %2627 = vmatpush1.bf16.msra.mxu0 %v2277
    %2628 = vmatprep.subr.bf16.mxu0 %v2286
    %2629 = vmatpush1.bf16.msra.mxu0 %v2285
    %2630 = vmatprep.subr.bf16.mxu0 %v2294
    %2631 = vmatpush1.bf16.msra.mxu0 %v2293
    %2632 = vmatprep.mubr.bf16.mxu0 %v978
    %2633 = vmatmul.mubr.bf16.gmra.mrb[0].mxu0 %v977
    %v2634 = vpop.f32.mrb[0].mxu0
    %v2635 = vadd.f32 %v2592, %v2634
    %v2636 = vpop.f32.mrb[0].mxu0
    %v2637 = vadd.f32 %v2594, %v2636
    %v2638 = vpop.f32.mrb[0].mxu0
    %v2639 = vadd.f32 %v2596, %v2638
    %v2640 = vpop.f32.mrb[0].mxu0
    %v2641 = vadd.f32 %v2598, %v2640
    %2642 = vdwg.mxu0
    %2643 = vmatprep.subr.bf16.mxu0 %v2048
    %2644 = vmatpush1.bf16.msra.mxu0 %v2047
    %2645 = vmatprep.subr.bf16.mxu0 %v2056
    %2646 = vmatpush1.bf16.msra.mxu0 %v2055
    %2647 = vmatprep.subr.bf16.mxu0 %v2064
    %2648 = vmatpush1.bf16.msra.mxu0 %v2063
    %2649 = vmatprep.subr.bf16.mxu0 %v2072
    %2650 = vmatpush1.bf16.msra.mxu0 %v2071
    %2651 = vmatprep.subr.bf16.mxu0 %v2080
    %2652 = vmatpush1.bf16.msra.mxu0 %v2079
    %2653 = vmatprep.subr.bf16.mxu0 %v2088
    %2654 = vmatpush1.bf16.msra.mxu0 %v2087
    %2655 = vmatprep.subr.bf16.mxu0 %v2096
    %2656 = vmatpush1.bf16.msra.mxu0 %v2095
    %2657 = vmatprep.subr.bf16.mxu0 %v2104
    %2658 = vmatpush1.bf16.msra.mxu0 %v2103
    %2659 = vmatprep.subr.bf16.mxu0 %v2112
    %2660 = vmatpush1.bf16.msra.mxu0 %v2111
    %2661 = vmatprep.subr.bf16.mxu0 %v2120
    %2662 = vmatpush1.bf16.msra.mxu0 %v2119
    %2663 = vmatprep.subr.bf16.mxu0 %v2128
    %2664 = vmatpush1.bf16.msra.mxu0 %v2127
    %2665 = vmatprep.subr.bf16.mxu0 %v2136
    %2666 = vmatpush1.bf16.msra.mxu0 %v2135
    %2667 = vmatprep.subr.bf16.mxu0 %v2144
    %2668 = vmatpush1.bf16.msra.mxu0 %v2143
    %2669 = vmatprep.subr.bf16.mxu0 %v2152
    %2670 = vmatpush1.bf16.msra.mxu0 %v2151
    %2671 = vmatprep.subr.bf16.mxu0 %v2160
    %2672 = vmatpush1.bf16.msra.mxu0 %v2159
    %2673 = vmatprep.subr.bf16.mxu0 %v2168
    %2674 = vmatpush1.bf16.msra.mxu0 %v2167
    %2675 = vmatprep.mubr.bf16.mxu0 %v976
    %2676 = vmatmul.mubr.bf16.gmra.mrb[0].mxu0 %v975
    %v2677 = vpop.f32.mrb[0].mxu0
    %v2678 = vadd.f32 %v1248, %v2677
    %v2679 = vpop.f32.mrb[0].mxu0
    %v2680 = vadd.f32 %v1252, %v2679
    %v2681 = vpop.f32.mrb[0].mxu0
    %v2682 = vadd.f32 %v1248, %v2681
    %v2683 = vpop.f32.mrb[0].mxu0
    %v2684 = vadd.f32 %v1252, %v2683
    %2685 = vdwg.mxu0
    %2686 = vmatprep.subr.bf16.mxu0 %v2176
    %2687 = vmatpush1.bf16.msra.mxu0 %v2175
    %2688 = vmatprep.subr.bf16.mxu0 %v2184
    %2689 = vmatpush1.bf16.msra.mxu0 %v2183
    %2690 = vmatprep.subr.bf16.mxu0 %v2192
    %2691 = vmatpush1.bf16.msra.mxu0 %v2191
    %2692 = vmatprep.subr.bf16.mxu0 %v2200
    %2693 = vmatpush1.bf16.msra.mxu0 %v2199
    %2694 = vmatprep.subr.bf16.mxu0 %v2208
    %2695 = vmatpush1.bf16.msra.mxu0 %v2207
    %2696 = vmatprep.subr.bf16.mxu0 %v2216
    %2697 = vmatpush1.bf16.msra.mxu0 %v2215
    %2698 = vmatprep.subr.bf16.mxu0 %v2224
    %2699 = vmatpush1.bf16.msra.mxu0 %v2223
    %2700 = vmatprep.subr.bf16.mxu0 %v2232
    %2701 = vmatpush1.bf16.msra.mxu0 %v2231
    %2702 = vmatprep.subr.bf16.mxu0 %v2240
    %2703 = vmatpush1.bf16.msra.mxu0 %v2239
    %2704 = vmatprep.subr.bf16.mxu0 %v2248
    %2705 = vmatpush1.bf16.msra.mxu0 %v2247
    %2706 = vmatprep.subr.bf16.mxu0 %v2256
    %2707 = vmatpush1.bf16.msra.mxu0 %v2255
    %2708 = vmatprep.subr.bf16.mxu0 %v2264
    %2709 = vmatpush1.bf16.msra.mxu0 %v2263
    %2710 = vmatprep.subr.bf16.mxu0 %v2272
    %2711 = vmatpush1.bf16.msra.mxu0 %v2271
    %2712 = vmatprep.subr.bf16.mxu0 %v2280
    %2713 = vmatpush1.bf16.msra.mxu0 %v2279
    %2714 = vmatprep.subr.bf16.mxu0 %v2288
    %2715 = vmatpush1.bf16.msra.mxu0 %v2287
    %2716 = vmatprep.subr.bf16.mxu0 %v2296
    %2717 = vmatpush1.bf16.msra.mxu0 %v2295
    %2718 = vmatprep.mubr.bf16.mxu0 %v978
    %2719 = vmatmul.mubr.bf16.gmra.mrb[0].mxu0 %v977
    %v2720 = vpop.f32.mrb[0].mxu0
    %v2721 = vadd.f32 %v2678, %v2720
    %v2722 = vpop.f32.mrb[0].mxu0
    %v2723 = vadd.f32 %v2680, %v2722
    %v2724 = vpop.f32.mrb[0].mxu0
    %v2725 = vadd.f32 %v2682, %v2724
    %v2726 = vpop.f32.mrb[0].mxu0
    %v2727 = vadd.f32 %v2684, %v2726
    %2728 = vdwg.mxu0
    %2729 = vmatprep.subr.bf16.mxu0 %v2050
    %2730 = vmatpush1.bf16.msra.mxu0 %v2049
    %2731 = vmatprep.subr.bf16.mxu0 %v2058
    %2732 = vmatpush1.bf16.msra.mxu0 %v2057
    %2733 = vmatprep.subr.bf16.mxu0 %v2066
    %2734 = vmatpush1.bf16.msra.mxu0 %v2065
    %2735 = vmatprep.subr.bf16.mxu0 %v2074
    %2736 = vmatpush1.bf16.msra.mxu0 %v2073
    %2737 = vmatprep.subr.bf16.mxu0 %v2082
    %2738 = vmatpush1.bf16.msra.mxu0 %v2081
    %2739 = vmatprep.subr.bf16.mxu0 %v2090
    %2740 = vmatpush1.bf16.msra.mxu0 %v2089
    %2741 = vmatprep.subr.bf16.mxu0 %v2098
    %2742 = vmatpush1.bf16.msra.mxu0 %v2097
    %2743 = vmatprep.subr.bf16.mxu0 %v2106
    %2744 = vmatpush1.bf16.msra.mxu0 %v2105
    %2745 = vmatprep.subr.bf16.mxu0 %v2114
    %2746 = vmatpush1.bf16.msra.mxu0 %v2113
    %2747 = vmatprep.subr.bf16.mxu0 %v2122
    %2748 = vmatpush1.bf16.msra.mxu0 %v2121
    %2749 = vmatprep.subr.bf16.mxu0 %v2130
    %2750 = vmatpush1.bf16.msra.mxu0 %v2129
    %2751 = vmatprep.subr.bf16.mxu0 %v2138
    %2752 = vmatpush1.bf16.msra.mxu0 %v2137
    %2753 = vmatprep.subr.bf16.mxu0 %v2146
    %2754 = vmatpush1.bf16.msra.mxu0 %v2145
    %2755 = vmatprep.subr.bf16.mxu0 %v2154
    %2756 = vmatpush1.bf16.msra.mxu0 %v2153
    %2757 = vmatprep.subr.bf16.mxu0 %v2162
    %2758 = vmatpush1.bf16.msra.mxu0 %v2161
    %2759 = vmatprep.subr.bf16.mxu0 %v2170
    %2760 = vmatpush1.bf16.msra.mxu0 %v2169
    %2761 = vmatprep.mubr.bf16.mxu0 %v976
    %2762 = vmatmul.mubr.bf16.gmra.mrb[0].mxu0 %v975
    %v2763 = vpop.f32.mrb[0].mxu0
    %v2764 = vadd.f32 %v1256, %v2763
    %v2765 = vpop.f32.mrb[0].mxu0
    %v2766 = vadd.f32 %v1260, %v2765
    %v2767 = vpop.f32.mrb[0].mxu0
    %v2768 = vadd.f32 %v1256, %v2767
    %v2769 = vpop.f32.mrb[0].mxu0
    %v2770 = vadd.f32 %v1260, %v2769
    %2771 = vdwg.mxu0
    %2772 = vmatprep.subr.bf16.mxu0 %v2178
    %2773 = vmatpush1.bf16.msra.mxu0 %v2177
    %2774 = vmatprep.subr.bf16.mxu0 %v2186
    %2775 = vmatpush1.bf16.msra.mxu0 %v2185
    %2776 = vmatprep.subr.bf16.mxu0 %v2194
    %2777 = vmatpush1.bf16.msra.mxu0 %v2193
    %2778 = vmatprep.subr.bf16.mxu0 %v2202
    %2779 = vmatpush1.bf16.msra.mxu0 %v2201
    %2780 = vmatprep.subr.bf16.mxu0 %v2210
    %2781 = vmatpush1.bf16.msra.mxu0 %v2209
    %2782 = vmatprep.subr.bf16.mxu0 %v2218
    %2783 = vmatpush1.bf16.msra.mxu0 %v2217
    %2784 = vmatprep.subr.bf16.mxu0 %v2226
    %2785 = vmatpush1.bf16.msra.mxu0 %v2225
    %2786 = vmatprep.subr.bf16.mxu0 %v2234
    %2787 = vmatpush1.bf16.msra.mxu0 %v2233
    %2788 = vmatprep.subr.bf16.mxu0 %v2242
    %2789 = vmatpush1.bf16.msra.mxu0 %v2241
    %2790 = vmatprep.subr.bf16.mxu0 %v2250
    %2791 = vmatpush1.bf16.msra.mxu0 %v2249
    %2792 = vmatprep.subr.bf16.mxu0 %v2258
    %2793 = vmatpush1.bf16.msra.mxu0 %v2257
    %2794 = vmatprep.subr.bf16.mxu0 %v2266
    %2795 = vmatpush1.bf16.msra.mxu0 %v2265
    %2796 = vmatprep.subr.bf16.mxu0 %v2274
    %2797 = vmatpush1.bf16.msra.mxu0 %v2273
    %2798 = vmatprep.subr.bf16.mxu0 %v2282
    %2799 = vmatpush1.bf16.msra.mxu0 %v2281
    %2800 = vmatprep.subr.bf16.mxu0 %v2290
    %2801 = vmatpush1.bf16.msra.mxu0 %v2289
    %2802 = vmatprep.subr.bf16.mxu0 %v2298
    %2803 = vmatpush1.bf16.msra.mxu0 %v2297
    %2804 = vmatprep.mubr.bf16.mxu0 %v978
    %2805 = vmatmul.mubr.bf16.gmra.mrb[0].mxu0 %v977
    %v2806 = vpop.f32.mrb[0].mxu0
    %v2807 = vadd.f32 %v2764, %v2806
    %v2808 = vpop.f32.mrb[0].mxu0
    %v2809 = vadd.f32 %v2766, %v2808
    %v2810 = vpop.f32.mrb[0].mxu0
    %v2811 = vadd.f32 %v2768, %v2810
    %v2812 = vpop.f32.mrb[0].mxu0
    %v2813 = vadd.f32 %v2770, %v2812
    %2814 = vdwg.mxu0
    %2815 = vmatprep.subr.bf16.mxu0 %v2052
    %2816 = vmatpush1.bf16.msra.mxu0 %v2051
    %2817 = vmatprep.subr.bf16.mxu0 %v2060
    %2818 = vmatpush1.bf16.msra.mxu0 %v2059
    %2819 = vmatprep.subr.bf16.mxu0 %v2068
    %2820 = vmatpush1.bf16.msra.mxu0 %v2067
    %2821 = vmatprep.subr.bf16.mxu0 %v2076
    %2822 = vmatpush1.bf16.msra.mxu0 %v2075
    %2823 = vmatprep.subr.bf16.mxu0 %v2084
    %2824 = vmatpush1.bf16.msra.mxu0 %v2083
    %2825 = vmatprep.subr.bf16.mxu0 %v2092
    %2826 = vmatpush1.bf16.msra.mxu0 %v2091
    %2827 = vmatprep.subr.bf16.mxu0 %v2100
    %2828 = vmatpush1.bf16.msra.mxu0 %v2099
    %2829 = vmatprep.subr.bf16.mxu0 %v2108
    %2830 = vmatpush1.bf16.msra.mxu0 %v2107
    %2831 = vmatprep.subr.bf16.mxu0 %v2116
    %2832 = vmatpush1.bf16.msra.mxu0 %v2115
    %2833 = vmatprep.subr.bf16.mxu0 %v2124
    %2834 = vmatpush1.bf16.msra.mxu0 %v2123
    %2835 = vmatprep.subr.bf16.mxu0 %v2132
    %2836 = vmatpush1.bf16.msra.mxu0 %v2131
    %2837 = vmatprep.subr.bf16.mxu0 %v2140
    %2838 = vmatpush1.bf16.msra.mxu0 %v2139
    %2839 = vmatprep.subr.bf16.mxu0 %v2148
    %2840 = vmatpush1.bf16.msra.mxu0 %v2147
    %2841 = vmatprep.subr.bf16.mxu0 %v2156
    %2842 = vmatpush1.bf16.msra.mxu0 %v2155
    %2843 = vmatprep.subr.bf16.mxu0 %v2164
    %2844 = vmatpush1.bf16.msra.mxu0 %v2163
    %2845 = vmatprep.subr.bf16.mxu0 %v2172
    %2846 = vmatpush1.bf16.msra.mxu0 %v2171
    %2847 = vmatprep.mubr.bf16.mxu0 %v976
    %2848 = vmatmul.mubr.bf16.gmra.mrb[0].mxu0 %v975
    %v2849 = vpop.f32.mrb[0].mxu0
    %v2850 = vadd.f32 %v1264, %v2849
    %v2851 = vpop.f32.mrb[0].mxu0
    %v2852 = vadd.f32 %v1268, %v2851
    %v2853 = vpop.f32.mrb[0].mxu0
    %v2854 = vadd.f32 %v1264, %v2853
    %v2855 = vpop.f32.mrb[0].mxu0
    %v2856 = vadd.f32 %v1268, %v2855
    %2857 = vdwg.mxu0
    %2858 = vmatprep.subr.bf16.mxu0 %v2180
    %2859 = vmatpush1.bf16.msra.mxu0 %v2179
    %2860 = vmatprep.subr.bf16.mxu0 %v2188
    %2861 = vmatpush1.bf16.msra.mxu0 %v2187
    %2862 = vmatprep.subr.bf16.mxu0 %v2196
    %2863 = vmatpush1.bf16.msra.mxu0 %v2195
    %2864 = vmatprep.subr.bf16.mxu0 %v2204
    %2865 = vmatpush1.bf16.msra.mxu0 %v2203
    %2866 = vmatprep.subr.bf16.mxu0 %v2212
    %2867 = vmatpush1.bf16.msra.mxu0 %v2211
    %2868 = vmatprep.subr.bf16.mxu0 %v2220
    %2869 = vmatpush1.bf16.msra.mxu0 %v2219
    %2870 = vmatprep.subr.bf16.mxu0 %v2228
    %2871 = vmatpush1.bf16.msra.mxu0 %v2227
    %2872 = vmatprep.subr.bf16.mxu0 %v2236
    %2873 = vmatpush1.bf16.msra.mxu0 %v2235
    %2874 = vmatprep.subr.bf16.mxu0 %v2244
    %2875 = vmatpush1.bf16.msra.mxu0 %v2243
    %2876 = vmatprep.subr.bf16.mxu0 %v2252
    %2877 = vmatpush1.bf16.msra.mxu0 %v2251
    %2878 = vmatprep.subr.bf16.mxu0 %v2260
    %2879 = vmatpush1.bf16.msra.mxu0 %v2259
    %2880 = vmatprep.subr.bf16.mxu0 %v2268
    %2881 = vmatpush1.bf16.msra.mxu0 %v2267
    %2882 = vmatprep.subr.bf16.mxu0 %v2276
    %2883 = vmatpush1.bf16.msra.mxu0 %v2275
    %2884 = vmatprep.subr.bf16.mxu0 %v2284
    %2885 = vmatpush1.bf16.msra.mxu0 %v2283
    %2886 = vmatprep.subr.bf16.mxu0 %v2292
    %2887 = vmatpush1.bf16.msra.mxu0 %v2291
    %2888 = vmatprep.subr.bf16.mxu0 %v2300
    %2889 = vmatpush1.bf16.msra.mxu0 %v2299
    %2890 = vmatprep.mubr.bf16.mxu0 %v978
    %2891 = vmatmul.mubr.bf16.gmra.mrb[0].mxu0 %v977
    %v2892 = vpop.f32.mrb[0].mxu0
    %v2893 = vadd.f32 %v2850, %v2892
    %v2894 = vpop.f32.mrb[0].mxu0
    %v2895 = vadd.f32 %v2852, %v2894
    %v2896 = vpop.f32.mrb[0].mxu0
    %v2897 = vadd.f32 %v2854, %v2896
    %v2898 = vpop.f32.mrb[0].mxu0
    %v2899 = vadd.f32 %v2856, %v2898
    %2900 = vdwg.mxu0
    %v2901 = vmax.f32 %v2635, 0.0
    %v2902 = vmax.f32 %v2637, 0.0
    %v2903 = vmax.f32 %v2721, 0.0
    %v2904 = vmax.f32 %v2723, 0.0
    %v2905 = vmax.f32 %v2807, 0.0
    %v2906 = vmax.f32 %v2809, 0.0
    %v2907 = vmax.f32 %v2893, 0.0
    %v2908 = vmax.f32 %v2895, 0.0
    %v2909 = vmax.f32 %v2639, 0.0
    %v2910 = vmax.f32 %v2641, 0.0
    %v2911 = vmax.f32 %v2725, 0.0
    %v2912 = vmax.f32 %v2727, 0.0
    %v2913 = vmax.f32 %v2811, 0.0
    %v2914 = vmax.f32 %v2813, 0.0
    %v2915 = vmax.f32 %v2897, 0.0
    %v2916 = vmax.f32 %v2899, 0.0
    %v2917 = vpack.c.bf16 %v2909, %v2901
    %v2918 = vpack.c.bf16 %v2910, %v2902
    %v2919 = vpack.c.bf16 %v2911, %v2903
    %v2920 = vpack.c.bf16 %v2912, %v2904
    %v2921 = vpack.c.bf16 %v2913, %v2905
    %v2922 = vpack.c.bf16 %v2914, %v2906
    %v2923 = vpack.c.bf16 %v2915, %v2907
    %v2924 = vpack.c.bf16 %v2916, %v2908
    %v2925 = vld [vmem:[#allocation14] sm:$0xf]
    %v2926 = vld [vmem:[#allocation14 + $0x4] sm:$0xf]
    %v2927 = vld [vmem:[#allocation14 + $0x8] sm:$0xf]
    %v2928 = vld [vmem:[#allocation14 + $0xc] sm:$0xf]
    %v2929 = vld [vmem:[#allocation14 + $0x10] sm:$0xf]
    %v2930 = vld [vmem:[#allocation14 + $0x14] sm:$0xf]
    %v2931 = vld [vmem:[#allocation14 + $0x18] sm:$0xf]
    %v2932 = vld [vmem:[#allocation14 + $0x1c] sm:$0xf]
    %v2933 = vld [vmem:[#allocation14 + $0x20] sm:$0xf]
    %v2934 = vld [vmem:[#allocation14 + $0x24] sm:$0xf]
    %v2935 = vld [vmem:[#allocation14 + $0x28] sm:$0xf]
    %v2936 = vld [vmem:[#allocation14 + $0x2c] sm:$0xf]
    %v2937 = vld [vmem:[#allocation14 + $0x30] sm:$0xf]
    %v2938 = vld [vmem:[#allocation14 + $0x34] sm:$0xf]
    %v2939 = vld [vmem:[#allocation14 + $0x38] sm:$0xf]
    %v2940 = vld [vmem:[#allocation14 + $0x3c] sm:$0xf]
    %v2941 = vld [vmem:[#allocation14 + $0x40] sm:$0xf]
    %v2942 = vld [vmem:[#allocation14 + $0x44] sm:$0xf]
    %v2943 = vld [vmem:[#allocation14 + $0x48] sm:$0xf]
    %v2944 = vld [vmem:[#allocation14 + $0x4c] sm:$0xf]
    %v2945 = vld [vmem:[#allocation14 + $0x50] sm:$0xf]
    %v2946 = vld [vmem:[#allocation14 + $0x54] sm:$0xf]
    %v2947 = vld [vmem:[#allocation14 + $0x58] sm:$0xf]
    %v2948 = vld [vmem:[#allocation14 + $0x5c] sm:$0xf]
    %v2949 = vld [vmem:[#allocation14 + $0x60] sm:$0xf]
    %v2950 = vld [vmem:[#allocation14 + $0x64] sm:$0xf]
    %v2951 = vld [vmem:[#allocation14 + $0x68] sm:$0xf]
    %v2952 = vld [vmem:[#allocation14 + $0x6c] sm:$0xf]
    %v2953 = vld [vmem:[#allocation14 + $0x70] sm:$0xf]
    %v2954 = vld [vmem:[#allocation14 + $0x74] sm:$0xf]
    %v2955 = vld [vmem:[#allocation14 + $0x78] sm:$0xf]
    %v2956 = vld [vmem:[#allocation14 + $0x7c] sm:$0xf]
    %v2957 = vld [vmem:[#allocation14 + $0x80] sm:$0xf]
    %v2958 = vld [vmem:[#allocation14 + $0x84] sm:$0xf]
    %v2959 = vld [vmem:[#allocation14 + $0x88] sm:$0xf]
    %v2960 = vld [vmem:[#allocation14 + $0x8c] sm:$0xf]
    %v2961 = vld [vmem:[#allocation14 + $0x90] sm:$0xf]
    %v2962 = vld [vmem:[#allocation14 + $0x94] sm:$0xf]
    %v2963 = vld [vmem:[#allocation14 + $0x98] sm:$0xf]
    %v2964 = vld [vmem:[#allocation14 + $0x9c] sm:$0xf]
    %v2965 = vld [vmem:[#allocation14 + $0xa0] sm:$0xf]
    %v2966 = vld [vmem:[#allocation14 + $0xa4] sm:$0xf]
    %v2967 = vld [vmem:[#allocation14 + $0xa8] sm:$0xf]
    %v2968 = vld [vmem:[#allocation14 + $0xac] sm:$0xf]
    %v2969 = vld [vmem:[#allocation14 + $0xb0] sm:$0xf]
    %v2970 = vld [vmem:[#allocation14 + $0xb4] sm:$0xf]
    %v2971 = vld [vmem:[#allocation14 + $0xb8] sm:$0xf]
    %v2972 = vld [vmem:[#allocation14 + $0xbc] sm:$0xf]
    %v2973 = vld [vmem:[#allocation14 + $0xc0] sm:$0xf]
    %v2974 = vld [vmem:[#allocation14 + $0xc4] sm:$0xf]
    %v2975 = vld [vmem:[#allocation14 + $0xc8] sm:$0xf]
    %v2976 = vld [vmem:[#allocation14 + $0xcc] sm:$0xf]
    %v2977 = vld [vmem:[#allocation14 + $0xd0] sm:$0xf]
    %v2978 = vld [vmem:[#allocation14 + $0xd4] sm:$0xf]
    %v2979 = vld [vmem:[#allocation14 + $0xd8] sm:$0xf]
    %v2980 = vld [vmem:[#allocation14 + $0xdc] sm:$0xf]
    %v2981 = vld [vmem:[#allocation14 + $0xe0] sm:$0xf]
    %v2982 = vld [vmem:[#allocation14 + $0xe4] sm:$0xf]
    %v2983 = vld [vmem:[#allocation14 + $0xe8] sm:$0xf]
    %v2984 = vld [vmem:[#allocation14 + $0xec] sm:$0xf]
    %v2985 = vld [vmem:[#allocation14 + $0xf0] sm:$0xf]
    %v2986 = vld [vmem:[#allocation14 + $0xf4] sm:$0xf]
    %v2987 = vld [vmem:[#allocation14 + $0xf8] sm:$0xf]
    %v2988 = vld [vmem:[#allocation14 + $0xfc] sm:$0xf]
    %v2989 = vld [vmem:[#allocation14 + $0x100] sm:$0xf]
    %v2990 = vld [vmem:[#allocation14 + $0x104] sm:$0xf]
    %v2991 = vld [vmem:[#allocation14 + $0x108] sm:$0xf]
    %v2992 = vld [vmem:[#allocation14 + $0x10c] sm:$0xf]
    %v2993 = vld [vmem:[#allocation14 + $0x110] sm:$0xf]
    %v2994 = vld [vmem:[#allocation14 + $0x114] sm:$0xf]
    %v2995 = vld [vmem:[#allocation14 + $0x118] sm:$0xf]
    %v2996 = vld [vmem:[#allocation14 + $0x11c] sm:$0xf]
    %v2997 = vld [vmem:[#allocation14 + $0x120] sm:$0xf]
    %v2998 = vld [vmem:[#allocation14 + $0x124] sm:$0xf]
    %v2999 = vld [vmem:[#allocation14 + $0x128] sm:$0xf]
    %v3000 = vld [vmem:[#allocation14 + $0x12c] sm:$0xf]
    %v3001 = vld [vmem:[#allocation14 + $0x130] sm:$0xf]
    %v3002 = vld [vmem:[#allocation14 + $0x134] sm:$0xf]
    %v3003 = vld [vmem:[#allocation14 + $0x138] sm:$0xf]
    %v3004 = vld [vmem:[#allocation14 + $0x13c] sm:$0xf]
    %v3005 = vld [vmem:[#allocation14 + $0x140] sm:$0xf]
    %v3006 = vld [vmem:[#allocation14 + $0x144] sm:$0xf]
    %v3007 = vld [vmem:[#allocation14 + $0x148] sm:$0xf]
    %v3008 = vld [vmem:[#allocation14 + $0x14c] sm:$0xf]
    %v3009 = vld [vmem:[#allocation14 + $0x150] sm:$0xf]
    %v3010 = vld [vmem:[#allocation14 + $0x154] sm:$0xf]
    %v3011 = vld [vmem:[#allocation14 + $0x158] sm:$0xf]
    %v3012 = vld [vmem:[#allocation14 + $0x15c] sm:$0xf]
    %v3013 = vld [vmem:[#allocation14 + $0x160] sm:$0xf]
    %v3014 = vld [vmem:[#allocation14 + $0x164] sm:$0xf]
    %v3015 = vld [vmem:[#allocation14 + $0x168] sm:$0xf]
    %v3016 = vld [vmem:[#allocation14 + $0x16c] sm:$0xf]
    %v3017 = vld [vmem:[#allocation14 + $0x170] sm:$0xf]
    %v3018 = vld [vmem:[#allocation14 + $0x174] sm:$0xf]
    %v3019 = vld [vmem:[#allocation14 + $0x178] sm:$0xf]
    %v3020 = vld [vmem:[#allocation14 + $0x17c] sm:$0xf]
    %v3021 = vld [vmem:[#allocation14 + $0x180] sm:$0xf]
    %v3022 = vld [vmem:[#allocation14 + $0x184] sm:$0xf]
    %v3023 = vld [vmem:[#allocation14 + $0x188] sm:$0xf]
    %v3024 = vld [vmem:[#allocation14 + $0x18c] sm:$0xf]
    %v3025 = vld [vmem:[#allocation14 + $0x190] sm:$0xf]
    %v3026 = vld [vmem:[#allocation14 + $0x194] sm:$0xf]
    %v3027 = vld [vmem:[#allocation14 + $0x198] sm:$0xf]
    %v3028 = vld [vmem:[#allocation14 + $0x19c] sm:$0xf]
    %v3029 = vld [vmem:[#allocation14 + $0x1a0] sm:$0xf]
    %v3030 = vld [vmem:[#allocation14 + $0x1a4] sm:$0xf]
    %v3031 = vld [vmem:[#allocation14 + $0x1a8] sm:$0xf]
    %v3032 = vld [vmem:[#allocation14 + $0x1ac] sm:$0xf]
    %v3033 = vld [vmem:[#allocation14 + $0x1b0] sm:$0xf]
    %v3034 = vld [vmem:[#allocation14 + $0x1b4] sm:$0xf]
    %v3035 = vld [vmem:[#allocation14 + $0x1b8] sm:$0xf]
    %v3036 = vld [vmem:[#allocation14 + $0x1bc] sm:$0xf]
    %v3037 = vld [vmem:[#allocation14 + $0x1c0] sm:$0xf]
    %v3038 = vld [vmem:[#allocation14 + $0x1c4] sm:$0xf]
    %v3039 = vld [vmem:[#allocation14 + $0x1c8] sm:$0xf]
    %v3040 = vld [vmem:[#allocation14 + $0x1cc] sm:$0xf]
    %v3041 = vld [vmem:[#allocation14 + $0x1d0] sm:$0xf]
    %v3042 = vld [vmem:[#allocation14 + $0x1d4] sm:$0xf]
    %v3043 = vld [vmem:[#allocation14 + $0x1d8] sm:$0xf]
    %v3044 = vld [vmem:[#allocation14 + $0x1dc] sm:$0xf]
    %v3045 = vld [vmem:[#allocation14 + $0x1e0] sm:$0xf]
    %v3046 = vld [vmem:[#allocation14 + $0x1e4] sm:$0xf]
    %v3047 = vld [vmem:[#allocation14 + $0x1e8] sm:$0xf]
    %v3048 = vld [vmem:[#allocation14 + $0x1ec] sm:$0xf]
    %v3049 = vld [vmem:[#allocation14 + $0x1f0] sm:$0xf]
    %v3050 = vld [vmem:[#allocation14 + $0x1f4] sm:$0xf]
    %v3051 = vld [vmem:[#allocation14 + $0x1f8] sm:$0xf]
    %v3052 = vld [vmem:[#allocation14 + $0x1fc] sm:$0xf]
    %v3053 = vld [vmem:[%s12] sm:$0x1]
    %v3055 = vlaneseq
    %v3056 = vshrl.u32 %v3055, 7
    %v3057 = vsub.s32 0, %v3056
    %v3058 = vrot.slane %v3053, %v3057
    %v3188 = vunpack.c.l.b16 %v2925
    %v3189 = vunpack.c.l.b16 %v2926
    %v3190 = vunpack.c.l.b16 %v2927
    %v3191 = vunpack.c.l.b16 %v2928
    %v3192 = vunpack.c.l.b16 %v2929
    %v3193 = vunpack.c.l.b16 %v2930
    %v3194 = vunpack.c.l.b16 %v2931
    %v3195 = vunpack.c.l.b16 %v2932
    %v3196 = vunpack.c.l.b16 %v2933
    %v3197 = vunpack.c.l.b16 %v2934
    %v3198 = vunpack.c.l.b16 %v2935
    %v3199 = vunpack.c.l.b16 %v2936
    %v3200 = vunpack.c.l.b16 %v2937
    %v3201 = vunpack.c.l.b16 %v2938
    %v3202 = vunpack.c.l.b16 %v2939
    %v3203 = vunpack.c.l.b16 %v2940
    %v3204 = vunpack.c.l.b16 %v2941
    %v3205 = vunpack.c.l.b16 %v2942
    %v3206 = vunpack.c.l.b16 %v2943
    %v3207 = vunpack.c.l.b16 %v2944
    %v3208 = vunpack.c.l.b16 %v2945
    %v3209 = vunpack.c.l.b16 %v2946
    %v3210 = vunpack.c.l.b16 %v2947
    %v3211 = vunpack.c.l.b16 %v2948
    %v3212 = vunpack.c.l.b16 %v2949
    %v3213 = vunpack.c.l.b16 %v2950
    %v3214 = vunpack.c.l.b16 %v2951
    %v3215 = vunpack.c.l.b16 %v2952
    %v3216 = vunpack.c.l.b16 %v2953
    %v3217 = vunpack.c.l.b16 %v2954
    %v3218 = vunpack.c.l.b16 %v2955
    %v3219 = vunpack.c.l.b16 %v2956
    %v3220 = vunpack.c.l.b16 %v2957
    %v3221 = vunpack.c.l.b16 %v2958
    %v3222 = vunpack.c.l.b16 %v2959
    %v3223 = vunpack.c.l.b16 %v2960
    %v3224 = vunpack.c.l.b16 %v2961
    %v3225 = vunpack.c.l.b16 %v2962
    %v3226 = vunpack.c.l.b16 %v2963
    %v3227 = vunpack.c.l.b16 %v2964
    %v3228 = vunpack.c.l.b16 %v2965
    %v3229 = vunpack.c.l.b16 %v2966
    %v3230 = vunpack.c.l.b16 %v2967
    %v3231 = vunpack.c.l.b16 %v2968
    %v3232 = vunpack.c.l.b16 %v2969
    %v3233 = vunpack.c.l.b16 %v2970
    %v3234 = vunpack.c.l.b16 %v2971
    %v3235 = vunpack.c.l.b16 %v2972
    %v3236 = vunpack.c.l.b16 %v2973
    %v3237 = vunpack.c.l.b16 %v2974
    %v3238 = vunpack.c.l.b16 %v2975
    %v3239 = vunpack.c.l.b16 %v2976
    %v3240 = vunpack.c.l.b16 %v2977
    %v3241 = vunpack.c.l.b16 %v2978
    %v3242 = vunpack.c.l.b16 %v2979
    %v3243 = vunpack.c.l.b16 %v2980
    %v3244 = vunpack.c.l.b16 %v2981
    %v3245 = vunpack.c.l.b16 %v2982
    %v3246 = vunpack.c.l.b16 %v2983
    %v3247 = vunpack.c.l.b16 %v2984
    %v3248 = vunpack.c.l.b16 %v2985
    %v3249 = vunpack.c.l.b16 %v2986
    %v3250 = vunpack.c.l.b16 %v2987
    %v3251 = vunpack.c.l.b16 %v2988
    %v3252 = vunpack.c.l.b16 %v2989
    %v3253 = vunpack.c.l.b16 %v2990
    %v3254 = vunpack.c.l.b16 %v2991
    %v3255 = vunpack.c.l.b16 %v2992
    %v3256 = vunpack.c.l.b16 %v2993
    %v3257 = vunpack.c.l.b16 %v2994
    %v3258 = vunpack.c.l.b16 %v2995
    %v3259 = vunpack.c.l.b16 %v2996
    %v3260 = vunpack.c.l.b16 %v2997
    %v3261 = vunpack.c.l.b16 %v2998
    %v3262 = vunpack.c.l.b16 %v2999
    %v3263 = vunpack.c.l.b16 %v3000
    %v3264 = vunpack.c.l.b16 %v3001
    %v3265 = vunpack.c.l.b16 %v3002
    %v3266 = vunpack.c.l.b16 %v3003
    %v3267 = vunpack.c.l.b16 %v3004
    %v3268 = vunpack.c.l.b16 %v3005
    %v3269 = vunpack.c.l.b16 %v3006
    %v3270 = vunpack.c.l.b16 %v3007
    %v3271 = vunpack.c.l.b16 %v3008
    %v3272 = vunpack.c.l.b16 %v3009
    %v3273 = vunpack.c.l.b16 %v3010
    %v3274 = vunpack.c.l.b16 %v3011
    %v3275 = vunpack.c.l.b16 %v3012
    %v3276 = vunpack.c.l.b16 %v3013
    %v3277 = vunpack.c.l.b16 %v3014
    %v3278 = vunpack.c.l.b16 %v3015
    %v3279 = vunpack.c.l.b16 %v3016
    %v3280 = vunpack.c.l.b16 %v3017
    %v3281 = vunpack.c.l.b16 %v3018
    %v3282 = vunpack.c.l.b16 %v3019
    %v3283 = vunpack.c.l.b16 %v3020
    %v3284 = vunpack.c.l.b16 %v3021
    %v3285 = vunpack.c.l.b16 %v3022
    %v3286 = vunpack.c.l.b16 %v3023
    %v3287 = vunpack.c.l.b16 %v3024
    %v3288 = vunpack.c.l.b16 %v3025
    %v3289 = vunpack.c.l.b16 %v3026
    %v3290 = vunpack.c.l.b16 %v3027
    %v3291 = vunpack.c.l.b16 %v3028
    %v3292 = vunpack.c.l.b16 %v3029
    %v3293 = vunpack.c.l.b16 %v3030
    %v3294 = vunpack.c.l.b16 %v3031
    %v3295 = vunpack.c.l.b16 %v3032
    %v3296 = vunpack.c.l.b16 %v3033
    %v3297 = vunpack.c.l.b16 %v3034
    %v3298 = vunpack.c.l.b16 %v3035
    %v3299 = vunpack.c.l.b16 %v3036
    %v3300 = vunpack.c.l.b16 %v3037
    %v3301 = vunpack.c.l.b16 %v3038
    %v3302 = vunpack.c.l.b16 %v3039
    %v3303 = vunpack.c.l.b16 %v3040
    %v3304 = vunpack.c.l.b16 %v3041
    %v3305 = vunpack.c.l.b16 %v3042
    %v3306 = vunpack.c.l.b16 %v3043
    %v3307 = vunpack.c.l.b16 %v3044
    %v3308 = vunpack.c.l.b16 %v3045
    %v3309 = vunpack.c.l.b16 %v3046
    %v3310 = vunpack.c.l.b16 %v3047
    %v3311 = vunpack.c.l.b16 %v3048
    %v3312 = vunpack.c.l.b16 %v3049
    %v3313 = vunpack.c.l.b16 %v3050
    %v3314 = vunpack.c.l.b16 %v3051
    %v3315 = vunpack.c.l.b16 %v3052
    %v3316 = vpack.c.b16 %v3189, %v3188
    %v3317 = vpack.c.b16 %v3191, %v3190
    %v3318 = vpack.c.b16 %v3193, %v3192
    %v3319 = vpack.c.b16 %v3195, %v3194
    %v3320 = vpack.c.b16 %v3197, %v3196
    %v3321 = vpack.c.b16 %v3199, %v3198
    %v3322 = vpack.c.b16 %v3201, %v3200
    %v3323 = vpack.c.b16 %v3203, %v3202
    %v3324 = vpack.c.b16 %v3205, %v3204
    %v3325 = vpack.c.b16 %v3207, %v3206
    %v3326 = vpack.c.b16 %v3209, %v3208
    %v3327 = vpack.c.b16 %v3211, %v3210
    %v3328 = vpack.c.b16 %v3213, %v3212
    %v3329 = vpack.c.b16 %v3215, %v3214
    %v3330 = vpack.c.b16 %v3217, %v3216
    %v3331 = vpack.c.b16 %v3219, %v3218
    %v3332 = vpack.c.b16 %v3221, %v3220
    %v3333 = vpack.c.b16 %v3223, %v3222
    %v3334 = vpack.c.b16 %v3225, %v3224
    %v3335 = vpack.c.b16 %v3227, %v3226
    %v3336 = vpack.c.b16 %v3229, %v3228
    %v3337 = vpack.c.b16 %v3231, %v3230
    %v3338 = vpack.c.b16 %v3233, %v3232
    %v3339 = vpack.c.b16 %v3235, %v3234
    %v3340 = vpack.c.b16 %v3237, %v3236
    %v3341 = vpack.c.b16 %v3239, %v3238
    %v3342 = vpack.c.b16 %v3241, %v3240
    %v3343 = vpack.c.b16 %v3243, %v3242
    %v3344 = vpack.c.b16 %v3245, %v3244
    %v3345 = vpack.c.b16 %v3247, %v3246
    %v3346 = vpack.c.b16 %v3249, %v3248
    %v3347 = vpack.c.b16 %v3251, %v3250
    %v3348 = vpack.c.b16 %v3253, %v3252
    %v3349 = vpack.c.b16 %v3255, %v3254
    %v3350 = vpack.c.b16 %v3257, %v3256
    %v3351 = vpack.c.b16 %v3259, %v3258
    %v3352 = vpack.c.b16 %v3261, %v3260
    %v3353 = vpack.c.b16 %v3263, %v3262
    %v3354 = vpack.c.b16 %v3265, %v3264
    %v3355 = vpack.c.b16 %v3267, %v3266
    %v3356 = vpack.c.b16 %v3269, %v3268
    %v3357 = vpack.c.b16 %v3271, %v3270
    %v3358 = vpack.c.b16 %v3273, %v3272
    %v3359 = vpack.c.b16 %v3275, %v3274
    %v3360 = vpack.c.b16 %v3277, %v3276
    %v3361 = vpack.c.b16 %v3279, %v3278
    %v3362 = vpack.c.b16 %v3281, %v3280
    %v3363 = vpack.c.b16 %v3283, %v3282
    %v3364 = vpack.c.b16 %v3285, %v3284
    %v3365 = vpack.c.b16 %v3287, %v3286
    %v3366 = vpack.c.b16 %v3289, %v3288
    %v3367 = vpack.c.b16 %v3291, %v3290
    %v3368 = vpack.c.b16 %v3293, %v3292
    %v3369 = vpack.c.b16 %v3295, %v3294
    %v3370 = vpack.c.b16 %v3297, %v3296
    %v3371 = vpack.c.b16 %v3299, %v3298
    %v3372 = vpack.c.b16 %v3301, %v3300
    %v3373 = vpack.c.b16 %v3303, %v3302
    %v3374 = vpack.c.b16 %v3305, %v3304
    %v3375 = vpack.c.b16 %v3307, %v3306
    %v3376 = vpack.c.b16 %v3309, %v3308
    %v3377 = vpack.c.b16 %v3311, %v3310
    %v3378 = vpack.c.b16 %v3313, %v3312
    %v3379 = vpack.c.b16 %v3315, %v3314
    %3444 = vmatprep.subr.bf16.mxu0 0
    %3445 = vmatpush1.bf16.msra.mxu0 %v3316
    %3446 = vmatprep.subr.bf16.mxu0 0
    %3447 = vmatpush1.bf16.msra.mxu0 %v3317
    %3448 = vmatprep.subr.bf16.mxu0 0
    %3449 = vmatpush1.bf16.msra.mxu0 %v3318
    %3450 = vmatprep.subr.bf16.mxu0 0
    %3451 = vmatpush1.bf16.msra.mxu0 %v3319
    %3452 = vmatprep.subr.bf16.mxu0 0
    %3453 = vmatpush1.bf16.msra.mxu0 %v3320
    %3454 = vmatprep.subr.bf16.mxu0 0
    %3455 = vmatpush1.bf16.msra.mxu0 %v3321
    %3456 = vmatprep.subr.bf16.mxu0 0
    %3457 = vmatpush1.bf16.msra.mxu0 %v3322
    %3458 = vmatprep.subr.bf16.mxu0 0
    %3459 = vmatpush1.bf16.msra.mxu0 %v3323
    %3460 = vmatprep.subr.bf16.mxu0 0
    %3461 = vmatpush1.bf16.msra.mxu0 %v3324
    %3462 = vmatprep.subr.bf16.mxu0 0
    %3463 = vmatpush1.bf16.msra.mxu0 %v3325
    %3464 = vmatprep.subr.bf16.mxu0 0
    %3465 = vmatpush1.bf16.msra.mxu0 %v3326
    %3466 = vmatprep.subr.bf16.mxu0 0
    %3467 = vmatpush1.bf16.msra.mxu0 %v3327
    %3468 = vmatprep.subr.bf16.mxu0 0
    %3469 = vmatpush1.bf16.msra.mxu0 %v3328
    %3470 = vmatprep.subr.bf16.mxu0 0
    %3471 = vmatpush1.bf16.msra.mxu0 %v3329
    %3472 = vmatprep.subr.bf16.mxu0 0
    %3473 = vmatpush1.bf16.msra.mxu0 %v3330
    %3474 = vmatprep.subr.bf16.mxu0 0
    %3475 = vmatpush1.bf16.msra.mxu0 %v3331
    %3476 = vmatprep.mubr.bf16.mxu0 %v2918
    %3477 = vmatmul.mubr.bf16.gmra.mrb[0].mxu0 %v2917
    %v3478 = vpop.f32.mrb[0].mxu0
    %v3479 = vadd.f32 %v3058, %v3478
    %v3480 = vpop.f32.mrb[0].mxu0
    %v3481 = vpop.f32.mrb[0].mxu0
    %v3482 = vadd.f32 %v3058, %v3481
    %v3483 = vpop.f32.mrb[0].mxu0
    %3484 = vdwg.mxu0
    %3485 = vmatprep.subr.bf16.mxu0 0
    %3486 = vmatpush1.bf16.msra.mxu0 %v3332
    %3487 = vmatprep.subr.bf16.mxu0 0
    %3488 = vmatpush1.bf16.msra.mxu0 %v3333
    %3489 = vmatprep.subr.bf16.mxu0 0
    %3490 = vmatpush1.bf16.msra.mxu0 %v3334
    %3491 = vmatprep.subr.bf16.mxu0 0
    %3492 = vmatpush1.bf16.msra.mxu0 %v3335
    %3493 = vmatprep.subr.bf16.mxu0 0
    %3494 = vmatpush1.bf16.msra.mxu0 %v3336
    %3495 = vmatprep.subr.bf16.mxu0 0
    %3496 = vmatpush1.bf16.msra.mxu0 %v3337
    %3497 = vmatprep.subr.bf16.mxu0 0
    %3498 = vmatpush1.bf16.msra.mxu0 %v3338
    %3499 = vmatprep.subr.bf16.mxu0 0
    %3500 = vmatpush1.bf16.msra.mxu0 %v3339
    %3501 = vmatprep.subr.bf16.mxu0 0
    %3502 = vmatpush1.bf16.msra.mxu0 %v3340
    %3503 = vmatprep.subr.bf16.mxu0 0
    %3504 = vmatpush1.bf16.msra.mxu0 %v3341
    %3505 = vmatprep.subr.bf16.mxu0 0
    %3506 = vmatpush1.bf16.msra.mxu0 %v3342
    %3507 = vmatprep.subr.bf16.mxu0 0
    %3508 = vmatpush1.bf16.msra.mxu0 %v3343
    %3509 = vmatprep.subr.bf16.mxu0 0
    %3510 = vmatpush1.bf16.msra.mxu0 %v3344
    %3511 = vmatprep.subr.bf16.mxu0 0
    %3512 = vmatpush1.bf16.msra.mxu0 %v3345
    %3513 = vmatprep.subr.bf16.mxu0 0
    %3514 = vmatpush1.bf16.msra.mxu0 %v3346
    %3515 = vmatprep.subr.bf16.mxu0 0
    %3516 = vmatpush1.bf16.msra.mxu0 %v3347
    %3517 = vmatprep.mubr.bf16.mxu0 %v2920
    %3518 = vmatmul.mubr.bf16.gmra.mrb[0].mxu0 %v2919
    %v3519 = vpop.f32.mrb[0].mxu0
    %v3520 = vadd.f32 %v3479, %v3519
    %v3521 = vpop.f32.mrb[0].mxu0
    %v3522 = vpop.f32.mrb[0].mxu0
    %v3523 = vadd.f32 %v3482, %v3522
    %v3524 = vpop.f32.mrb[0].mxu0
    %3525 = vdwg.mxu0
    %3526 = vmatprep.subr.bf16.mxu0 0
    %3527 = vmatpush1.bf16.msra.mxu0 %v3348
    %3528 = vmatprep.subr.bf16.mxu0 0
    %3529 = vmatpush1.bf16.msra.mxu0 %v3349
    %3530 = vmatprep.subr.bf16.mxu0 0
    %3531 = vmatpush1.bf16.msra.mxu0 %v3350
    %3532 = vmatprep.subr.bf16.mxu0 0
    %3533 = vmatpush1.bf16.msra.mxu0 %v3351
    %3534 = vmatprep.subr.bf16.mxu0 0
    %3535 = vmatpush1.bf16.msra.mxu0 %v3352
    %3536 = vmatprep.subr.bf16.mxu0 0
    %3537 = vmatpush1.bf16.msra.mxu0 %v3353
    %3538 = vmatprep.subr.bf16.mxu0 0
    %3539 = vmatpush1.bf16.msra.mxu0 %v3354
    %3540 = vmatprep.subr.bf16.mxu0 0
    %3541 = vmatpush1.bf16.msra.mxu0 %v3355
    %3542 = vmatprep.subr.bf16.mxu0 0
    %3543 = vmatpush1.bf16.msra.mxu0 %v3356
    %3544 = vmatprep.subr.bf16.mxu0 0
    %3545 = vmatpush1.bf16.msra.mxu0 %v3357
    %3546 = vmatprep.subr.bf16.mxu0 0
    %3547 = vmatpush1.bf16.msra.mxu0 %v3358
    %3548 = vmatprep.subr.bf16.mxu0 0
    %3549 = vmatpush1.bf16.msra.mxu0 %v3359
    %3550 = vmatprep.subr.bf16.mxu0 0
    %3551 = vmatpush1.bf16.msra.mxu0 %v3360
    %3552 = vmatprep.subr.bf16.mxu0 0
    %3553 = vmatpush1.bf16.msra.mxu0 %v3361
    %3554 = vmatprep.subr.bf16.mxu0 0
    %3555 = vmatpush1.bf16.msra.mxu0 %v3362
    %3556 = vmatprep.subr.bf16.mxu0 0
    %3557 = vmatpush1.bf16.msra.mxu0 %v3363
    %3558 = vmatprep.mubr.bf16.mxu0 %v2922
    %3559 = vmatmul.mubr.bf16.gmra.mrb[0].mxu0 %v2921
    %v3560 = vpop.f32.mrb[0].mxu0
    %v3561 = vadd.f32 %v3520, %v3560
    %v3562 = vpop.f32.mrb[0].mxu0
    %v3563 = vpop.f32.mrb[0].mxu0
    %v3564 = vadd.f32 %v3523, %v3563
    %v3565 = vpop.f32.mrb[0].mxu0
    %3566 = vdwg.mxu0
    %3567 = vmatprep.subr.bf16.mxu0 0
    %3568 = vmatpush1.bf16.msra.mxu0 %v3364
    %3569 = vmatprep.subr.bf16.mxu0 0
    %3570 = vmatpush1.bf16.msra.mxu0 %v3365
    %3571 = vmatprep.subr.bf16.mxu0 0
    %3572 = vmatpush1.bf16.msra.mxu0 %v3366
    %3573 = vmatprep.subr.bf16.mxu0 0
    %3574 = vmatpush1.bf16.msra.mxu0 %v3367
    %3575 = vmatprep.subr.bf16.mxu0 0
    %3576 = vmatpush1.bf16.msra.mxu0 %v3368
    %3577 = vmatprep.subr.bf16.mxu0 0
    %3578 = vmatpush1.bf16.msra.mxu0 %v3369
    %3579 = vmatprep.subr.bf16.mxu0 0
    %3580 = vmatpush1.bf16.msra.mxu0 %v3370
    %3581 = vmatprep.subr.bf16.mxu0 0
    %3582 = vmatpush1.bf16.msra.mxu0 %v3371
    %3583 = vmatprep.subr.bf16.mxu0 0
    %3584 = vmatpush1.bf16.msra.mxu0 %v3372
    %3585 = vmatprep.subr.bf16.mxu0 0
    %3586 = vmatpush1.bf16.msra.mxu0 %v3373
    %3587 = vmatprep.subr.bf16.mxu0 0
    %3588 = vmatpush1.bf16.msra.mxu0 %v3374
    %3589 = vmatprep.subr.bf16.mxu0 0
    %3590 = vmatpush1.bf16.msra.mxu0 %v3375
    %3591 = vmatprep.subr.bf16.mxu0 0
    %3592 = vmatpush1.bf16.msra.mxu0 %v3376
    %3593 = vmatprep.subr.bf16.mxu0 0
    %3594 = vmatpush1.bf16.msra.mxu0 %v3377
    %3595 = vmatprep.subr.bf16.mxu0 0
    %3596 = vmatpush1.bf16.msra.mxu0 %v3378
    %3597 = vmatprep.subr.bf16.mxu0 0
    %3598 = vmatpush1.bf16.msra.mxu0 %v3379
    %3599 = vmatprep.mubr.bf16.mxu0 %v2924
    %3600 = vmatmul.mubr.bf16.gmra.mrb[0].mxu0 %v2923
    %v3601 = vpop.f32.mrb[0].mxu0
    %v3602 = vadd.f32 %v3561, %v3601
    %v3603 = vpop.f32.mrb[0].mxu0
    %v3604 = vpop.f32.mrb[0].mxu0
    %v3605 = vadd.f32 %v3564, %v3604
    %v3606 = vpop.f32.mrb[0].mxu0
    %3607 = vdwg.mxu0
    %3608 = vst [vmem:[#allocation16] sm:$0xff] %v3602
    %3609 = vst [vmem:[#allocation16 + $0x8] sm:$0xff] %v3605
    // Predicated region
    $region86: #{tpu_custom_call.1} parent=1 // pred_check
      _
    $region87: #{tpu_custom_call.1} parent=1 // pred_check_branch
      %3611 = sbr.rel (0) target = $region89
    $region88: #{tpu_custom_call.1} parent=1 // pred_region
      %s3613 = ssub.s32 256, 256
      %3614 = vsyncadd [#allocation4], %s3613
      %s3615 = sshll.u32 [#allocation16], 4
      %s3616 = int_to_ptr.vmem [resolvable:$true] %s3615
      %3621 = dma.vmem_to_hbm [thread:$0]  %s3616, 256, %s13, [#allocation4], 128, 128, 8
    $region89: #{tpu_custom_call.1} parent=1 // pred_fallthru
      _
    // Predicated region
    $region90: #{tpu_custom_call.1} parent=1 // pred_check
      _
    $region91: #{tpu_custom_call.1} parent=1 // pred_check_branch
      %3623 = sbr.rel (0) target = $region93
    $region92: #{tpu_custom_call.1} parent=1 // pred_region
      %3624 = dma.done [#allocation4], 256
    $region93: #{tpu_custom_call.1} parent=1 // pred_fallthru
      _
    %3625 = vsyncpa [#allocation3], 1
    %3626 = vsyncpa [#allocation6], 1
    %3627 = vsyncpa [#allocation9], 1
    %3628 = vsyncpa [#allocation12], 1
    %3629 = vsyncpa [#allocation15], 1
    %3630 = vsyncpa [#allocation4], 1

</llo_original>
